<compile_context>
chip_gen: v7x
topology: tpu7x:2x2x1
jax: 0.10.0
libtpu: 0.0.40
codegen_flags: <defaults>
</compile_context>

<pallas_src>
from functools import partial

import numpy as np
import jax
import jax.numpy as jnp
from jax.experimental import pallas as pl
from jax.experimental.pallas import tpu as pltpu


# ================================ in-kernel helpers ================================

_SQRT1_2 = 0.7071067811865476


def _erf_approx(z):
    """Abramowitz & Stegun 7.1.26 erf for z >= 0 (|err| <= 1.5e-7)."""
    a1, a2, a3, a4, a5 = 0.254829592, -0.284496736, 1.421413741, -1.453152027, 1.061405429
    t = 1.0 / (1.0 + 0.3275911 * z)
    poly = ((((a5 * t + a4) * t + a3) * t + a2) * t + a1) * t
    return 1.0 - poly * jnp.exp(-z * z)


def _gelu_exact(x):
    """PyTorch-default (erf) GELU."""
    e = _erf_approx(jnp.abs(x) * _SQRT1_2)
    return 0.5 * x * (1.0 + jnp.where(x >= 0.0, e, -e))


# ================================ Pallas kernels ================================

def _swin_block_kernel(*refs, num_heads, eps, has_valid, win_tokens):
    """Fused Swin block: LN1 + per-window MHSA + residual + LN2 + MLP + residual.

    One grid step = WG windows (win_tokens tokens each), tokens ordered window-major.
    bias is (WG, num_heads, N, N): relative-position bias + shift mask for each window.
    """
    if has_valid:
        (x_ref, valid_ref, bias_ref, ln1g_ref, ln1b_ref, wqkv_ref, bqkv_ref,
         wproj_ref, bproj_ref, ln2g_ref, ln2b_ref, w1_ref, b1_ref, w2_ref, b2_ref,
         o_ref) = refs
    else:
        (x_ref, bias_ref, ln1g_ref, ln1b_ref, wqkv_ref, bqkv_ref,
         wproj_ref, bproj_ref, ln2g_ref, ln2b_ref, w1_ref, b1_ref, w2_ref, b2_ref,
         o_ref) = refs
        valid_ref = None

    x = x_ref[...]                                        # (ROWSg, C) f32
    ROWSg, C = x.shape
    N = win_tokens
    WG = ROWSg // N                                       # windows in this step
    hd = C // num_heads

    # ---- LayerNorm 1 (f32 VPU path) ----
    mu = jnp.mean(x, axis=-1, keepdims=True)
    var = jnp.mean(jnp.square(x - mu), axis=-1, keepdims=True)
    n1 = (x - mu) * jax.lax.rsqrt(var + eps) * ln1g_ref[...] + ln1b_ref[...]
    if has_valid:
        n1 = n1 * valid_ref[...]                          # reference zero-pads AFTER norm1

    # ---- QKV: one (ROWSg, C) @ (C, 3C) MXU matmul; 1/sqrt(hd) folded into q columns ----
    qkv = jnp.dot(n1.astype(jnp.bfloat16), wqkv_ref[...],
                  preferred_element_type=jnp.float32) + bqkv_ref[...]    # (ROWSg, 3C) f32
    qkv_bf = qkv.astype(jnp.bfloat16)                     # single hoisted cast (v5e VALU)

    bias = bias_ref[...]                                  # (WG, nh, N, N) f32

    # ---- per-window multi-head attention (no k transpose; exact softmax) ----
    head_outs = []
    for h in range(num_heads):
        q = qkv_bf[:, h * hd:(h + 1) * hd].reshape(WG, N, hd)
        k = qkv_bf[:, C + h * hd:C + (h + 1) * hd].reshape(WG, N, hd)
        v = qkv_bf[:, 2 * C + h * hd:2 * C + (h + 1) * hd].reshape(WG, N, hd)
        s = jnp.einsum('wqd,wkd->wqk', q, k,
                       preferred_element_type=jnp.float32)               # (WG, N, N)
        s = s + bias[:, h]
        s = s - jnp.max(s, axis=-1, keepdims=True)
        e = jnp.exp(s)
        p = e / jnp.sum(e, axis=-1, keepdims=True)                       # exact softmax
        o_h = jnp.einsum('wqk,wkd->wqd', p.astype(jnp.bfloat16), v,
                         preferred_element_type=jnp.float32)             # (WG, N, hd)
        head_outs.append(o_h.reshape(ROWSg, hd))
    cat = head_outs[0] if num_heads == 1 else jnp.concatenate(head_outs, axis=-1)

    # ---- ONE output projection on the concatenated head outputs ----
    attn = jnp.dot(cat.astype(jnp.bfloat16), wproj_ref[...],
                   preferred_element_type=jnp.float32) + bproj_ref[...]  # (ROWSg, C)
    x1 = x + attn                                         # residual (stochastic depth p=0)

    # ---- LayerNorm 2 + MLP (exact-erf GELU) ----
    mu2 = jnp.mean(x1, axis=-1, keepdims=True)
    var2 = jnp.mean(jnp.square(x1 - mu2), axis=-1, keepdims=True)
    n2 = (x1 - mu2) * jax.lax.rsqrt(var2 + eps) * ln2g_ref[...] + ln2b_ref[...]
    h1 = jnp.dot(n2.astype(jnp.bfloat16), w1_ref[...],
                 preferred_element_type=jnp.float32) + b1_ref[...]       # (ROWSg, hidden)
    h1 = _gelu_exact(h1)
    mlp = jnp.dot(h1.astype(jnp.bfloat16), w2_ref[...],
                  preferred_element_type=jnp.float32) + b2_ref[...]
    o_ref[...] = x1 + mlp


def _patch_merge_kernel(x_ref, g_ref, b_ref, w_ref, o_ref, *, eps):
    x = x_ref[...]                                        # (ROWS, 4C); 4C = 128 lanes
    mu = jnp.mean(x, axis=-1, keepdims=True)
    var = jnp.mean(jnp.square(x - mu), axis=-1, keepdims=True)
    xn = (x - mu) * jax.lax.rsqrt(var + eps) * g_ref[...] + b_ref[...]
    o_ref[...] = jnp.dot(xn.astype(jnp.bfloat16), w_ref[...],
                         preferred_element_type=jnp.float32)


# ============================ pallas_call wrappers ============================

def _pick_windows_per_step(total_windows, win_tokens, target_rows=512):
    """Largest divisor of total_windows with <= target_rows rows per grid step."""
    cap = max(target_rows // win_tokens, 1)
    wg = 1
    for d in range(1, total_windows + 1):
        if total_windows % d == 0 and d <= cap:
            wg = d
    return wg


def fused_swin_block_call(xw, bias_all, bp, valid, *, win_tokens, num_heads, eps):
    ROWS, C = xw.shape
    N = win_tokens
    BW = ROWS // N                                        # total windows (batch * nW)
    WG = _pick_windows_per_step(BW, N)                    # windows per grid step
    TOKg = WG * N                                         # rows per grid step
    num_groups = BW // WG
    Hd = bp["mlp_w1"].shape[-1]
    nh = num_heads
    has_valid = valid is not None

    inputs = [xw]
    in_specs = [pl.BlockSpec((TOKg, C), lambda g: (g, 0))]
    if has_valid:
        inputs.append(valid)
        in_specs.append(pl.BlockSpec((TOKg, 1), lambda g: (g, 0)))
    inputs += [bias_all,
               bp["ln1_g"], bp["ln1_b"], bp["qkv_w"], bp["qkv_b"],
               bp["proj_w"], bp["proj_b"],
               bp["ln2_g"], bp["ln2_b"], bp["mlp_w1"], bp["mlp_b1"],
               bp["mlp_w2"], bp["mlp_b2"]]
    in_specs += [pl.BlockSpec((WG, nh, N, N), lambda g: (g, 0, 0, 0)),
                 pl.BlockSpec((1, C), lambda g: (0, 0)),
                 pl.BlockSpec((1, C), lambda g: (0, 0)),
                 pl.BlockSpec((C, 3 * C), lambda g: (0, 0)),
                 pl.BlockSpec((1, 3 * C), lambda g: (0, 0)),
                 pl.BlockSpec((C, C), lambda g: (0, 0)),
                 pl.BlockSpec((1, C), lambda g: (0, 0)),
                 pl.BlockSpec((1, C), lambda g: (0, 0)),
                 pl.BlockSpec((1, C), lambda g: (0, 0)),
                 pl.BlockSpec((C, Hd), lambda g: (0, 0)),
                 pl.BlockSpec((1, Hd), lambda g: (0, 0)),
                 pl.BlockSpec((Hd, C), lambda g: (0, 0)),
                 pl.BlockSpec((1, C), lambda g: (0, 0))]

    hd = C // nh
    flops = (2 * ROWS * C * 3 * C                        # qkv
             + nh * BW * 2 * N * N * hd * 2              # scores + pv
             + 2 * ROWS * C * C                          # out projection
             + 2 * ROWS * C * Hd * 2)                    # mlp
    transcendentals = BW * nh * N * N + ROWS * Hd        # softmax exp + gelu exp
    bytes_accessed = (2 * ROWS * C * 4                   # x in + out (f32)
                      + BW * nh * N * N * 4              # per-window bias (f32)
                      + (3 * C * C + C * C + 2 * C * Hd) * 2   # bf16 weights
                      + (6 * C + Hd) * 4)                # ln params + biases

    return pl.pallas_call(
        partial(_swin_block_kernel, num_heads=num_heads, eps=eps,
                has_valid=has_valid, win_tokens=N),
        out_shape=jax.ShapeDtypeStruct((ROWS, C), jnp.float32),
        grid=(num_groups,),
        in_specs=in_specs,
        out_specs=pl.BlockSpec((TOKg, C), lambda g: (g, 0)),
        compiler_params=pltpu.CompilerParams(dimension_semantics=("parallel",)),
        cost_estimate=pl.CostEstimate(flops=flops, transcendentals=transcendentals,
                                      bytes_accessed=bytes_accessed),
    )(*inputs)


# ======================= static helpers (bias / masks / index) =======================

def make_relative_position_index(ws):
    coords_h = np.arange(ws[0])
    coords_w = np.arange(ws[1])
    coords = np.stack(np.meshgrid(coords_h, coords_w, indexing="ij"))
    coords_flat = coords.reshape(2, -1)
    rel = coords_flat[:, :, None] - coords_flat[:, None, :]
    rel = rel.transpose(1, 2, 0).astype(np.int64)
    rel[:, :, 0] += ws[0] - 1
    rel[:, :, 1] += ws[1] - 1
    rel[:, :, 0] *= 2 * ws[1] - 1
    return jnp.asarray(rel.sum(-1).reshape(-1), dtype=jnp.int32)


def get_relative_position_bias(table, index, ws, num_heads):
    N = ws[0] * ws[1]
    bias = table[index]                                          # (N*N, nh)
    return bias.reshape(N, N, num_heads).transpose(2, 0, 1)      # (nh, N, N)


def compute_attn_mask(pH, pW, ws, ss):
    """Shift mask as a numpy (trace-time constant) array of shape (nW, N, N)."""
    m = np.zeros((pH, pW), np.float32)
    h_slices = ((0, -ws[0]), (-ws[0], -ss[0]), (-ss[0], None))
    w_slices = ((0, -ws[1]), (-ws[1], -ss[1]), (-ss[1], None))
    cnt = 0
    for h in h_slices:
        for w in w_slices:
            m[h[0]:h[1], w[0]:w[1]] = cnt
            cnt += 1
    nwh, nww = pH // ws[0], pW // ws[1]
    m = m.reshape(nwh, ws[0], nww, ws[1]).transpose(0, 2, 1, 3).reshape(-1, ws[0] * ws[1])
    diff = m[:, None, :] - m[:, :, None]
    return np.where(diff != 0, -100.0, 0.0).astype(np.float32)   # (nW, N, N)


# ================================ forward glue ================================

def swin_block_forward(x, bp, window_size, shift_size, num_heads, eps=1e-5):
    B, H, W, C = x.shape
    ws0, ws1 = window_size
    pad_r = (ws1 - W % ws1) % ws1
    pad_b = (ws0 - H % ws0) % ws0
    has_pad = (pad_r > 0) or (pad_b > 0)
    x_p = jnp.pad(x, ((0, 0), (0, pad_b), (0, pad_r), (0, 0))) if has_pad else x
    pH, pW = H + pad_b, W + pad_r
    ss = list(shift_size)
    if ws0 >= pH:
        ss[0] = 0
    if ws1 >= pW:
        ss[1] = 0
    shifted = sum(ss) > 0
    xs = jnp.roll(x_p, shift=(-ss[0], -ss[1]), axis=(1, 2)) if shifted else x_p

    nwh, nww = pH // ws0, pW // ws1
    nW, N = nwh * nww, ws0 * ws1
    BW = B * nW
    ROWS = BW * N
    xw = xs.reshape(B, nwh, ws0, nww, ws1, C).transpose(0, 1, 3, 2, 4, 5).reshape(ROWS, C)

    # Per-window attention bias: precomputed rel-pos bias + trace-time-constant shift
    # mask, tiled over the batch -> (B*nW, nh, N, N).  Tiny (O(windows*N^2)), replaces
    # the old (nh, TOK, TOK) block-diagonal bias.
    rel_bias = bp["rel_bias"]                                           # (nh, N, N)
    if shifted:
        smask = jnp.asarray(compute_attn_mask(pH, pW, (ws0, ws1), ss))  # (nW, N, N)
        comb = rel_bias[None] + smask[:, None]                          # (nW, nh, N, N)
    else:
        comb = jnp.broadcast_to(rel_bias[None], (nW, num_heads, N, N))
    bias_all = jnp.broadcast_to(comb[None], (B, nW, num_heads, N, N)) \
                  .reshape(BW, num_heads, N, N)

    valid = None
    if has_pad:
        v = jnp.zeros((pH, pW), jnp.float32).at[:H, :W].set(1.0)
        v = jnp.broadcast_to(v[None, :, :, None], (B, pH, pW, 1))
        valid = v.reshape(B, nwh, ws0, nww, ws1, 1).transpose(0, 1, 3, 2, 4, 5)
        valid = valid.reshape(ROWS, 1)

    yw = fused_swin_block_call(xw, bias_all, bp, valid, win_tokens=N,
                               num_heads=num_heads, eps=eps)

    y = yw.reshape(B, nwh, nww, ws0, ws1, C).transpose(0, 1, 3, 2, 4, 5).reshape(B, pH, pW, C)
    if shifted:
        y = jnp.roll(y, shift=(ss[0], ss[1]), axis=(1, 2))
    return y[:, :H, :W, :]


def patch_merging_forward(x, pm, eps=1e-5):
    B, H, W, C = x.shape
    if (H % 2) or (W % 2):
        x = jnp.pad(x, ((0, 0), (0, H % 2), (0, W % 2), (0, 0)))
    x0 = x[:, 0::2, 0::2, :]
    x1 = x[:, 1::2, 0::2, :]
    x2 = x[:, 0::2, 1::2, :]
    x3 = x[:, 1::2, 1::2, :]
    xm = jnp.concatenate([x0, x1, x2, x3], axis=-1)                # (B, H2, W2, 4C)
    B_, H2, W2, C4 = xm.shape
    ROWS = B_ * H2 * W2
    C2 = pm["red_w"].shape[-1]
    cost = pl.CostEstimate(flops=2 * ROWS * C4 * C2, transcendentals=0,
                           bytes_accessed=ROWS * C4 * 4 + ROWS * C2 * 4
                           + C4 * C2 * 2 + 2 * C4 * 4)
    out = pl.pallas_call(
        partial(_patch_merge_kernel, eps=eps),
        out_shape=jax.ShapeDtypeStruct((ROWS, C2), jnp.float32),
        grid=(1,),                                                 # whole batch, one step
        in_specs=[pl.BlockSpec((ROWS, C4), lambda i: (0, 0)),
                  pl.BlockSpec((1, C4), lambda i: (0, 0)),
                  pl.BlockSpec((1, C4), lambda i: (0, 0)),
                  pl.BlockSpec((C4, C2), lambda i: (0, 0))],
        out_specs=pl.BlockSpec((ROWS, C2), lambda i: (0, 0)),
        compiler_params=pltpu.CompilerParams(dimension_semantics=("arbitrary",)),
        cost_estimate=cost,
    )(xm.reshape(ROWS, C4), pm["norm_g"], pm["norm_b"], pm["red_w"])
    return out.reshape(B_, H2, W2, C2)


def yolo_swin_block_forward(params, x_nchw, cfg):
    x = jnp.transpose(x_nchw, (0, 2, 3, 1))                        # NCHW -> NHWC
    for i, bp in enumerate(params["blocks"]):
        shift = [0 if i % 2 == 0 else w // 2 for w in cfg["window_size"]]
        x = swin_block_forward(x, bp, cfg["window_size"], shift, cfg["num_heads"])
    if cfg["down_sample"]:
        x = patch_merging_forward(x, params["pm"])
    return jnp.transpose(x, (0, 3, 1, 2))                          # NHWC -> NCHW


# ============================== parameter handling ==============================

def init_params(key, dim, num_heads, window_size, depths, mlp_ratio, down_sample):
    """PyTorch-layout parameters (linear weights stored (out_features, in_features))."""
    hidden = int(dim * mlp_ratio)
    nrel = (2 * window_size[0] - 1) * (2 * window_size[1] - 1)
    rel_index = make_relative_position_index(window_size)
    params = {"blocks": []}
    for _ in range(depths):
        key, *ks = jax.random.split(key, 10)
        blk = dict(
            ln1_g=jnp.ones((dim,), jnp.float32),
            ln1_b=jnp.zeros((dim,), jnp.float32),
            qkv_w=0.1 * jax.random.normal(ks[0], (3 * dim, dim), jnp.float32),
            qkv_b=0.02 * jax.random.normal(ks[1], (3 * dim,), jnp.float32),
            proj_w=0.1 * jax.random.normal(ks[2], (dim, dim), jnp.float32),
            proj_b=0.02 * jax.random.normal(ks[3], (dim,), jnp.float32),
            rel_table=0.5 * jax.random.normal(ks[4], (nrel, num_heads), jnp.float32),
            rel_index=rel_index,
            ln2_g=jnp.ones((dim,), jnp.float32),
            ln2_b=jnp.zeros((dim,), jnp.float32),
            mlp_w1=0.11 * jax.random.normal(ks[5], (hidden, dim), jnp.float32),
            mlp_b1=1e-6 * jax.random.normal(ks[6], (hidden,), jnp.float32),
            mlp_w2=0.11 * jax.random.normal(ks[7], (dim, hidden), jnp.float32),
            mlp_b2=1e-6 * jax.random.normal(ks[8], (dim,), jnp.float32),
        )
        params["blocks"].append(blk)
    if down_sample:
        key, k1 = jax.random.split(key)
        params["pm"] = dict(
            norm_g=jnp.ones((4 * dim,), jnp.float32),
            norm_b=jnp.zeros((4 * dim,), jnp.float32),
            red_w=0.1 * jax.random.normal(k1, (2 * dim, 4 * dim), jnp.float32),
        )
    return params


def prepare_params(raw, num_heads, window_size):
    """One-time transform to kernel layout: transpose to (in, out), fold 1/sqrt(head_dim)
    into the q columns of qkv, cast MXU weights to bf16, keep LN params / biases f32,
    and pre-gather the relative-position bias (nh, N, N) so no per-call bias build."""
    def prep_block(b):
        dim = b["ln1_g"].shape[0]
        scale = float(dim // num_heads) ** -0.5
        qscale = jnp.concatenate([jnp.full((dim,), scale, jnp.float32),
                                  jnp.ones((2 * dim,), jnp.float32)])
        wqkv = (b["qkv_w"].T * qscale[None, :]).astype(jnp.bfloat16)        # (C, 3C)
        bqkv = (b["qkv_b"] * qscale).reshape(1, -1)
        rel_bias = get_relative_position_bias(b["rel_table"], b["rel_index"],
                                              window_size, num_heads)       # (nh, N, N)
        return dict(
            ln1_g=b["ln1_g"].reshape(1, -1), ln1_b=b["ln1_b"].reshape(1, -1),
            qkv_w=wqkv, qkv_b=bqkv,
            proj_w=b["proj_w"].T.astype(jnp.bfloat16),                       # (C, C)
            proj_b=b["proj_b"].reshape(1, -1),
            rel_bias=rel_bias,
            ln2_g=b["ln2_g"].reshape(1, -1), ln2_b=b["ln2_b"].reshape(1, -1),
            mlp_w1=b["mlp_w1"].T.astype(jnp.bfloat16),                       # (C, hidden)
            mlp_b1=b["mlp_b1"].reshape(1, -1),
            mlp_w2=b["mlp_w2"].T.astype(jnp.bfloat16),                       # (hidden, C)
            mlp_b2=b["mlp_b2"].reshape(1, -1),
        )
    out = {"blocks": [prep_block(b) for b in raw["blocks"]]}
    if "pm" in raw:
        out["pm"] = dict(norm_g=raw["pm"]["norm_g"].reshape(1, -1),
                         norm_b=raw["pm"]["norm_b"].reshape(1, -1),
                         red_w=raw["pm"]["red_w"].T.astype(jnp.bfloat16))    # (4C, 2C)
    return out


# ============================ pure-JAX reference (f32) ============================

def _ref_layernorm(x, g, b, eps=1e-5):
    mu = jnp.mean(x, -1, keepdims=True)
    var = jnp.mean(jnp.square(x - mu), -1, keepdims=True)
    return (x - mu) * jax.lax.rsqrt(var + eps) * g + b


def _ref_shifted_window_attention(x, qkv_w, qkv_b, proj_w, proj_b, rel_bias,
                                  window_size, num_heads, shift_size):
    B, H, W, C = x.shape
    ws0, ws1 = window_size
    pad_r = (ws1 - W % ws1) % ws1
    pad_b = (ws0 - H % ws0) % ws0
    x = jnp.pad(x, ((0, 0), (0, pad_b), (0, pad_r), (0, 0)))
    pH, pW = H + pad_b, W + pad_r
    ss = list(shift_size)
    if ws0 >= pH:
        ss[0] = 0
    if ws1 >= pW:
        ss[1] = 0
    if sum(ss) > 0:
        x = jnp.roll(x, (-ss[0], -ss[1]), (1, 2))
    nW = (pH // ws0) * (pW // ws1)
    N = ws0 * ws1
    xw = x.reshape(B, pH // ws0, ws0, pW // ws1, ws1, C).transpose(0, 1, 3, 2, 4, 5)
    xw = xw.reshape(B * nW, N, C)
    qkv = xw @ qkv_w.T + qkv_b
    qkv = qkv.reshape(B * nW, N, 3, num_heads, C // num_heads).transpose(2, 0, 3, 1, 4)
    q, k, v = qkv[0] * (C // num_heads) ** -0.5, qkv[1], qkv[2]
    attn = q @ jnp.swapaxes(k, -2, -1) + rel_bias[None]
    if sum(ss) > 0:
        mask = compute_attn_mask(pH, pW, (ws0, ws1), ss)
        attn = (attn.reshape(B, nW, num_heads, N, N) + mask[None, :, None])
        attn = attn.reshape(B * nW, num_heads, N, N)
    attn = jax.nn.softmax(attn, -1)
    y = (attn @ v).transpose(0, 2, 1, 3).reshape(B * nW, N, C)
    y = y @ proj_w.T + proj_b
    y = y.reshape(B, pH // ws0, pW // ws1, ws0, ws1, C).transpose(0, 1, 3, 2, 4, 5)
    y = y.reshape(B, pH, pW, C)
    if sum(ss) > 0:
        y = jnp.roll(y, (ss[0], ss[1]), (1, 2))
    return y[:, :H, :W, :]


def reference_forward(raw, x_nchw, cfg):
    x = jnp.transpose(x_nchw, (0, 2, 3, 1))
    ws, nh = cfg["window_size"], cfg["num_heads"]
    for i, b in enumerate(raw["blocks"]):
        shift = [0 if i % 2 == 0 else w // 2 for w in ws]
        rel_bias = get_relative_position_bias(b["rel_table"], b["rel_index"], ws, nh)
        a = _ref_shifted_window_attention(_ref_layernorm(x, b["ln1_g"], b["ln1_b"]),
                                          b["qkv_w"], b["qkv_b"], b["proj_w"], b["proj_b"],
                                          rel_bias, ws, nh, shift)
        x = x + a
        n2 = _ref_layernorm(x, b["ln2_g"], b["ln2_b"])
        h = jax.nn.gelu(n2 @ b["mlp_w1"].T + b["mlp_b1"], approximate=False)  # exact erf
        x = x + (h @ b["mlp_w2"].T + b["mlp_b2"])
    if cfg["down_sample"]:
        B, H, W, C = x.shape
        xp = jnp.pad(x, ((0, 0), (0, H % 2), (0, W % 2), (0, 0)))
        xm = jnp.concatenate([xp[:, 0::2, 0::2], xp[:, 1::2, 0::2],
                              xp[:, 0::2, 1::2], xp[:, 1::2, 1::2]], -1)
        xm = _ref_layernorm(xm, raw["pm"]["norm_g"], raw["pm"]["norm_b"])
        x = xm @ raw["pm"]["red_w"].T
    return jnp.transpose(x, (0, 3, 1, 2))


# ==================================== main ====================================

if __name__ == "__main__":
    # YoloSwinBlock config: embed_dim=32, i_stage=0 -> dim=32, depths=2, num_heads=[2],
    # window_size=[4,4], mlp_ratio=4.0, dropout=0, attention_dropout=0,
    # stochastic_depth_prob=0.0, down_sample=True.
    cfg = dict(dim=32, num_heads=2, window_size=[4, 4], depths=2,
               mlp_ratio=4.0, down_sample=True)

    key = jax.random.PRNGKey(0)
    kx, kp = jax.random.split(key)
    x = jax.random.normal(kx, (2, cfg["dim"], 8, 8), jnp.float32)          # NCHW
    raw = init_params(kp, cfg["dim"], cfg["num_heads"], cfg["window_size"],
                      cfg["depths"], cfg["mlp_ratio"], cfg["down_sample"])
    params = prepare_params(raw, cfg["num_heads"], cfg["window_size"])

    fwd = jax.jit(lambda p, inp: yolo_swin_block_forward(p, inp, cfg))
    out = jax.block_until_ready(fwd(params, x))

    assert out.shape == (2, 2 * cfg["dim"], 4, 4), out.shape
    assert bool(jnp.all(jnp.isfinite(out)))

    # Self-check against a pure-JAX f32 reference (exact-erf GELU, exact softmax);
    # tolerance covers only the bf16 MXU operand casts.
    ref = reference_forward(raw, x, cfg)
    max_err = float(jnp.max(jnp.abs(out - ref)))
    mean_err = float(jnp.mean(jnp.abs(out - ref)))
    assert max_err < 1.5e-1 and mean_err < 2.5e-2, (max_err, mean_err)

    print("KERNEL_OK")
</pallas_src>

<mosaic_0001>
module attributes {stable_mosaic.version = 11 : i64} {
  func.func @_swin_block_kernel(%arg0: i32, %arg1: memref<128x32xf32, #tpu.memory_space<vmem>>, %arg2: memref<8x2x16x16xf32, #tpu.memory_space<vmem>>, %arg3: memref<1x32xf32, #tpu.memory_space<vmem>>, %arg4: memref<1x32xf32, #tpu.memory_space<vmem>>, %arg5: memref<32x96xbf16, #tpu.memory_space<vmem>>, %arg6: memref<1x96xf32, #tpu.memory_space<vmem>>, %arg7: memref<32x32xbf16, #tpu.memory_space<vmem>>, %arg8: memref<1x32xf32, #tpu.memory_space<vmem>>, %arg9: memref<1x32xf32, #tpu.memory_space<vmem>>, %arg10: memref<1x32xf32, #tpu.memory_space<vmem>>, %arg11: memref<32x128xbf16, #tpu.memory_space<vmem>>, %arg12: memref<1x128xf32, #tpu.memory_space<vmem>>, %arg13: memref<128x32xbf16, #tpu.memory_space<vmem>>, %arg14: memref<1x32xf32, #tpu.memory_space<vmem>>, %arg15: memref<128x32xf32, #tpu.memory_space<vmem>>) attributes {dimension_semantics = [#tpu.dimension_semantics<parallel>], iteration_bounds = array<i64: 1>, scalar_prefetch = 0 : i64, scratch_operands = 0 : i64, tpu.core_type = #tpu.core_type<tc>, window_params = [{transform_indices = @transform_0, window_bounds = array<i64: 128, 32>}, {transform_indices = @transform_1, window_bounds = array<i64: 8, 2, 16, 16>}, {pipeline_mode = #tpu.pipeline_mode<synchronous>, transform_indices = @transform_2, window_bounds = array<i64: 1, 32>}, {pipeline_mode = #tpu.pipeline_mode<synchronous>, transform_indices = @transform_3, window_bounds = array<i64: 1, 32>}, {pipeline_mode = #tpu.pipeline_mode<synchronous>, transform_indices = @transform_4, window_bounds = array<i64: 32, 96>}, {pipeline_mode = #tpu.pipeline_mode<synchronous>, transform_indices = @transform_5, window_bounds = array<i64: 1, 96>}, {pipeline_mode = #tpu.pipeline_mode<synchronous>, transform_indices = @transform_6, window_bounds = array<i64: 32, 32>}, {pipeline_mode = #tpu.pipeline_mode<synchronous>, transform_indices = @transform_7, window_bounds = array<i64: 1, 32>}, {pipeline_mode = #tpu.pipeline_mode<synchronous>, transform_indices = @transform_8, window_bounds = array<i64: 1, 32>}, {pipeline_mode = #tpu.pipeline_mode<synchronous>, transform_indices = @transform_9, window_bounds = array<i64: 1, 32>}, {pipeline_mode = #tpu.pipeline_mode<synchronous>, transform_indices = @transform_10, window_bounds = array<i64: 32, 128>}, {pipeline_mode = #tpu.pipeline_mode<synchronous>, transform_indices = @transform_11, window_bounds = array<i64: 1, 128>}, {pipeline_mode = #tpu.pipeline_mode<synchronous>, transform_indices = @transform_12, window_bounds = array<i64: 128, 32>}, {pipeline_mode = #tpu.pipeline_mode<synchronous>, transform_indices = @transform_13, window_bounds = array<i64: 1, 32>}, {transform_indices = @transform_14, window_bounds = array<i64: 128, 32>}]} {
    %c0 = arith.constant 0 : index
    %c0_0 = arith.constant 0 : index
    %0 = vector.load %arg1[%c0, %c0_0] : memref<128x32xf32, #tpu.memory_space<vmem>>, vector<128x32xf32>
    %cst = arith.constant dense<0.000000e+00> : vector<128xf32>
    %1 = vector.multi_reduction <add>, %0, %cst [1] : vector<128x32xf32> to vector<128xf32>
    %2 = vector.shape_cast %1 : vector<128xf32> to vector<128x1xf32>
    %cst_1 = arith.constant 3.200000e+01 : f32
    %3 = vector.broadcast %cst_1 : f32 to vector<128x1xf32>
    %4 = arith.divf %2, %3 : vector<128x1xf32>
    %5 = vector.broadcast %4 : vector<128x1xf32> to vector<128x32xf32>
    %6 = arith.subf %0, %5 : vector<128x32xf32>
    %7 = arith.mulf %6, %6 : vector<128x32xf32>
    %cst_2 = arith.constant dense<0.000000e+00> : vector<128xf32>
    %8 = vector.multi_reduction <add>, %7, %cst_2 [1] : vector<128x32xf32> to vector<128xf32>
    %9 = vector.shape_cast %8 : vector<128xf32> to vector<128x1xf32>
    %cst_3 = arith.constant 3.200000e+01 : f32
    %10 = vector.broadcast %cst_3 : f32 to vector<128x1xf32>
    %11 = arith.divf %9, %10 : vector<128x1xf32>
    %12 = vector.broadcast %4 : vector<128x1xf32> to vector<128x32xf32>
    %13 = arith.subf %0, %12 : vector<128x32xf32>
    %cst_4 = arith.constant 9.99999974E-6 : f32
    %14 = vector.broadcast %cst_4 : f32 to vector<128x1xf32>
    %15 = arith.addf %11, %14 : vector<128x1xf32>
    %16 = math.rsqrt %15 : vector<128x1xf32>
    %17 = vector.broadcast %16 : vector<128x1xf32> to vector<128x32xf32>
    %18 = arith.mulf %13, %17 : vector<128x32xf32>
    %c0_5 = arith.constant 0 : index
    %c0_6 = arith.constant 0 : index
    %19 = vector.load %arg3[%c0_5, %c0_6] : memref<1x32xf32, #tpu.memory_space<vmem>>, vector<1x32xf32>
    %20 = vector.broadcast %19 : vector<1x32xf32> to vector<128x32xf32>
    %21 = arith.mulf %18, %20 : vector<128x32xf32>
    %c0_7 = arith.constant 0 : index
    %c0_8 = arith.constant 0 : index
    %22 = vector.load %arg4[%c0_7, %c0_8] : memref<1x32xf32, #tpu.memory_space<vmem>>, vector<1x32xf32>
    %23 = vector.broadcast %22 : vector<1x32xf32> to vector<128x32xf32>
    %24 = arith.addf %21, %23 : vector<128x32xf32>
    %25 = arith.truncf %24 : vector<128x32xf32> to vector<128x32xbf16>
    %c0_9 = arith.constant 0 : index
    %c0_10 = arith.constant 0 : index
    %26 = vector.load %arg5[%c0_9, %c0_10] : memref<32x96xbf16, #tpu.memory_space<vmem>>, vector<32x96xbf16>
    %cst_11 = arith.constant dense<0.000000e+00> : vector<128x96xf32>
    %27 = tpu.matmul %25, %26, %cst_11 {dimension_numbers = #tpu.dot_dimension_numbers<[1], [0], [0], [1], [0, 0, 1, 1], [], []>} : vector<128x32xbf16>, vector<32x96xbf16>, vector<128x96xf32> -> vector<128x96xf32>
    %c0_12 = arith.constant 0 : index
    %c0_13 = arith.constant 0 : index
    %28 = vector.load %arg6[%c0_12, %c0_13] : memref<1x96xf32, #tpu.memory_space<vmem>>, vector<1x96xf32>
    %29 = vector.broadcast %28 : vector<1x96xf32> to vector<128x96xf32>
    %30 = arith.addf %27, %29 : vector<128x96xf32>
    %31 = arith.truncf %30 : vector<128x96xf32> to vector<128x96xbf16>
    %c0_14 = arith.constant 0 : index
    %c0_15 = arith.constant 0 : index
    %c0_16 = arith.constant 0 : index
    %c0_17 = arith.constant 0 : index
    %32 = vector.load %arg2[%c0_14, %c0_15, %c0_16, %c0_17] : memref<8x2x16x16xf32, #tpu.memory_space<vmem>>, vector<8x2x16x16xf32>
    %33 = vector.extract_strided_slice %31 {offsets = [0, 0], sizes = [128, 16], strides = [1, 1]} : vector<128x96xbf16> to vector<128x16xbf16>
    %34 = vector.shape_cast %33 : vector<128x16xbf16> to vector<8x16x16xbf16>
    %35 = vector.extract_strided_slice %31 {offsets = [0, 32], sizes = [128, 16], strides = [1, 1]} : vector<128x96xbf16> to vector<128x16xbf16>
    %36 = vector.shape_cast %35 : vector<128x16xbf16> to vector<8x16x16xbf16>
    %37 = vector.extract_strided_slice %31 {offsets = [0, 64], sizes = [128, 16], strides = [1, 1]} : vector<128x96xbf16> to vector<128x16xbf16>
    %38 = vector.shape_cast %37 : vector<128x16xbf16> to vector<8x16x16xbf16>
    "tpu.trace_start"() <{level = 10 : i32, message = "wqd,wkd->wqk"}> : () -> ()
    %cst_18 = arith.constant dense<0.000000e+00> : vector<8x16x16xf32>
    %39 = tpu.matmul %34, %36, %cst_18 {dimension_numbers = #tpu.dot_dimension_numbers<[2], [2], [1], [1], [0, 0, 0, 1, 1, 1], [0], [0]>} : vector<8x16x16xbf16>, vector<8x16x16xbf16>, vector<8x16x16xf32> -> vector<8x16x16xf32>
    "tpu.trace_stop"() : () -> ()
    %40 = vector.extract_strided_slice %32 {offsets = [0, 0, 0, 0], sizes = [8, 1, 16, 16], strides = [1, 1, 1, 1]} : vector<8x2x16x16xf32> to vector<8x1x16x16xf32>
    %41 = vector.shape_cast %40 : vector<8x1x16x16xf32> to vector<8x16x16xf32>
    %42 = arith.addf %39, %41 : vector<8x16x16xf32>
    %cst_19 = arith.constant dense<0xFF800000> : vector<8x16xf32>
    %43 = vector.multi_reduction <maximumf>, %42, %cst_19 [2] : vector<8x16x16xf32> to vector<8x16xf32>
    %44 = vector.shape_cast %43 : vector<8x16xf32> to vector<8x16x1xf32>
    %45 = vector.broadcast %44 : vector<8x16x1xf32> to vector<8x16x16xf32>
    %46 = arith.subf %42, %45 : vector<8x16x16xf32>
    %47 = math.exp %46 : vector<8x16x16xf32>
    %cst_20 = arith.constant dense<0.000000e+00> : vector<8x16xf32>
    %48 = vector.multi_reduction <add>, %47, %cst_20 [2] : vector<8x16x16xf32> to vector<8x16xf32>
    %49 = vector.shape_cast %48 : vector<8x16xf32> to vector<8x16x1xf32>
    %50 = vector.broadcast %49 : vector<8x16x1xf32> to vector<8x16x16xf32>
    %51 = arith.divf %47, %50 : vector<8x16x16xf32>
    %52 = arith.truncf %51 : vector<8x16x16xf32> to vector<8x16x16xbf16>
    "tpu.trace_start"() <{level = 10 : i32, message = "wqk,wkd->wqd"}> : () -> ()
    %cst_21 = arith.constant dense<0.000000e+00> : vector<8x16x16xf32>
    %53 = tpu.matmul %52, %38, %cst_21 {dimension_numbers = #tpu.dot_dimension_numbers<[2], [1], [1], [2], [0, 0, 0, 1, 1, 2], [0], [0]>} : vector<8x16x16xbf16>, vector<8x16x16xbf16>, vector<8x16x16xf32> -> vector<8x16x16xf32>
    "tpu.trace_stop"() : () -> ()
    %54 = vector.shape_cast %53 : vector<8x16x16xf32> to vector<128x16xf32>
    %55 = vector.extract_strided_slice %31 {offsets = [0, 16], sizes = [128, 16], strides = [1, 1]} : vector<128x96xbf16> to vector<128x16xbf16>
    %56 = vector.shape_cast %55 : vector<128x16xbf16> to vector<8x16x16xbf16>
    %57 = vector.extract_strided_slice %31 {offsets = [0, 48], sizes = [128, 16], strides = [1, 1]} : vector<128x96xbf16> to vector<128x16xbf16>
    %58 = vector.shape_cast %57 : vector<128x16xbf16> to vector<8x16x16xbf16>
    %59 = vector.extract_strided_slice %31 {offsets = [0, 80], sizes = [128, 16], strides = [1, 1]} : vector<128x96xbf16> to vector<128x16xbf16>
    %60 = vector.shape_cast %59 : vector<128x16xbf16> to vector<8x16x16xbf16>
    "tpu.trace_start"() <{level = 10 : i32, message = "wqd,wkd->wqk"}> : () -> ()
    %cst_22 = arith.constant dense<0.000000e+00> : vector<8x16x16xf32>
    %61 = tpu.matmul %56, %58, %cst_22 {dimension_numbers = #tpu.dot_dimension_numbers<[2], [2], [1], [1], [0, 0, 0, 1, 1, 1], [0], [0]>} : vector<8x16x16xbf16>, vector<8x16x16xbf16>, vector<8x16x16xf32> -> vector<8x16x16xf32>
    "tpu.trace_stop"() : () -> ()
    %62 = vector.extract_strided_slice %32 {offsets = [0, 1, 0, 0], sizes = [8, 1, 16, 16], strides = [1, 1, 1, 1]} : vector<8x2x16x16xf32> to vector<8x1x16x16xf32>
    %63 = vector.shape_cast %62 : vector<8x1x16x16xf32> to vector<8x16x16xf32>
    %64 = arith.addf %61, %63 : vector<8x16x16xf32>
    %cst_23 = arith.constant dense<0xFF800000> : vector<8x16xf32>
    %65 = vector.multi_reduction <maximumf>, %64, %cst_23 [2] : vector<8x16x16xf32> to vector<8x16xf32>
    %66 = vector.shape_cast %65 : vector<8x16xf32> to vector<8x16x1xf32>
    %67 = vector.broadcast %66 : vector<8x16x1xf32> to vector<8x16x16xf32>
    %68 = arith.subf %64, %67 : vector<8x16x16xf32>
    %69 = math.exp %68 : vector<8x16x16xf32>
    %cst_24 = arith.constant dense<0.000000e+00> : vector<8x16xf32>
    %70 = vector.multi_reduction <add>, %69, %cst_24 [2] : vector<8x16x16xf32> to vector<8x16xf32>
    %71 = vector.shape_cast %70 : vector<8x16xf32> to vector<8x16x1xf32>
    %72 = vector.broadcast %71 : vector<8x16x1xf32> to vector<8x16x16xf32>
    %73 = arith.divf %69, %72 : vector<8x16x16xf32>
    %74 = arith.truncf %73 : vector<8x16x16xf32> to vector<8x16x16xbf16>
    "tpu.trace_start"() <{level = 10 : i32, message = "wqk,wkd->wqd"}> : () -> ()
    %cst_25 = arith.constant dense<0.000000e+00> : vector<8x16x16xf32>
    %75 = tpu.matmul %74, %60, %cst_25 {dimension_numbers = #tpu.dot_dimension_numbers<[2], [1], [1], [2], [0, 0, 0, 1, 1, 2], [0], [0]>} : vector<8x16x16xbf16>, vector<8x16x16xbf16>, vector<8x16x16xf32> -> vector<8x16x16xf32>
    "tpu.trace_stop"() : () -> ()
    %76 = vector.shape_cast %75 : vector<8x16x16xf32> to vector<128x16xf32>
    %77 = tpu.concatenate %54, %76 in 1 : vector<128x16xf32>, vector<128x16xf32> -> vector<128x32xf32>
    %78 = arith.truncf %77 : vector<128x32xf32> to vector<128x32xbf16>
    %c0_26 = arith.constant 0 : index
    %c0_27 = arith.constant 0 : index
    %79 = vector.load %arg7[%c0_26, %c0_27] : memref<32x32xbf16, #tpu.memory_space<vmem>>, vector<32x32xbf16>
    %cst_28 = arith.constant dense<0.000000e+00> : vector<128x32xf32>
    %80 = tpu.matmul %78, %79, %cst_28 {dimension_numbers = #tpu.dot_dimension_numbers<[1], [0], [0], [1], [0, 0, 1, 1], [], []>} : vector<128x32xbf16>, vector<32x32xbf16>, vector<128x32xf32> -> vector<128x32xf32>
    %c0_29 = arith.constant 0 : index
    %c0_30 = arith.constant 0 : index
    %81 = vector.load %arg8[%c0_29, %c0_30] : memref<1x32xf32, #tpu.memory_space<vmem>>, vector<1x32xf32>
    %82 = vector.broadcast %81 : vector<1x32xf32> to vector<128x32xf32>
    %83 = arith.addf %80, %82 : vector<128x32xf32>
    %84 = arith.addf %0, %83 : vector<128x32xf32>
    %cst_31 = arith.constant dense<0.000000e+00> : vector<128xf32>
    %85 = vector.multi_reduction <add>, %84, %cst_31 [1] : vector<128x32xf32> to vector<128xf32>
    %86 = vector.shape_cast %85 : vector<128xf32> to vector<128x1xf32>
    %cst_32 = arith.constant 3.200000e+01 : f32
    %87 = vector.broadcast %cst_32 : f32 to vector<128x1xf32>
    %88 = arith.divf %86, %87 : vector<128x1xf32>
    %89 = vector.broadcast %88 : vector<128x1xf32> to vector<128x32xf32>
    %90 = arith.subf %84, %89 : vector<128x32xf32>
    %91 = arith.mulf %90, %90 : vector<128x32xf32>
    %cst_33 = arith.constant dense<0.000000e+00> : vector<128xf32>
    %92 = vector.multi_reduction <add>, %91, %cst_33 [1] : vector<128x32xf32> to vector<128xf32>
    %93 = vector.shape_cast %92 : vector<128xf32> to vector<128x1xf32>
    %cst_34 = arith.constant 3.200000e+01 : f32
    %94 = vector.broadcast %cst_34 : f32 to vector<128x1xf32>
    %95 = arith.divf %93, %94 : vector<128x1xf32>
    %96 = vector.broadcast %88 : vector<128x1xf32> to vector<128x32xf32>
    %97 = arith.subf %84, %96 : vector<128x32xf32>
    %cst_35 = arith.constant 9.99999974E-6 : f32
    %98 = vector.broadcast %cst_35 : f32 to vector<128x1xf32>
    %99 = arith.addf %95, %98 : vector<128x1xf32>
    %100 = math.rsqrt %99 : vector<128x1xf32>
    %101 = vector.broadcast %100 : vector<128x1xf32> to vector<128x32xf32>
    %102 = arith.mulf %97, %101 : vector<128x32xf32>
    %c0_36 = arith.constant 0 : index
    %c0_37 = arith.constant 0 : index
    %103 = vector.load %arg9[%c0_36, %c0_37] : memref<1x32xf32, #tpu.memory_space<vmem>>, vector<1x32xf32>
    %104 = vector.broadcast %103 : vector<1x32xf32> to vector<128x32xf32>
    %105 = arith.mulf %102, %104 : vector<128x32xf32>
    %c0_38 = arith.constant 0 : index
    %c0_39 = arith.constant 0 : index
    %106 = vector.load %arg10[%c0_38, %c0_39] : memref<1x32xf32, #tpu.memory_space<vmem>>, vector<1x32xf32>
    %107 = vector.broadcast %106 : vector<1x32xf32> to vector<128x32xf32>
    %108 = arith.addf %105, %107 : vector<128x32xf32>
    %109 = arith.truncf %108 : vector<128x32xf32> to vector<128x32xbf16>
    %c0_40 = arith.constant 0 : index
    %c0_41 = arith.constant 0 : index
    %110 = vector.load %arg11[%c0_40, %c0_41] : memref<32x128xbf16, #tpu.memory_space<vmem>>, vector<32x128xbf16>
    %cst_42 = arith.constant dense<0.000000e+00> : vector<128x128xf32>
    %111 = tpu.matmul %109, %110, %cst_42 {dimension_numbers = #tpu.dot_dimension_numbers<[1], [0], [0], [1], [0, 0, 1, 1], [], []>} : vector<128x32xbf16>, vector<32x128xbf16>, vector<128x128xf32> -> vector<128x128xf32>
    %c0_43 = arith.constant 0 : index
    %c0_44 = arith.constant 0 : index
    %112 = vector.load %arg12[%c0_43, %c0_44] : memref<1x128xf32, #tpu.memory_space<vmem>>, vector<1x128xf32>
    %113 = vector.broadcast %112 : vector<1x128xf32> to vector<128x128xf32>
    %114 = arith.addf %111, %113 : vector<128x128xf32>
    %115 = math.absf %114 : vector<128x128xf32>
    %cst_45 = arith.constant 0.707106769 : f32
    %116 = vector.broadcast %cst_45 : f32 to vector<128x128xf32>
    %117 = arith.mulf %115, %116 : vector<128x128xf32>
    %cst_46 = arith.constant 0.327591091 : f32
    %118 = vector.broadcast %cst_46 : f32 to vector<128x128xf32>
    %119 = arith.mulf %118, %117 : vector<128x128xf32>
    %cst_47 = arith.constant 1.000000e+00 : f32
    %120 = vector.broadcast %cst_47 : f32 to vector<128x128xf32>
    %121 = arith.addf %120, %119 : vector<128x128xf32>
    %cst_48 = arith.constant 1.000000e+00 : f32
    %122 = vector.broadcast %cst_48 : f32 to vector<128x128xf32>
    %123 = arith.divf %122, %121 : vector<128x128xf32>
    %cst_49 = arith.constant 1.06140542 : f32
    %124 = vector.broadcast %cst_49 : f32 to vector<128x128xf32>
    %125 = arith.mulf %124, %123 : vector<128x128xf32>
    %cst_50 = arith.constant -1.45315206 : f32
    %126 = vector.broadcast %cst_50 : f32 to vector<128x128xf32>
    %127 = arith.addf %125, %126 : vector<128x128xf32>
    %128 = arith.mulf %127, %123 : vector<128x128xf32>
    %cst_51 = arith.constant 1.42141378 : f32
    %129 = vector.broadcast %cst_51 : f32 to vector<128x128xf32>
    %130 = arith.addf %128, %129 : vector<128x128xf32>
    %131 = arith.mulf %130, %123 : vector<128x128xf32>
    %cst_52 = arith.constant -0.284496725 : f32
    %132 = vector.broadcast %cst_52 : f32 to vector<128x128xf32>
    %133 = arith.addf %131, %132 : vector<128x128xf32>
    %134 = arith.mulf %133, %123 : vector<128x128xf32>
    %cst_53 = arith.constant 0.254829586 : f32
    %135 = vector.broadcast %cst_53 : f32 to vector<128x128xf32>
    %136 = arith.addf %134, %135 : vector<128x128xf32>
    %137 = arith.mulf %136, %123 : vector<128x128xf32>
    %cst_54 = arith.constant 0.000000e+00 : f32
    %138 = vector.broadcast %cst_54 : f32 to vector<128x128xf32>
    %139 = arith.subf %138, %117 : vector<128x128xf32>
    %140 = arith.mulf %139, %117 : vector<128x128xf32>
    %141 = math.exp %140 : vector<128x128xf32>
    %142 = arith.mulf %137, %141 : vector<128x128xf32>
    %cst_55 = arith.constant 1.000000e+00 : f32
    %143 = vector.broadcast %cst_55 : f32 to vector<128x128xf32>
    %144 = arith.subf %143, %142 : vector<128x128xf32>
    %cst_56 = arith.constant 5.000000e-01 : f32
    %145 = vector.broadcast %cst_56 : f32 to vector<128x128xf32>
    %146 = arith.mulf %145, %114 : vector<128x128xf32>
    %cst_57 = arith.constant 0.000000e+00 : f32
    %147 = vector.broadcast %cst_57 : f32 to vector<128x128xf32>
    %148 = arith.cmpf oge, %114, %147 : vector<128x128xf32>
    %cst_58 = arith.constant 0.000000e+00 : f32
    %149 = vector.broadcast %cst_58 : f32 to vector<128x128xf32>
    %150 = arith.subf %149, %144 : vector<128x128xf32>
    %151 = arith.select %148, %144, %150 : vector<128x128xi1>, vector<128x128xf32>
    %cst_59 = arith.constant 1.000000e+00 : f32
    %152 = vector.broadcast %cst_59 : f32 to vector<128x128xf32>
    %153 = arith.addf %152, %151 : vector<128x128xf32>
    %154 = arith.mulf %146, %153 : vector<128x128xf32>
    %155 = arith.truncf %154 : vector<128x128xf32> to vector<128x128xbf16>
    %c0_60 = arith.constant 0 : index
    %c0_61 = arith.constant 0 : index
    %156 = vector.load %arg13[%c0_60, %c0_61] : memref<128x32xbf16, #tpu.memory_space<vmem>>, vector<128x32xbf16>
    %cst_62 = arith.constant dense<0.000000e+00> : vector<128x32xf32>
    %157 = tpu.matmul %155, %156, %cst_62 {dimension_numbers = #tpu.dot_dimension_numbers<[1], [0], [0], [1], [0, 0, 1, 1], [], []>} : vector<128x128xbf16>, vector<128x32xbf16>, vector<128x32xf32> -> vector<128x32xf32>
    %c0_63 = arith.constant 0 : index
    %c0_64 = arith.constant 0 : index
    %158 = vector.load %arg14[%c0_63, %c0_64] : memref<1x32xf32, #tpu.memory_space<vmem>>, vector<1x32xf32>
    %159 = vector.broadcast %158 : vector<1x32xf32> to vector<128x32xf32>
    %160 = arith.addf %157, %159 : vector<128x32xf32>
    %161 = arith.addf %84, %160 : vector<128x32xf32>
    %c0_65 = arith.constant 0 : index
    %c0_66 = arith.constant 0 : index
    %162 = vector.load %arg15[%c0_65, %c0_66] : memref<128x32xf32, #tpu.memory_space<vmem>>, vector<128x32xf32>
    tpu.vector_store %arg15[%c0_65, %c0_66], %161 {strides = array<i32>} : memref<128x32xf32, #tpu.memory_space<vmem>>, vector<128x32xf32>,
    return
  }
  func.func @transform_0(%arg0: i32) -> (i32, i32) {
    %c0_i32 = arith.constant 0 : i32
    %c0_i32_0 = arith.constant 0 : i32
    return %arg0, %c0_i32 : i32, i32
  }
  func.func @transform_1(%arg0: i32) -> (i32, i32, i32, i32) {
    %c0_i32 = arith.constant 0 : i32
    %c0_i32_0 = arith.constant 0 : i32
    %c0_i32_1 = arith.constant 0 : i32
    %c0_i32_2 = arith.constant 0 : i32
    return %arg0, %c0_i32, %c0_i32_0, %c0_i32_1 : i32, i32, i32, i32
  }
  func.func @transform_2(%arg0: i32) -> (i32, i32) {
    %c0_i32 = arith.constant 0 : i32
    %c0_i32_0 = arith.constant 0 : i32
    %c0_i32_1 = arith.constant 0 : i32
    return %c0_i32, %c0_i32_0 : i32, i32
  }
  func.func @transform_3(%arg0: i32) -> (i32, i32) {
    %c0_i32 = arith.constant 0 : i32
    %c0_i32_0 = arith.constant 0 : i32
    %c0_i32_1 = arith.constant 0 : i32
    return %c0_i32, %c0_i32_0 : i32, i32
  }
  func.func @transform_4(%arg0: i32) -> (i32, i32) {
    %c0_i32 = arith.constant 0 : i32
    %c0_i32_0 = arith.constant 0 : i32
    %c0_i32_1 = arith.constant 0 : i32
    return %c0_i32, %c0_i32_0 : i32, i32
  }
  func.func @transform_5(%arg0: i32) -> (i32, i32) {
    %c0_i32 = arith.constant 0 : i32
    %c0_i32_0 = arith.constant 0 : i32
    %c0_i32_1 = arith.constant 0 : i32
    return %c0_i32, %c0_i32_0 : i32, i32
  }
  func.func @transform_6(%arg0: i32) -> (i32, i32) {
    %c0_i32 = arith.constant 0 : i32
    %c0_i32_0 = arith.constant 0 : i32
    %c0_i32_1 = arith.constant 0 : i32
    return %c0_i32, %c0_i32_0 : i32, i32
  }
  func.func @transform_7(%arg0: i32) -> (i32, i32) {
    %c0_i32 = arith.constant 0 : i32
    %c0_i32_0 = arith.constant 0 : i32
    %c0_i32_1 = arith.constant 0 : i32
    return %c0_i32, %c0_i32_0 : i32, i32
  }
  func.func @transform_8(%arg0: i32) -> (i32, i32) {
    %c0_i32 = arith.constant 0 : i32
    %c0_i32_0 = arith.constant 0 : i32
    %c0_i32_1 = arith.constant 0 : i32
    return %c0_i32, %c0_i32_0 : i32, i32
  }
  func.func @transform_9(%arg0: i32) -> (i32, i32) {
    %c0_i32 = arith.constant 0 : i32
    %c0_i32_0 = arith.constant 0 : i32
    %c0_i32_1 = arith.constant 0 : i32
    return %c0_i32, %c0_i32_0 : i32, i32
  }
  func.func @transform_10(%arg0: i32) -> (i32, i32) {
    %c0_i32 = arith.constant 0 : i32
    %c0_i32_0 = arith.constant 0 : i32
    %c0_i32_1 = arith.constant 0 : i32
    return %c0_i32, %c0_i32_0 : i32, i32
  }
  func.func @transform_11(%arg0: i32) -> (i32, i32) {
    %c0_i32 = arith.constant 0 : i32
    %c0_i32_0 = arith.constant 0 : i32
    %c0_i32_1 = arith.constant 0 : i32
    return %c0_i32, %c0_i32_0 : i32, i32
  }
  func.func @transform_12(%arg0: i32) -> (i32, i32) {
    %c0_i32 = arith.constant 0 : i32
    %c0_i32_0 = arith.constant 0 : i32
    %c0_i32_1 = arith.constant 0 : i32
    return %c0_i32, %c0_i32_0 : i32, i32
  }
  func.func @transform_13(%arg0: i32) -> (i32, i32) {
    %c0_i32 = arith.constant 0 : i32
    %c0_i32_0 = arith.constant 0 : i32
    %c0_i32_1 = arith.constant 0 : i32
    return %c0_i32, %c0_i32_0 : i32, i32
  }
  func.func @transform_14(%arg0: i32) -> (i32, i32) {
    %c0_i32 = arith.constant 0 : i32
    %c0_i32_0 = arith.constant 0 : i32
    return %arg0, %c0_i32 : i32, i32
  }
}

module attributes {stable_mosaic.version = 11 : i64} {
  func.func @_patch_merge_kernel(%arg0: i32, %arg1: memref<32x128xf32, #tpu.memory_space<vmem>>, %arg2: memref<1x128xf32, #tpu.memory_space<vmem>>, %arg3: memref<1x128xf32, #tpu.memory_space<vmem>>, %arg4: memref<128x64xbf16, #tpu.memory_space<vmem>>, %arg5: memref<32x64xf32, #tpu.memory_space<vmem>>) attributes {dimension_semantics = [#tpu.dimension_semantics<arbitrary>], iteration_bounds = array<i64: 1>, scalar_prefetch = 0 : i64, scratch_operands = 0 : i64, tpu.core_type = #tpu.core_type<tc>, window_params = [{pipeline_mode = #tpu.pipeline_mode<synchronous>, transform_indices = @transform_0, window_bounds = array<i64: 32, 128>}, {pipeline_mode = #tpu.pipeline_mode<synchronous>, transform_indices = @transform_1, window_bounds = array<i64: 1, 128>}, {pipeline_mode = #tpu.pipeline_mode<synchronous>, transform_indices = @transform_2, window_bounds = array<i64: 1, 128>}, {pipeline_mode = #tpu.pipeline_mode<synchronous>, transform_indices = @transform_3, window_bounds = array<i64: 128, 64>}, {pipeline_mode = #tpu.pipeline_mode<synchronous>, transform_indices = @transform_4, window_bounds = array<i64: 32, 64>}]} {
    %c0 = arith.constant 0 : index
    %c0_0 = arith.constant 0 : index
    %0 = vector.load %arg1[%c0, %c0_0] : memref<32x128xf32, #tpu.memory_space<vmem>>, vector<32x128xf32>
    %cst = arith.constant dense<0.000000e+00> : vector<32xf32>
    %1 = vector.multi_reduction <add>, %0, %cst [1] : vector<32x128xf32> to vector<32xf32>
    %2 = vector.shape_cast %1 : vector<32xf32> to vector<32x1xf32>
    %cst_1 = arith.constant 1.280000e+02 : f32
    %3 = vector.broadcast %cst_1 : f32 to vector<32x1xf32>
    %4 = arith.divf %2, %3 : vector<32x1xf32>
    %5 = vector.broadcast %4 : vector<32x1xf32> to vector<32x128xf32>
    %6 = arith.subf %0, %5 : vector<32x128xf32>
    %7 = arith.mulf %6, %6 : vector<32x128xf32>
    %cst_2 = arith.constant dense<0.000000e+00> : vector<32xf32>
    %8 = vector.multi_reduction <add>, %7, %cst_2 [1] : vector<32x128xf32> to vector<32xf32>
    %9 = vector.shape_cast %8 : vector<32xf32> to vector<32x1xf32>
    %cst_3 = arith.constant 1.280000e+02 : f32
    %10 = vector.broadcast %cst_3 : f32 to vector<32x1xf32>
    %11 = arith.divf %9, %10 : vector<32x1xf32>
    %12 = vector.broadcast %4 : vector<32x1xf32> to vector<32x128xf32>
    %13 = arith.subf %0, %12 : vector<32x128xf32>
    %cst_4 = arith.constant 9.99999974E-6 : f32
    %14 = vector.broadcast %cst_4 : f32 to vector<32x1xf32>
    %15 = arith.addf %11, %14 : vector<32x1xf32>
    %16 = math.rsqrt %15 : vector<32x1xf32>
    %17 = vector.broadcast %16 : vector<32x1xf32> to vector<32x128xf32>
    %18 = arith.mulf %13, %17 : vector<32x128xf32>
    %c0_5 = arith.constant 0 : index
    %c0_6 = arith.constant 0 : index
    %19 = vector.load %arg2[%c0_5, %c0_6] : memref<1x128xf32, #tpu.memory_space<vmem>>, vector<1x128xf32>
    %20 = vector.broadcast %19 : vector<1x128xf32> to vector<32x128xf32>
    %21 = arith.mulf %18, %20 : vector<32x128xf32>
    %c0_7 = arith.constant 0 : index
    %c0_8 = arith.constant 0 : index
    %22 = vector.load %arg3[%c0_7, %c0_8] : memref<1x128xf32, #tpu.memory_space<vmem>>, vector<1x128xf32>
    %23 = vector.broadcast %22 : vector<1x128xf32> to vector<32x128xf32>
    %24 = arith.addf %21, %23 : vector<32x128xf32>
    %25 = arith.truncf %24 : vector<32x128xf32> to vector<32x128xbf16>
    %c0_9 = arith.constant 0 : index
    %c0_10 = arith.constant 0 : index
    %26 = vector.load %arg4[%c0_9, %c0_10] : memref<128x64xbf16, #tpu.memory_space<vmem>>, vector<128x64xbf16>
    %cst_11 = arith.constant dense<0.000000e+00> : vector<32x64xf32>
    %27 = tpu.matmul %25, %26, %cst_11 {dimension_numbers = #tpu.dot_dimension_numbers<[1], [0], [0], [1], [0, 0, 1, 1], [], []>} : vector<32x128xbf16>, vector<128x64xbf16>, vector<32x64xf32> -> vector<32x64xf32>
    %c0_12 = arith.constant 0 : index
    %c0_13 = arith.constant 0 : index
    %28 = vector.load %arg5[%c0_12, %c0_13] : memref<32x64xf32, #tpu.memory_space<vmem>>, vector<32x64xf32>
    tpu.vector_store %arg5[%c0_12, %c0_13], %27 {strides = array<i32>} : memref<32x64xf32, #tpu.memory_space<vmem>>, vector<32x64xf32>,
    return
  }
  func.func @transform_0(%arg0: i32) -> (i32, i32) {
    %c0_i32 = arith.constant 0 : i32
    %c0_i32_0 = arith.constant 0 : i32
    %c0_i32_1 = arith.constant 0 : i32
    return %c0_i32, %c0_i32_0 : i32, i32
  }
  func.func @transform_1(%arg0: i32) -> (i32, i32) {
    %c0_i32 = arith.constant 0 : i32
    %c0_i32_0 = arith.constant 0 : i32
    %c0_i32_1 = arith.constant 0 : i32
    return %c0_i32, %c0_i32_0 : i32, i32
  }
  func.func @transform_2(%arg0: i32) -> (i32, i32) {
    %c0_i32 = arith.constant 0 : i32
    %c0_i32_0 = arith.constant 0 : i32
    %c0_i32_1 = arith.constant 0 : i32
    return %c0_i32, %c0_i32_0 : i32, i32
  }
  func.func @transform_3(%arg0: i32) -> (i32, i32) {
    %c0_i32 = arith.constant 0 : i32
    %c0_i32_0 = arith.constant 0 : i32
    %c0_i32_1 = arith.constant 0 : i32
    return %c0_i32, %c0_i32_0 : i32, i32
  }
  func.func @transform_4(%arg0: i32) -> (i32, i32) {
    %c0_i32 = arith.constant 0 : i32
    %c0_i32_0 = arith.constant 0 : i32
    %c0_i32_1 = arith.constant 0 : i32
    return %c0_i32, %c0_i32_0 : i32, i32
  }
}

</mosaic_0001>

<llo_original>
// kernel: _lambda_.5
$region0: #{_lambda_.5}
  #allocation0 [shape = 'u32[]', space=smem, size = 0x4, offset = 0x4, fixed_abs, tag = 'smem constant byte address 0x4 - core index']
  #allocation1 [shape = 'u32[144,128]{1,0:T(1,128)}', space=vmem, size = 0x12000, scoped, tag = 'internal scratch']
  %s0 = inlined_call_operand.vmem [shape: f32[32,128], index: 0, kind: input, shape index: {}]
  %s1 = inlined_call_operand.vmem [shape: f32[1,128], index: 1, kind: input, shape index: {}]
  %s2 = inlined_call_operand.vmem [shape: f32[1,128], index: 2, kind: input, shape index: {}]
  %s3 = inlined_call_operand.vmem [shape: bf16[128,64], index: 3, kind: input, shape index: {}]
  %s4 = inlined_call_operand.hbm [shape: f32[32,64], index: 4, kind: output, shape index: {}]
  %s5 = sld [smem:[#allocation0]]
  $region26: #{_lambda_.5} parent=0
    _
  %s7 = ssub.s32 1, %s5
  %s8 = scalar_select 0, %s7, %s5
  $region1: #{_lambda_.5} parent=0
    #allocation2 [shape = 'u8[16384]{0}', space=vmem, size = 0x4000, scoped, tag = 'output window, operand 0, single buffered']
    #allocation3 [shape = 's32[1]{0}', space=sflag, size = 0x4, scoped, tag = 'scoped memory for _lambda_.5']
    %9 = vsyncpa [#allocation3], 0
    // Predicated region
    $region2: #{_lambda_.5} parent=1 // pred_check
      _
    $region3: #{_lambda_.5} parent=1 // pred_check_branch
      %11 = sbr.rel (0) target = $region5
    $region4: #{_lambda_.5} parent=1 // pred_region
      _
    $region5: #{_lambda_.5} parent=1 // pred_fallthru
      _
    // Predicated region
    $region6: #{_lambda_.5} parent=1 // pred_check
      _
    $region7: #{_lambda_.5} parent=1 // pred_check_branch
      %13 = sbr.rel (0) target = $region9
    $region8: #{_lambda_.5} parent=1 // pred_region
      _
    $region9: #{_lambda_.5} parent=1 // pred_fallthru
      _
    // Predicated region
    $region10: #{_lambda_.5} parent=1 // pred_check
      _
    $region11: #{_lambda_.5} parent=1 // pred_check_branch
      %15 = sbr.rel (0) target = $region13
    $region12: #{_lambda_.5} parent=1 // pred_region
      _
    $region13: #{_lambda_.5} parent=1 // pred_fallthru
      _
    // Predicated region
    $region14: #{_lambda_.5} parent=1 // pred_check
      _
    $region15: #{_lambda_.5} parent=1 // pred_check_branch
      %17 = sbr.rel (0) target = $region17
    $region16: #{_lambda_.5} parent=1 // pred_region
      _
    $region17: #{_lambda_.5} parent=1 // pred_fallthru
      _
    %v19 = vld [vmem:[%s0] sm:$0xff]
    %v20 = vld [vmem:[%s0 + $0x8] sm:$0xff]
    %v21 = vld [vmem:[%s0 + $0x10] sm:$0xff]
    %v22 = vld [vmem:[%s0 + $0x18] sm:$0xff]
    %23 = vadd.xlane.f32.xlu0 %v19
    %v24 = vpop.xlane.xlu0 %23
    %25 = vadd.xlane.f32.xlu0 %v20
    %v26 = vpop.xlane.xlu0 %25
    %27 = vadd.xlane.f32.xlu0 %v21
    %v28 = vpop.xlane.xlu0 %27
    %29 = vadd.xlane.f32.xlu0 %v22
    %v30 = vpop.xlane.xlu0 %29
    %v31 = vrcp.pop 128.0
    %v32 = vmul.f32 %v24, %v31
    %v33 = vmul.f32 %v26, %v31
    %v34 = vmul.f32 %v28, %v31
    %v35 = vmul.f32 %v30, %v31
    %v36 = vsub.f32 %v19, %v32
    %v37 = vsub.f32 %v20, %v33
    %v38 = vsub.f32 %v21, %v34
    %v39 = vsub.f32 %v22, %v35
    %v40 = vmul.f32 %v36, %v36
    %v41 = vmul.f32 %v37, %v37
    %v42 = vmul.f32 %v38, %v38
    %v43 = vmul.f32 %v39, %v39
    %44 = vadd.xlane.f32.xlu0 %v40
    %v45 = vpop.xlane.xlu0 %44
    %46 = vadd.xlane.f32.xlu0 %v41
    %v47 = vpop.xlane.xlu0 %46
    %48 = vadd.xlane.f32.xlu0 %v42
    %v49 = vpop.xlane.xlu0 %48
    %50 = vadd.xlane.f32.xlu0 %v43
    %v51 = vpop.xlane.xlu0 %50
    %v52 = vmul.f32 %v45, %v31
    %v53 = vmul.f32 %v47, %v31
    %v54 = vmul.f32 %v49, %v31
    %v55 = vmul.f32 %v51, %v31
    %v56 = vadd.f32 %v52, 1e-05
    %v57 = vadd.f32 %v53, 1e-05
    %v58 = vadd.f32 %v54, 1e-05
    %v59 = vadd.f32 %v55, 1e-05
    %v60 = vrsqrt.pop %v56
    %v61 = vrsqrt.pop %v57
    %v62 = vrsqrt.pop %v58
    %v63 = vrsqrt.pop %v59
    %v64 = vmul.f32 %v36, %v60
    %v65 = vmul.f32 %v37, %v61
    %v66 = vmul.f32 %v38, %v62
    %v67 = vmul.f32 %v39, %v63
    %v68 = vld [vmem:[%s1] sm:$0x1]
    %v70 = vlaneseq
    %v71 = vshrl.u32 %v70, 7
    %v72 = vsub.s32 0, %v71
    %v73 = vrot.slane %v68, %v72
    %v75 = vmul.f32 %v64, %v73
    %v76 = vmul.f32 %v65, %v73
    %v77 = vmul.f32 %v66, %v73
    %v78 = vmul.f32 %v67, %v73
    %v79 = vld [vmem:[%s2] sm:$0x1]
    %v81 = vlaneseq
    %v82 = vshrl.u32 %v81, 7
    %v83 = vsub.s32 0, %v82
    %v84 = vrot.slane %v79, %v83
    %v86 = vadd.f32 %v75, %v84
    %v87 = vadd.f32 %v76, %v84
    %v88 = vadd.f32 %v77, %v84
    %v89 = vadd.f32 %v78, %v84
    %v90 = vpack.c.bf16 %v87, %v86
    %v91 = vpack.c.bf16 %v89, %v88
    %v92 = vld [vmem:[%s3] sm:$0xf]
    %v93 = vld [vmem:[%s3 + $0x4] sm:$0xf]
    %v94 = vld [vmem:[%s3 + $0x8] sm:$0xf]
    %v95 = vld [vmem:[%s3 + $0xc] sm:$0xf]
    %v96 = vld [vmem:[%s3 + $0x10] sm:$0xf]
    %v97 = vld [vmem:[%s3 + $0x14] sm:$0xf]
    %v98 = vld [vmem:[%s3 + $0x18] sm:$0xf]
    %v99 = vld [vmem:[%s3 + $0x1c] sm:$0xf]
    %v100 = vld [vmem:[%s3 + $0x20] sm:$0xf]
    %v101 = vld [vmem:[%s3 + $0x24] sm:$0xf]
    %v102 = vld [vmem:[%s3 + $0x28] sm:$0xf]
    %v103 = vld [vmem:[%s3 + $0x2c] sm:$0xf]
    %v104 = vld [vmem:[%s3 + $0x30] sm:$0xf]
    %v105 = vld [vmem:[%s3 + $0x34] sm:$0xf]
    %v106 = vld [vmem:[%s3 + $0x38] sm:$0xf]
    %v107 = vld [vmem:[%s3 + $0x3c] sm:$0xf]
    %v124 = vunpack.c.l.b16 %v92
    %v125 = vunpack.c.l.b16 %v93
    %v126 = vunpack.c.l.b16 %v94
    %v127 = vunpack.c.l.b16 %v95
    %v128 = vunpack.c.l.b16 %v96
    %v129 = vunpack.c.l.b16 %v97
    %v130 = vunpack.c.l.b16 %v98
    %v131 = vunpack.c.l.b16 %v99
    %v132 = vunpack.c.l.b16 %v100
    %v133 = vunpack.c.l.b16 %v101
    %v134 = vunpack.c.l.b16 %v102
    %v135 = vunpack.c.l.b16 %v103
    %v136 = vunpack.c.l.b16 %v104
    %v137 = vunpack.c.l.b16 %v105
    %v138 = vunpack.c.l.b16 %v106
    %v139 = vunpack.c.l.b16 %v107
    %v140 = vpack.c.b16 %v125, %v124
    %v141 = vpack.c.b16 %v127, %v126
    %v142 = vpack.c.b16 %v129, %v128
    %v143 = vpack.c.b16 %v131, %v130
    %v144 = vpack.c.b16 %v133, %v132
    %v145 = vpack.c.b16 %v135, %v134
    %v146 = vpack.c.b16 %v137, %v136
    %v147 = vpack.c.b16 %v139, %v138
    %156 = vmatprep.subr.bf16.mxu0 0
    %157 = vmatpush1.bf16.msra.mxu0 %v140
    %158 = vmatprep.subr.bf16.mxu0 0
    %159 = vmatpush1.bf16.msra.mxu0 %v141
    %160 = vmatprep.subr.bf16.mxu0 0
    %161 = vmatpush1.bf16.msra.mxu0 %v142
    %162 = vmatprep.subr.bf16.mxu0 0
    %163 = vmatpush1.bf16.msra.mxu0 %v143
    %164 = vmatprep.subr.bf16.mxu0 0
    %165 = vmatpush1.bf16.msra.mxu0 %v144
    %166 = vmatprep.subr.bf16.mxu0 0
    %167 = vmatpush1.bf16.msra.mxu0 %v145
    %168 = vmatprep.subr.bf16.mxu0 0
    %169 = vmatpush1.bf16.msra.mxu0 %v146
    %170 = vmatprep.subr.bf16.mxu0 0
    %171 = vmatpush1.bf16.msra.mxu0 %v147
    %172 = vmatprep.subr.bf16.mxu0 0
    %173 = vmatpush1.bf16.msra.mxu0 0
    %174 = vmatprep.subr.bf16.mxu0 0
    %175 = vmatpush1.bf16.msra.mxu0 0
    %176 = vmatprep.subr.bf16.mxu0 0
    %177 = vmatpush1.bf16.msra.mxu0 0
    %178 = vmatprep.subr.bf16.mxu0 0
    %179 = vmatpush1.bf16.msra.mxu0 0
    %180 = vmatprep.subr.bf16.mxu0 0
    %181 = vmatpush1.bf16.msra.mxu0 0
    %182 = vmatprep.subr.bf16.mxu0 0
    %183 = vmatpush1.bf16.msra.mxu0 0
    %184 = vmatprep.subr.bf16.mxu0 0
    %185 = vmatpush1.bf16.msra.mxu0 0
    %186 = vmatprep.subr.bf16.mxu0 0
    %187 = vmatpush1.bf16.msra.mxu0 0
    %188 = vmatprep.mubr.bf16.mxu0 0
    %189 = vmatmul.mubr.bf16.gmra.mrb[0].mxu0 %v90
    %v190 = vpop.f32.mrb[0].mxu0
    %v191 = vadd.f32 0.0, %v190
    %v192 = vpop.f32.mrb[0].mxu0
    %v193 = vpop.f32.mrb[0].mxu0
    %v194 = vadd.f32 0.0, %v193
    %v195 = vpop.f32.mrb[0].mxu0
    %196 = vmatprep.mubr.bf16.mxu0 0
    %197 = vmatmul.mubr.bf16.gmra.mrb[0].mxu0 %v91
    %v198 = vpop.f32.mrb[0].mxu0
    %v199 = vadd.f32 0.0, %v198
    %v200 = vpop.f32.mrb[0].mxu0
    %v201 = vpop.f32.mrb[0].mxu0
    %v202 = vadd.f32 0.0, %v201
    %v203 = vpop.f32.mrb[0].mxu0
    %204 = vdwg.mxu0
    %vm205 = vcmask 523264
    %206 = vst.msk [vmem:[#allocation2] sm:$0xff] %vm205, %v191
    %207 = vst.msk [vmem:[#allocation2 + $0x8] sm:$0xff] %vm205, %v194
    %208 = vst.msk [vmem:[#allocation2 + $0x10] sm:$0xff] %vm205, %v199
    %209 = vst.msk [vmem:[#allocation2 + $0x18] sm:$0xff] %vm205, %v202
    // Predicated region
    $region18: #{_lambda_.5} parent=1 // pred_check
      _
    $region19: #{_lambda_.5} parent=1 // pred_check_branch
      %211 = sbr.rel (0) target = $region21
    $region20: #{_lambda_.5} parent=1 // pred_region
      %s213 = ssub.s32 512, 512
      %214 = vsyncadd [#allocation3], %s213
      %s215 = sshll.u32 [#allocation2], 4
      %s216 = int_to_ptr.vmem [resolvable:$true] %s215
      %221 = dma.vmem_to_hbm [thread:$0]  %s216, 512, %s4, [#allocation3], 128, 128, 8
    $region21: #{_lambda_.5} parent=1 // pred_fallthru
      _
    // Predicated region
    $region22: #{_lambda_.5} parent=1 // pred_check
      _
    $region23: #{_lambda_.5} parent=1 // pred_check_branch
      %223 = sbr.rel (0) target = $region25
    $region24: #{_lambda_.5} parent=1 // pred_region
      %224 = dma.done [#allocation3], 512
    $region25: #{_lambda_.5} parent=1 // pred_fallthru
      _
    %225 = vsyncpa [#allocation3], 1

// kernel: _lambda_.3
$region0: #{_lambda_.3}
  #allocation0 [shape = 'u32[]', space=smem, size = 0x4, offset = 0x4, fixed_abs, tag = 'smem constant byte address 0x4 - core index']
  #allocation1 [shape = 'u32[144,128]{1,0:T(1,128)}', space=vmem, size = 0x12000, scoped, tag = 'internal scratch']
  %s0 = inlined_call_operand.vmem [shape: f32[128,32], index: 0, kind: input, shape index: {}]
  %s1 = inlined_call_operand.vmem [shape: f32[8,2,16,16], index: 1, kind: input, shape index: {}]
  %s2 = inlined_call_operand.vmem [shape: f32[1,32], index: 2, kind: input, shape index: {}]
  %s3 = inlined_call_operand.vmem [shape: f32[1,32], index: 3, kind: input, shape index: {}]
  %s4 = inlined_call_operand.vmem [shape: bf16[32,96], index: 4, kind: input, shape index: {}]
  %s5 = inlined_call_operand.vmem [shape: f32[1,96], index: 5, kind: input, shape index: {}]
  %s6 = inlined_call_operand.vmem [shape: bf16[32,32], index: 6, kind: input, shape index: {}]
  %s7 = inlined_call_operand.vmem [shape: f32[1,32], index: 7, kind: input, shape index: {}]
  %s8 = inlined_call_operand.vmem [shape: f32[1,32], index: 8, kind: input, shape index: {}]
  %s9 = inlined_call_operand.vmem [shape: f32[1,32], index: 9, kind: input, shape index: {}]
  %s10 = inlined_call_operand.vmem [shape: bf16[32,128], index: 10, kind: input, shape index: {}]
  %s11 = inlined_call_operand.vmem [shape: f32[1,128], index: 11, kind: input, shape index: {}]
  %s12 = inlined_call_operand.vmem [shape: bf16[128,32], index: 12, kind: input, shape index: {}]
  %s13 = inlined_call_operand.vmem [shape: f32[1,32], index: 13, kind: input, shape index: {}]
  %s14 = inlined_call_operand.vmem [shape: f32[128,32], index: 14, kind: output, shape index: {}]
  %s15 = sld [smem:[#allocation0]]
  $region66: #{_lambda_.3} parent=0
    _
  %s17 = ssub.s32 1, %s15
  %s18 = scalar_select 0, %s17, %s15
  // Predicated region
  $region2: #{_lambda_.3} parent=0 // pred_check
    _
  $region3: #{_lambda_.3} parent=0 // pred_check_branch
    %20 = sbr.rel (0) target = $region5
  $region4: #{_lambda_.3} parent=0 // pred_region
    _
  $region5: #{_lambda_.3} parent=0 // pred_fallthru
    _
  // Predicated region
  $region6: #{_lambda_.3} parent=0 // pred_check
    _
  $region7: #{_lambda_.3} parent=0 // pred_check_branch
    %22 = sbr.rel (0) target = $region9
  $region8: #{_lambda_.3} parent=0 // pred_region
    _
  $region9: #{_lambda_.3} parent=0 // pred_fallthru
    _
  // Predicated region
  $region10: #{_lambda_.3} parent=0 // pred_check
    _
  $region11: #{_lambda_.3} parent=0 // pred_check_branch
    %24 = sbr.rel (0) target = $region13
  $region12: #{_lambda_.3} parent=0 // pred_region
    _
  $region13: #{_lambda_.3} parent=0 // pred_fallthru
    _
  // Predicated region
  $region14: #{_lambda_.3} parent=0 // pred_check
    _
  $region15: #{_lambda_.3} parent=0 // pred_check_branch
    %26 = sbr.rel (0) target = $region17
  $region16: #{_lambda_.3} parent=0 // pred_region
    _
  $region17: #{_lambda_.3} parent=0 // pred_fallthru
    _
  // Predicated region
  $region18: #{_lambda_.3} parent=0 // pred_check
    _
  $region19: #{_lambda_.3} parent=0 // pred_check_branch
    %28 = sbr.rel (0) target = $region21
  $region20: #{_lambda_.3} parent=0 // pred_region
    _
  $region21: #{_lambda_.3} parent=0 // pred_fallthru
    _
  // Predicated region
  $region22: #{_lambda_.3} parent=0 // pred_check
    _
  $region23: #{_lambda_.3} parent=0 // pred_check_branch
    %30 = sbr.rel (0) target = $region25
  $region24: #{_lambda_.3} parent=0 // pred_region
    _
  $region25: #{_lambda_.3} parent=0 // pred_fallthru
    _
  // Predicated region
  $region26: #{_lambda_.3} parent=0 // pred_check
    _
  $region27: #{_lambda_.3} parent=0 // pred_check_branch
    %32 = sbr.rel (0) target = $region29
  $region28: #{_lambda_.3} parent=0 // pred_region
    _
  $region29: #{_lambda_.3} parent=0 // pred_fallthru
    _
  // Predicated region
  $region30: #{_lambda_.3} parent=0 // pred_check
    _
  $region31: #{_lambda_.3} parent=0 // pred_check_branch
    %34 = sbr.rel (0) target = $region33
  $region32: #{_lambda_.3} parent=0 // pred_region
    _
  $region33: #{_lambda_.3} parent=0 // pred_fallthru
    _
  // Predicated region
  $region34: #{_lambda_.3} parent=0 // pred_check
    _
  $region35: #{_lambda_.3} parent=0 // pred_check_branch
    %36 = sbr.rel (0) target = $region37
  $region36: #{_lambda_.3} parent=0 // pred_region
    _
  $region37: #{_lambda_.3} parent=0 // pred_fallthru
    _
  // Predicated region
  $region38: #{_lambda_.3} parent=0 // pred_check
    _
  $region39: #{_lambda_.3} parent=0 // pred_check_branch
    %38 = sbr.rel (0) target = $region41
  $region40: #{_lambda_.3} parent=0 // pred_region
    _
  $region41: #{_lambda_.3} parent=0 // pred_fallthru
    _
  // Predicated region
  $region42: #{_lambda_.3} parent=0 // pred_check
    _
  $region43: #{_lambda_.3} parent=0 // pred_check_branch
    %40 = sbr.rel (0) target = $region45
  $region44: #{_lambda_.3} parent=0 // pred_region
    _
  $region45: #{_lambda_.3} parent=0 // pred_fallthru
    _
  // Predicated region
  $region46: #{_lambda_.3} parent=0 // pred_check
    _
  $region47: #{_lambda_.3} parent=0 // pred_check_branch
    %42 = sbr.rel (0) target = $region49
  $region48: #{_lambda_.3} parent=0 // pred_region
    _
  $region49: #{_lambda_.3} parent=0 // pred_fallthru
    _
  // Predicated region
  $region50: #{_lambda_.3} parent=0 // pred_check
    _
  $region51: #{_lambda_.3} parent=0 // pred_check_branch
    %44 = sbr.rel (0) target = $region53
  $region52: #{_lambda_.3} parent=0 // pred_region
    _
  $region53: #{_lambda_.3} parent=0 // pred_fallthru
    _
  // Predicated region
  $region54: #{_lambda_.3} parent=0 // pred_check
    _
  $region55: #{_lambda_.3} parent=0 // pred_check_branch
    %46 = sbr.rel (0) target = $region57
  $region56: #{_lambda_.3} parent=0 // pred_region
    _
  $region57: #{_lambda_.3} parent=0 // pred_fallthru
    _
  %v48 = vld [vmem:[%s0] sm:$0xff]
  %v49 = vld [vmem:[%s0 + $0x8] sm:$0xff]
  %v50 = vld [vmem:[%s0 + $0x10] sm:$0xff]
  %v51 = vld [vmem:[%s0 + $0x18] sm:$0xff]
  %v52 = vld [vmem:[%s0 + $0x20] sm:$0xff]
  %v53 = vld [vmem:[%s0 + $0x28] sm:$0xff]
  %v54 = vld [vmem:[%s0 + $0x30] sm:$0xff]
  %v55 = vld [vmem:[%s0 + $0x38] sm:$0xff]
  %v56 = vld [vmem:[%s0 + $0x40] sm:$0xff]
  %v57 = vld [vmem:[%s0 + $0x48] sm:$0xff]
  %v58 = vld [vmem:[%s0 + $0x50] sm:$0xff]
  %v59 = vld [vmem:[%s0 + $0x58] sm:$0xff]
  %v60 = vld [vmem:[%s0 + $0x60] sm:$0xff]
  %v61 = vld [vmem:[%s0 + $0x68] sm:$0xff]
  %v62 = vld [vmem:[%s0 + $0x70] sm:$0xff]
  %v63 = vld [vmem:[%s0 + $0x78] sm:$0xff]
  %vm64 = vcmask 261120
  %v65 = vsel %vm64, %v48, 0.0
  %66 = vadd.xlane.f32.xlu0 %v65
  %v67 = vpop.xlane.xlu0 %66
  %v68 = vsel %vm64, %v49, 0.0
  %69 = vadd.xlane.f32.xlu0 %v68
  %v70 = vpop.xlane.xlu0 %69
  %v71 = vsel %vm64, %v50, 0.0
  %72 = vadd.xlane.f32.xlu0 %v71
  %v73 = vpop.xlane.xlu0 %72
  %v74 = vsel %vm64, %v51, 0.0
  %75 = vadd.xlane.f32.xlu0 %v74
  %v76 = vpop.xlane.xlu0 %75
  %v77 = vsel %vm64, %v52, 0.0
  %78 = vadd.xlane.f32.xlu0 %v77
  %v79 = vpop.xlane.xlu0 %78
  %v80 = vsel %vm64, %v53, 0.0
  %81 = vadd.xlane.f32.xlu0 %v80
  %v82 = vpop.xlane.xlu0 %81
  %v83 = vsel %vm64, %v54, 0.0
  %84 = vadd.xlane.f32.xlu0 %v83
  %v85 = vpop.xlane.xlu0 %84
  %v86 = vsel %vm64, %v55, 0.0
  %87 = vadd.xlane.f32.xlu0 %v86
  %v88 = vpop.xlane.xlu0 %87
  %v89 = vsel %vm64, %v56, 0.0
  %90 = vadd.xlane.f32.xlu0 %v89
  %v91 = vpop.xlane.xlu0 %90
  %v92 = vsel %vm64, %v57, 0.0
  %93 = vadd.xlane.f32.xlu0 %v92
  %v94 = vpop.xlane.xlu0 %93
  %v95 = vsel %vm64, %v58, 0.0
  %96 = vadd.xlane.f32.xlu0 %v95
  %v97 = vpop.xlane.xlu0 %96
  %v98 = vsel %vm64, %v59, 0.0
  %99 = vadd.xlane.f32.xlu0 %v98
  %v100 = vpop.xlane.xlu0 %99
  %v101 = vsel %vm64, %v60, 0.0
  %102 = vadd.xlane.f32.xlu0 %v101
  %v103 = vpop.xlane.xlu0 %102
  %v104 = vsel %vm64, %v61, 0.0
  %105 = vadd.xlane.f32.xlu0 %v104
  %v106 = vpop.xlane.xlu0 %105
  %v107 = vsel %vm64, %v62, 0.0
  %108 = vadd.xlane.f32.xlu0 %v107
  %v109 = vpop.xlane.xlu0 %108
  %v110 = vsel %vm64, %v63, 0.0
  %111 = vadd.xlane.f32.xlu0 %v110
  %v112 = vpop.xlane.xlu0 %111
  %v113 = vrcp.pop 32.0
  %v114 = vmul.f32 %v67, %v113
  %v115 = vmul.f32 %v70, %v113
  %v116 = vmul.f32 %v73, %v113
  %v117 = vmul.f32 %v76, %v113
  %v118 = vmul.f32 %v79, %v113
  %v119 = vmul.f32 %v82, %v113
  %v120 = vmul.f32 %v85, %v113
  %v121 = vmul.f32 %v88, %v113
  %v122 = vmul.f32 %v91, %v113
  %v123 = vmul.f32 %v94, %v113
  %v124 = vmul.f32 %v97, %v113
  %v125 = vmul.f32 %v100, %v113
  %v126 = vmul.f32 %v103, %v113
  %v127 = vmul.f32 %v106, %v113
  %v128 = vmul.f32 %v109, %v113
  %v129 = vmul.f32 %v112, %v113
  %v130 = vsub.f32 %v48, %v114
  %v131 = vsub.f32 %v49, %v115
  %v132 = vsub.f32 %v50, %v116
  %v133 = vsub.f32 %v51, %v117
  %v134 = vsub.f32 %v52, %v118
  %v135 = vsub.f32 %v53, %v119
  %v136 = vsub.f32 %v54, %v120
  %v137 = vsub.f32 %v55, %v121
  %v138 = vsub.f32 %v56, %v122
  %v139 = vsub.f32 %v57, %v123
  %v140 = vsub.f32 %v58, %v124
  %v141 = vsub.f32 %v59, %v125
  %v142 = vsub.f32 %v60, %v126
  %v143 = vsub.f32 %v61, %v127
  %v144 = vsub.f32 %v62, %v128
  %v145 = vsub.f32 %v63, %v129
  %v146 = vmul.f32 %v130, %v130
  %v147 = vmul.f32 %v131, %v131
  %v148 = vmul.f32 %v132, %v132
  %v149 = vmul.f32 %v133, %v133
  %v150 = vmul.f32 %v134, %v134
  %v151 = vmul.f32 %v135, %v135
  %v152 = vmul.f32 %v136, %v136
  %v153 = vmul.f32 %v137, %v137
  %v154 = vmul.f32 %v138, %v138
  %v155 = vmul.f32 %v139, %v139
  %v156 = vmul.f32 %v140, %v140
  %v157 = vmul.f32 %v141, %v141
  %v158 = vmul.f32 %v142, %v142
  %v159 = vmul.f32 %v143, %v143
  %v160 = vmul.f32 %v144, %v144
  %v161 = vmul.f32 %v145, %v145
  %v162 = vsel %vm64, %v146, 0.0
  %163 = vadd.xlane.f32.xlu0 %v162
  %v164 = vpop.xlane.xlu0 %163
  %v165 = vsel %vm64, %v147, 0.0
  %166 = vadd.xlane.f32.xlu0 %v165
  %v167 = vpop.xlane.xlu0 %166
  %v168 = vsel %vm64, %v148, 0.0
  %169 = vadd.xlane.f32.xlu0 %v168
  %v170 = vpop.xlane.xlu0 %169
  %v171 = vsel %vm64, %v149, 0.0
  %172 = vadd.xlane.f32.xlu0 %v171
  %v173 = vpop.xlane.xlu0 %172
  %v174 = vsel %vm64, %v150, 0.0
  %175 = vadd.xlane.f32.xlu0 %v174
  %v176 = vpop.xlane.xlu0 %175
  %v177 = vsel %vm64, %v151, 0.0
  %178 = vadd.xlane.f32.xlu0 %v177
  %v179 = vpop.xlane.xlu0 %178
  %v180 = vsel %vm64, %v152, 0.0
  %181 = vadd.xlane.f32.xlu0 %v180
  %v182 = vpop.xlane.xlu0 %181
  %v183 = vsel %vm64, %v153, 0.0
  %184 = vadd.xlane.f32.xlu0 %v183
  %v185 = vpop.xlane.xlu0 %184
  %v186 = vsel %vm64, %v154, 0.0
  %187 = vadd.xlane.f32.xlu0 %v186
  %v188 = vpop.xlane.xlu0 %187
  %v189 = vsel %vm64, %v155, 0.0
  %190 = vadd.xlane.f32.xlu0 %v189
  %v191 = vpop.xlane.xlu0 %190
  %v192 = vsel %vm64, %v156, 0.0
  %193 = vadd.xlane.f32.xlu0 %v192
  %v194 = vpop.xlane.xlu0 %193
  %v195 = vsel %vm64, %v157, 0.0
  %196 = vadd.xlane.f32.xlu0 %v195
  %v197 = vpop.xlane.xlu0 %196
  %v198 = vsel %vm64, %v158, 0.0
  %199 = vadd.xlane.f32.xlu0 %v198
  %v200 = vpop.xlane.xlu0 %199
  %v201 = vsel %vm64, %v159, 0.0
  %202 = vadd.xlane.f32.xlu0 %v201
  %v203 = vpop.xlane.xlu0 %202
  %v204 = vsel %vm64, %v160, 0.0
  %205 = vadd.xlane.f32.xlu0 %v204
  %v206 = vpop.xlane.xlu0 %205
  %v207 = vsel %vm64, %v161, 0.0
  %208 = vadd.xlane.f32.xlu0 %v207
  %v209 = vpop.xlane.xlu0 %208
  %v210 = vmul.f32 %v164, %v113
  %v211 = vmul.f32 %v167, %v113
  %v212 = vmul.f32 %v170, %v113
  %v213 = vmul.f32 %v173, %v113
  %v214 = vmul.f32 %v176, %v113
  %v215 = vmul.f32 %v179, %v113
  %v216 = vmul.f32 %v182, %v113
  %v217 = vmul.f32 %v185, %v113
  %v218 = vmul.f32 %v188, %v113
  %v219 = vmul.f32 %v191, %v113
  %v220 = vmul.f32 %v194, %v113
  %v221 = vmul.f32 %v197, %v113
  %v222 = vmul.f32 %v200, %v113
  %v223 = vmul.f32 %v203, %v113
  %v224 = vmul.f32 %v206, %v113
  %v225 = vmul.f32 %v209, %v113
  %v226 = vadd.f32 %v210, 1e-05
  %v227 = vadd.f32 %v211, 1e-05
  %v228 = vadd.f32 %v212, 1e-05
  %v229 = vadd.f32 %v213, 1e-05
  %v230 = vadd.f32 %v214, 1e-05
  %v231 = vadd.f32 %v215, 1e-05
  %v232 = vadd.f32 %v216, 1e-05
  %v233 = vadd.f32 %v217, 1e-05
  %v234 = vadd.f32 %v218, 1e-05
  %v235 = vadd.f32 %v219, 1e-05
  %v236 = vadd.f32 %v220, 1e-05
  %v237 = vadd.f32 %v221, 1e-05
  %v238 = vadd.f32 %v222, 1e-05
  %v239 = vadd.f32 %v223, 1e-05
  %v240 = vadd.f32 %v224, 1e-05
  %v241 = vadd.f32 %v225, 1e-05
  %v242 = vrsqrt.pop %v226
  %v243 = vrsqrt.pop %v227
  %v244 = vrsqrt.pop %v228
  %v245 = vrsqrt.pop %v229
  %v246 = vrsqrt.pop %v230
  %v247 = vrsqrt.pop %v231
  %v248 = vrsqrt.pop %v232
  %v249 = vrsqrt.pop %v233
  %v250 = vrsqrt.pop %v234
  %v251 = vrsqrt.pop %v235
  %v252 = vrsqrt.pop %v236
  %v253 = vrsqrt.pop %v237
  %v254 = vrsqrt.pop %v238
  %v255 = vrsqrt.pop %v239
  %v256 = vrsqrt.pop %v240
  %v257 = vrsqrt.pop %v241
  %v258 = vmul.f32 %v130, %v242
  %v259 = vmul.f32 %v131, %v243
  %v260 = vmul.f32 %v132, %v244
  %v261 = vmul.f32 %v133, %v245
  %v262 = vmul.f32 %v134, %v246
  %v263 = vmul.f32 %v135, %v247
  %v264 = vmul.f32 %v136, %v248
  %v265 = vmul.f32 %v137, %v249
  %v266 = vmul.f32 %v138, %v250
  %v267 = vmul.f32 %v139, %v251
  %v268 = vmul.f32 %v140, %v252
  %v269 = vmul.f32 %v141, %v253
  %v270 = vmul.f32 %v142, %v254
  %v271 = vmul.f32 %v143, %v255
  %v272 = vmul.f32 %v144, %v256
  %v273 = vmul.f32 %v145, %v257
  %v274 = vld [vmem:[%s2] sm:$0x1]
  %v276 = vlaneseq
  %v277 = vshrl.u32 %v276, 7
  %v278 = vsub.s32 0, %v277
  %v279 = vrot.slane %v274, %v278
  %v281 = vmul.f32 %v258, %v279
  %v282 = vmul.f32 %v259, %v279
  %v283 = vmul.f32 %v260, %v279
  %v284 = vmul.f32 %v261, %v279
  %v285 = vmul.f32 %v262, %v279
  %v286 = vmul.f32 %v263, %v279
  %v287 = vmul.f32 %v264, %v279
  %v288 = vmul.f32 %v265, %v279
  %v289 = vmul.f32 %v266, %v279
  %v290 = vmul.f32 %v267, %v279
  %v291 = vmul.f32 %v268, %v279
  %v292 = vmul.f32 %v269, %v279
  %v293 = vmul.f32 %v270, %v279
  %v294 = vmul.f32 %v271, %v279
  %v295 = vmul.f32 %v272, %v279
  %v296 = vmul.f32 %v273, %v279
  %v297 = vld [vmem:[%s3] sm:$0x1]
  %v299 = vlaneseq
  %v300 = vshrl.u32 %v299, 7
  %v301 = vsub.s32 0, %v300
  %v302 = vrot.slane %v297, %v301
  %v304 = vadd.f32 %v281, %v302
  %v305 = vadd.f32 %v282, %v302
  %v306 = vadd.f32 %v283, %v302
  %v307 = vadd.f32 %v284, %v302
  %v308 = vadd.f32 %v285, %v302
  %v309 = vadd.f32 %v286, %v302
  %v310 = vadd.f32 %v287, %v302
  %v311 = vadd.f32 %v288, %v302
  %v312 = vadd.f32 %v289, %v302
  %v313 = vadd.f32 %v290, %v302
  %v314 = vadd.f32 %v291, %v302
  %v315 = vadd.f32 %v292, %v302
  %v316 = vadd.f32 %v293, %v302
  %v317 = vadd.f32 %v294, %v302
  %v318 = vadd.f32 %v295, %v302
  %v319 = vadd.f32 %v296, %v302
  %v320 = vpack.c.bf16 %v305, %v304
  %v321 = vpack.c.bf16 %v307, %v306
  %v322 = vpack.c.bf16 %v309, %v308
  %v323 = vpack.c.bf16 %v311, %v310
  %v324 = vpack.c.bf16 %v313, %v312
  %v325 = vpack.c.bf16 %v315, %v314
  %v326 = vpack.c.bf16 %v317, %v316
  %v327 = vpack.c.bf16 %v319, %v318
  %v328 = vld [vmem:[%s4] sm:$0xf]
  %v329 = vld [vmem:[%s4 + $0x4] sm:$0xf]
  %v330 = vld [vmem:[%s4 + $0x8] sm:$0xf]
  %v331 = vld [vmem:[%s4 + $0xc] sm:$0xf]
  %v332 = vld [vmem:[%s5] sm:$0x1]
  %v334 = vlaneseq
  %v335 = vshrl.u32 %v334, 7
  %v336 = vsub.s32 0, %v335
  %v337 = vrot.slane %v332, %v336
  %v343 = vunpack.c.l.b16 %v328
  %v344 = vunpack.c.l.b16 %v329
  %v345 = vunpack.c.l.b16 %v330
  %v346 = vunpack.c.l.b16 %v331
  %v347 = vpack.c.b16 %v344, %v343
  %v348 = vpack.c.b16 %v346, %v345
  %v352 = vsel %vm64, %v320, 0
  %v355 = vsel %vm64, %v321, 0
  %v358 = vsel %vm64, %v322, 0
  %v361 = vsel %vm64, %v323, 0
  %v364 = vsel %vm64, %v324, 0
  %v367 = vsel %vm64, %v325, 0
  %v370 = vsel %vm64, %v326, 0
  %v373 = vsel %vm64, %v327, 0
  %375 = vmatprep.subr.bf16.mxu0 0
  %376 = vmatpush1.bf16.msra.mxu0 %v347
  %377 = vmatprep.subr.bf16.mxu0 0
  %378 = vmatpush1.bf16.msra.mxu0 %v348
  %379 = vmatprep.subr.bf16.mxu0 0
  %380 = vmatpush1.bf16.msra.mxu0 0
  %381 = vmatprep.subr.bf16.mxu0 0
  %382 = vmatpush1.bf16.msra.mxu0 0
  %383 = vmatprep.subr.bf16.mxu0 0
  %384 = vmatpush1.bf16.msra.mxu0 0
  %385 = vmatprep.subr.bf16.mxu0 0
  %386 = vmatpush1.bf16.msra.mxu0 0
  %387 = vmatprep.subr.bf16.mxu0 0
  %388 = vmatpush1.bf16.msra.mxu0 0
  %389 = vmatprep.subr.bf16.mxu0 0
  %390 = vmatpush1.bf16.msra.mxu0 0
  %391 = vmatprep.subr.bf16.mxu0 0
  %392 = vmatpush1.bf16.msra.mxu0 0
  %393 = vmatprep.subr.bf16.mxu0 0
  %394 = vmatpush1.bf16.msra.mxu0 0
  %395 = vmatprep.subr.bf16.mxu0 0
  %396 = vmatpush1.bf16.msra.mxu0 0
  %397 = vmatprep.subr.bf16.mxu0 0
  %398 = vmatpush1.bf16.msra.mxu0 0
  %399 = vmatprep.subr.bf16.mxu0 0
  %400 = vmatpush1.bf16.msra.mxu0 0
  %401 = vmatprep.subr.bf16.mxu0 0
  %402 = vmatpush1.bf16.msra.mxu0 0
  %403 = vmatprep.subr.bf16.mxu0 0
  %404 = vmatpush1.bf16.msra.mxu0 0
  %405 = vmatprep.subr.bf16.mxu0 0
  %406 = vmatpush1.bf16.msra.mxu0 0
  %407 = vmatprep.mubr.bf16.mxu0 0
  %408 = vmatmul.mubr.bf16.gmra.mrb[0].mxu0 %v352
  %v409 = vpop.f32.mrb[0].mxu0
  %v410 = vadd.f32 %v337, %v409
  %v411 = vpop.f32.mrb[0].mxu0
  %v412 = vpop.f32.mrb[0].mxu0
  %v413 = vadd.f32 %v337, %v412
  %v414 = vpop.f32.mrb[0].mxu0
  %415 = vmatprep.mubr.bf16.mxu0 0
  %416 = vmatmul.mubr.bf16.gmra.mrb[0].mxu0 %v355
  %v417 = vpop.f32.mrb[0].mxu0
  %v418 = vadd.f32 %v337, %v417
  %v419 = vpop.f32.mrb[0].mxu0
  %v420 = vpop.f32.mrb[0].mxu0
  %v421 = vadd.f32 %v337, %v420
  %v422 = vpop.f32.mrb[0].mxu0
  %423 = vmatprep.mubr.bf16.mxu0 0
  %424 = vmatmul.mubr.bf16.gmra.mrb[0].mxu0 %v358
  %v425 = vpop.f32.mrb[0].mxu0
  %v426 = vadd.f32 %v337, %v425
  %v427 = vpop.f32.mrb[0].mxu0
  %v428 = vpop.f32.mrb[0].mxu0
  %v429 = vadd.f32 %v337, %v428
  %v430 = vpop.f32.mrb[0].mxu0
  %431 = vmatprep.mubr.bf16.mxu0 0
  %432 = vmatmul.mubr.bf16.gmra.mrb[0].mxu0 %v361
  %v433 = vpop.f32.mrb[0].mxu0
  %v434 = vadd.f32 %v337, %v433
  %v435 = vpop.f32.mrb[0].mxu0
  %v436 = vpop.f32.mrb[0].mxu0
  %v437 = vadd.f32 %v337, %v436
  %v438 = vpop.f32.mrb[0].mxu0
  %439 = vmatprep.mubr.bf16.mxu0 0
  %440 = vmatmul.mubr.bf16.gmra.mrb[0].mxu0 %v364
  %v441 = vpop.f32.mrb[0].mxu0
  %v442 = vadd.f32 %v337, %v441
  %v443 = vpop.f32.mrb[0].mxu0
  %v444 = vpop.f32.mrb[0].mxu0
  %v445 = vadd.f32 %v337, %v444
  %v446 = vpop.f32.mrb[0].mxu0
  %447 = vmatprep.mubr.bf16.mxu0 0
  %448 = vmatmul.mubr.bf16.gmra.mrb[0].mxu0 %v367
  %v449 = vpop.f32.mrb[0].mxu0
  %v450 = vadd.f32 %v337, %v449
  %v451 = vpop.f32.mrb[0].mxu0
  %v452 = vpop.f32.mrb[0].mxu0
  %v453 = vadd.f32 %v337, %v452
  %v454 = vpop.f32.mrb[0].mxu0
  %455 = vmatprep.mubr.bf16.mxu0 0
  %456 = vmatmul.mubr.bf16.gmra.mrb[0].mxu0 %v370
  %v457 = vpop.f32.mrb[0].mxu0
  %v458 = vadd.f32 %v337, %v457
  %v459 = vpop.f32.mrb[0].mxu0
  %v460 = vpop.f32.mrb[0].mxu0
  %v461 = vadd.f32 %v337, %v460
  %v462 = vpop.f32.mrb[0].mxu0
  %463 = vmatprep.mubr.bf16.mxu0 0
  %464 = vmatmul.mubr.bf16.gmra.mrb[0].mxu0 %v373
  %v465 = vpop.f32.mrb[0].mxu0
  %v466 = vadd.f32 %v337, %v465
  %v467 = vpop.f32.mrb[0].mxu0
  %v468 = vpop.f32.mrb[0].mxu0
  %v469 = vadd.f32 %v337, %v468
  %v470 = vpop.f32.mrb[0].mxu0
  %471 = vdwg.mxu0
  %v472 = vpack.c.bf16 %v413, %v410
  %v473 = vpack.c.bf16 %v421, %v418
  %v474 = vpack.c.bf16 %v429, %v426
  %v475 = vpack.c.bf16 %v437, %v434
  %v476 = vpack.c.bf16 %v445, %v442
  %v477 = vpack.c.bf16 %v453, %v450
  %v478 = vpack.c.bf16 %v461, %v458
  %v479 = vpack.c.bf16 %v469, %v466
  %v480 = vld [vmem:[%s1] sm:$0xff]
  %v481 = vld [vmem:[%s1 + $0x8] sm:$0xff]
  %v482 = vld [vmem:[%s1 + $0x10] sm:$0xff]
  %v483 = vld [vmem:[%s1 + $0x18] sm:$0xff]
  %v484 = vld [vmem:[%s1 + $0x20] sm:$0xff]
  %v485 = vld [vmem:[%s1 + $0x28] sm:$0xff]
  %v486 = vld [vmem:[%s1 + $0x30] sm:$0xff]
  %v487 = vld [vmem:[%s1 + $0x38] sm:$0xff]
  %v488 = vld [vmem:[%s1 + $0x40] sm:$0xff]
  %v489 = vld [vmem:[%s1 + $0x48] sm:$0xff]
  %v490 = vld [vmem:[%s1 + $0x50] sm:$0xff]
  %v491 = vld [vmem:[%s1 + $0x58] sm:$0xff]
  %v492 = vld [vmem:[%s1 + $0x60] sm:$0xff]
  %v493 = vld [vmem:[%s1 + $0x68] sm:$0xff]
  %v494 = vld [vmem:[%s1 + $0x70] sm:$0xff]
  %v495 = vld [vmem:[%s1 + $0x78] sm:$0xff]
  %v496 = vld [vmem:[%s1 + $0x80] sm:$0xff]
  %v497 = vld [vmem:[%s1 + $0x88] sm:$0xff]
  %v498 = vld [vmem:[%s1 + $0x90] sm:$0xff]
  %v499 = vld [vmem:[%s1 + $0x98] sm:$0xff]
  %v500 = vld [vmem:[%s1 + $0xa0] sm:$0xff]
  %v501 = vld [vmem:[%s1 + $0xa8] sm:$0xff]
  %v502 = vld [vmem:[%s1 + $0xb0] sm:$0xff]
  %v503 = vld [vmem:[%s1 + $0xb8] sm:$0xff]
  %v504 = vld [vmem:[%s1 + $0xc0] sm:$0xff]
  %v505 = vld [vmem:[%s1 + $0xc8] sm:$0xff]
  %v506 = vld [vmem:[%s1 + $0xd0] sm:$0xff]
  %v507 = vld [vmem:[%s1 + $0xd8] sm:$0xff]
  %v508 = vld [vmem:[%s1 + $0xe0] sm:$0xff]
  %v509 = vld [vmem:[%s1 + $0xe8] sm:$0xff]
  %v510 = vld [vmem:[%s1 + $0xf0] sm:$0xff]
  %v511 = vld [vmem:[%s1 + $0xf8] sm:$0xff]
  %513 = vrot.lane.b32.xlu0 %v472, 96
  %v514 = vpop.permute.xlu0 %513
  %vm515 = vcmask 130048
  %v517 = vsel %vm515, %v472, 0
  %v520 = vsel %vm515, %v514, 0
  %522 = vmatprep.subr.bf16.mxu0 0
  %523 = vmatpush1.bf16.xpose.msra.mxu0 %v520
  %524 = vmatprep.subr.bf16.mxu0 0
  %525 = vmatpush1.bf16.xpose.msra.mxu0 0
  %526 = vmatprep.subr.bf16.mxu0 0
  %527 = vmatpush1.bf16.xpose.msra.mxu0 0
  %528 = vmatprep.subr.bf16.mxu0 0
  %529 = vmatpush1.bf16.xpose.msra.mxu0 0
  %530 = vmatprep.subr.bf16.mxu0 0
  %531 = vmatpush1.bf16.xpose.msra.mxu0 0
  %532 = vmatprep.subr.bf16.mxu0 0
  %533 = vmatpush1.bf16.xpose.msra.mxu0 0
  %534 = vmatprep.subr.bf16.mxu0 0
  %535 = vmatpush1.bf16.xpose.msra.mxu0 0
  %536 = vmatprep.subr.bf16.mxu0 0
  %537 = vmatpush1.bf16.xpose.msra.mxu0 0
  %538 = vmatprep.subr.bf16.mxu0 0
  %539 = vmatpush1.bf16.xpose.msra.mxu0 0
  %540 = vmatprep.subr.bf16.mxu0 0
  %541 = vmatpush1.bf16.xpose.msra.mxu0 0
  %542 = vmatprep.subr.bf16.mxu0 0
  %543 = vmatpush1.bf16.xpose.msra.mxu0 0
  %544 = vmatprep.subr.bf16.mxu0 0
  %545 = vmatpush1.bf16.xpose.msra.mxu0 0
  %546 = vmatprep.subr.bf16.mxu0 0
  %547 = vmatpush1.bf16.xpose.msra.mxu0 0
  %548 = vmatprep.subr.bf16.mxu0 0
  %549 = vmatpush1.bf16.xpose.msra.mxu0 0
  %550 = vmatprep.subr.bf16.mxu0 0
  %551 = vmatpush1.bf16.xpose.msra.mxu0 0
  %552 = vmatprep.subr.bf16.mxu0 0
  %553 = vmatpush1.bf16.xpose.msra.mxu0 0
  %554 = vmatprep.mubr.bf16.mxu0 0
  %555 = vmatmul.mubr.bf16.gmra.mrb[0].mxu0 %v517
  %v556 = vpop.f32.mrb[0].mxu0
  %v557 = vadd.f32 %v480, %v556
  %v558 = vpop.f32.mrb[0].mxu0
  %v559 = vpop.f32.mrb[0].mxu0
  %v560 = vadd.f32 %v481, %v559
  %v561 = vpop.f32.mrb[0].mxu0
  %562 = vdwg.mxu0
  %564 = vrot.lane.b32.xlu0 %v473, 96
  %v565 = vpop.permute.xlu0 %564
  %v567 = vsel %vm515, %v473, 0
  %v570 = vsel %vm515, %v565, 0
  %572 = vmatprep.subr.bf16.mxu0 0
  %573 = vmatpush1.bf16.xpose.msra.mxu0 %v570
  %574 = vmatprep.subr.bf16.mxu0 0
  %575 = vmatpush1.bf16.xpose.msra.mxu0 0
  %576 = vmatprep.subr.bf16.mxu0 0
  %577 = vmatpush1.bf16.xpose.msra.mxu0 0
  %578 = vmatprep.subr.bf16.mxu0 0
  %579 = vmatpush1.bf16.xpose.msra.mxu0 0
  %580 = vmatprep.subr.bf16.mxu0 0
  %581 = vmatpush1.bf16.xpose.msra.mxu0 0
  %582 = vmatprep.subr.bf16.mxu0 0
  %583 = vmatpush1.bf16.xpose.msra.mxu0 0
  %584 = vmatprep.subr.bf16.mxu0 0
  %585 = vmatpush1.bf16.xpose.msra.mxu0 0
  %586 = vmatprep.subr.bf16.mxu0 0
  %587 = vmatpush1.bf16.xpose.msra.mxu0 0
  %588 = vmatprep.subr.bf16.mxu0 0
  %589 = vmatpush1.bf16.xpose.msra.mxu0 0
  %590 = vmatprep.subr.bf16.mxu0 0
  %591 = vmatpush1.bf16.xpose.msra.mxu0 0
  %592 = vmatprep.subr.bf16.mxu0 0
  %593 = vmatpush1.bf16.xpose.msra.mxu0 0
  %594 = vmatprep.subr.bf16.mxu0 0
  %595 = vmatpush1.bf16.xpose.msra.mxu0 0
  %596 = vmatprep.subr.bf16.mxu0 0
  %597 = vmatpush1.bf16.xpose.msra.mxu0 0
  %598 = vmatprep.subr.bf16.mxu0 0
  %599 = vmatpush1.bf16.xpose.msra.mxu0 0
  %600 = vmatprep.subr.bf16.mxu0 0
  %601 = vmatpush1.bf16.xpose.msra.mxu0 0
  %602 = vmatprep.subr.bf16.mxu0 0
  %603 = vmatpush1.bf16.xpose.msra.mxu0 0
  %604 = vmatprep.mubr.bf16.mxu0 0
  %605 = vmatmul.mubr.bf16.gmra.mrb[0].mxu0 %v567
  %v606 = vpop.f32.mrb[0].mxu0
  %v607 = vadd.f32 %v484, %v606
  %v608 = vpop.f32.mrb[0].mxu0
  %v609 = vpop.f32.mrb[0].mxu0
  %v610 = vadd.f32 %v485, %v609
  %v611 = vpop.f32.mrb[0].mxu0
  %612 = vdwg.mxu0
  %614 = vrot.lane.b32.xlu0 %v474, 96
  %v615 = vpop.permute.xlu0 %614
  %v617 = vsel %vm515, %v474, 0
  %v620 = vsel %vm515, %v615, 0
  %622 = vmatprep.subr.bf16.mxu0 0
  %623 = vmatpush1.bf16.xpose.msra.mxu0 %v620
  %624 = vmatprep.subr.bf16.mxu0 0
  %625 = vmatpush1.bf16.xpose.msra.mxu0 0
  %626 = vmatprep.subr.bf16.mxu0 0
  %627 = vmatpush1.bf16.xpose.msra.mxu0 0
  %628 = vmatprep.subr.bf16.mxu0 0
  %629 = vmatpush1.bf16.xpose.msra.mxu0 0
  %630 = vmatprep.subr.bf16.mxu0 0
  %631 = vmatpush1.bf16.xpose.msra.mxu0 0
  %632 = vmatprep.subr.bf16.mxu0 0
  %633 = vmatpush1.bf16.xpose.msra.mxu0 0
  %634 = vmatprep.subr.bf16.mxu0 0
  %635 = vmatpush1.bf16.xpose.msra.mxu0 0
  %636 = vmatprep.subr.bf16.mxu0 0
  %637 = vmatpush1.bf16.xpose.msra.mxu0 0
  %638 = vmatprep.subr.bf16.mxu0 0
  %639 = vmatpush1.bf16.xpose.msra.mxu0 0
  %640 = vmatprep.subr.bf16.mxu0 0
  %641 = vmatpush1.bf16.xpose.msra.mxu0 0
  %642 = vmatprep.subr.bf16.mxu0 0
  %643 = vmatpush1.bf16.xpose.msra.mxu0 0
  %644 = vmatprep.subr.bf16.mxu0 0
  %645 = vmatpush1.bf16.xpose.msra.mxu0 0
  %646 = vmatprep.subr.bf16.mxu0 0
  %647 = vmatpush1.bf16.xpose.msra.mxu0 0
  %648 = vmatprep.subr.bf16.mxu0 0
  %649 = vmatpush1.bf16.xpose.msra.mxu0 0
  %650 = vmatprep.subr.bf16.mxu0 0
  %651 = vmatpush1.bf16.xpose.msra.mxu0 0
  %652 = vmatprep.subr.bf16.mxu0 0
  %653 = vmatpush1.bf16.xpose.msra.mxu0 0
  %654 = vmatprep.mubr.bf16.mxu0 0
  %655 = vmatmul.mubr.bf16.gmra.mrb[0].mxu0 %v617
  %v656 = vpop.f32.mrb[0].mxu0
  %v657 = vadd.f32 %v488, %v656
  %v658 = vpop.f32.mrb[0].mxu0
  %v659 = vpop.f32.mrb[0].mxu0
  %v660 = vadd.f32 %v489, %v659
  %v661 = vpop.f32.mrb[0].mxu0
  %662 = vdwg.mxu0
  %664 = vrot.lane.b32.xlu0 %v475, 96
  %v665 = vpop.permute.xlu0 %664
  %v667 = vsel %vm515, %v475, 0
  %v670 = vsel %vm515, %v665, 0
  %672 = vmatprep.subr.bf16.mxu0 0
  %673 = vmatpush1.bf16.xpose.msra.mxu0 %v670
  %674 = vmatprep.subr.bf16.mxu0 0
  %675 = vmatpush1.bf16.xpose.msra.mxu0 0
  %676 = vmatprep.subr.bf16.mxu0 0
  %677 = vmatpush1.bf16.xpose.msra.mxu0 0
  %678 = vmatprep.subr.bf16.mxu0 0
  %679 = vmatpush1.bf16.xpose.msra.mxu0 0
  %680 = vmatprep.subr.bf16.mxu0 0
  %681 = vmatpush1.bf16.xpose.msra.mxu0 0
  %682 = vmatprep.subr.bf16.mxu0 0
  %683 = vmatpush1.bf16.xpose.msra.mxu0 0
  %684 = vmatprep.subr.bf16.mxu0 0
  %685 = vmatpush1.bf16.xpose.msra.mxu0 0
  %686 = vmatprep.subr.bf16.mxu0 0
  %687 = vmatpush1.bf16.xpose.msra.mxu0 0
  %688 = vmatprep.subr.bf16.mxu0 0
  %689 = vmatpush1.bf16.xpose.msra.mxu0 0
  %690 = vmatprep.subr.bf16.mxu0 0
  %691 = vmatpush1.bf16.xpose.msra.mxu0 0
  %692 = vmatprep.subr.bf16.mxu0 0
  %693 = vmatpush1.bf16.xpose.msra.mxu0 0
  %694 = vmatprep.subr.bf16.mxu0 0
  %695 = vmatpush1.bf16.xpose.msra.mxu0 0
  %696 = vmatprep.subr.bf16.mxu0 0
  %697 = vmatpush1.bf16.xpose.msra.mxu0 0
  %698 = vmatprep.subr.bf16.mxu0 0
  %699 = vmatpush1.bf16.xpose.msra.mxu0 0
  %700 = vmatprep.subr.bf16.mxu0 0
  %701 = vmatpush1.bf16.xpose.msra.mxu0 0
  %702 = vmatprep.subr.bf16.mxu0 0
  %703 = vmatpush1.bf16.xpose.msra.mxu0 0
  %704 = vmatprep.mubr.bf16.mxu0 0
  %705 = vmatmul.mubr.bf16.gmra.mrb[0].mxu0 %v667
  %v706 = vpop.f32.mrb[0].mxu0
  %v707 = vadd.f32 %v492, %v706
  %v708 = vpop.f32.mrb[0].mxu0
  %v709 = vpop.f32.mrb[0].mxu0
  %v710 = vadd.f32 %v493, %v709
  %v711 = vpop.f32.mrb[0].mxu0
  %712 = vdwg.mxu0
  %714 = vrot.lane.b32.xlu0 %v476, 96
  %v715 = vpop.permute.xlu0 %714
  %v717 = vsel %vm515, %v476, 0
  %v720 = vsel %vm515, %v715, 0
  %722 = vmatprep.subr.bf16.mxu0 0
  %723 = vmatpush1.bf16.xpose.msra.mxu0 %v720
  %724 = vmatprep.subr.bf16.mxu0 0
  %725 = vmatpush1.bf16.xpose.msra.mxu0 0
  %726 = vmatprep.subr.bf16.mxu0 0
  %727 = vmatpush1.bf16.xpose.msra.mxu0 0
  %728 = vmatprep.subr.bf16.mxu0 0
  %729 = vmatpush1.bf16.xpose.msra.mxu0 0
  %730 = vmatprep.subr.bf16.mxu0 0
  %731 = vmatpush1.bf16.xpose.msra.mxu0 0
  %732 = vmatprep.subr.bf16.mxu0 0
  %733 = vmatpush1.bf16.xpose.msra.mxu0 0
  %734 = vmatprep.subr.bf16.mxu0 0
  %735 = vmatpush1.bf16.xpose.msra.mxu0 0
  %736 = vmatprep.subr.bf16.mxu0 0
  %737 = vmatpush1.bf16.xpose.msra.mxu0 0
  %738 = vmatprep.subr.bf16.mxu0 0
  %739 = vmatpush1.bf16.xpose.msra.mxu0 0
  %740 = vmatprep.subr.bf16.mxu0 0
  %741 = vmatpush1.bf16.xpose.msra.mxu0 0
  %742 = vmatprep.subr.bf16.mxu0 0
  %743 = vmatpush1.bf16.xpose.msra.mxu0 0
  %744 = vmatprep.subr.bf16.mxu0 0
  %745 = vmatpush1.bf16.xpose.msra.mxu0 0
  %746 = vmatprep.subr.bf16.mxu0 0
  %747 = vmatpush1.bf16.xpose.msra.mxu0 0
  %748 = vmatprep.subr.bf16.mxu0 0
  %749 = vmatpush1.bf16.xpose.msra.mxu0 0
  %750 = vmatprep.subr.bf16.mxu0 0
  %751 = vmatpush1.bf16.xpose.msra.mxu0 0
  %752 = vmatprep.subr.bf16.mxu0 0
  %753 = vmatpush1.bf16.xpose.msra.mxu0 0
  %754 = vmatprep.mubr.bf16.mxu0 0
  %755 = vmatmul.mubr.bf16.gmra.mrb[0].mxu0 %v717
  %v756 = vpop.f32.mrb[0].mxu0
  %v757 = vadd.f32 %v496, %v756
  %v758 = vpop.f32.mrb[0].mxu0
  %v759 = vpop.f32.mrb[0].mxu0
  %v760 = vadd.f32 %v497, %v759
  %v761 = vpop.f32.mrb[0].mxu0
  %762 = vdwg.mxu0
  %764 = vrot.lane.b32.xlu0 %v477, 96
  %v765 = vpop.permute.xlu0 %764
  %v767 = vsel %vm515, %v477, 0
  %v770 = vsel %vm515, %v765, 0
  %772 = vmatprep.subr.bf16.mxu0 0
  %773 = vmatpush1.bf16.xpose.msra.mxu0 %v770
  %774 = vmatprep.subr.bf16.mxu0 0
  %775 = vmatpush1.bf16.xpose.msra.mxu0 0
  %776 = vmatprep.subr.bf16.mxu0 0
  %777 = vmatpush1.bf16.xpose.msra.mxu0 0
  %778 = vmatprep.subr.bf16.mxu0 0
  %779 = vmatpush1.bf16.xpose.msra.mxu0 0
  %780 = vmatprep.subr.bf16.mxu0 0
  %781 = vmatpush1.bf16.xpose.msra.mxu0 0
  %782 = vmatprep.subr.bf16.mxu0 0
  %783 = vmatpush1.bf16.xpose.msra.mxu0 0
  %784 = vmatprep.subr.bf16.mxu0 0
  %785 = vmatpush1.bf16.xpose.msra.mxu0 0
  %786 = vmatprep.subr.bf16.mxu0 0
  %787 = vmatpush1.bf16.xpose.msra.mxu0 0
  %788 = vmatprep.subr.bf16.mxu0 0
  %789 = vmatpush1.bf16.xpose.msra.mxu0 0
  %790 = vmatprep.subr.bf16.mxu0 0
  %791 = vmatpush1.bf16.xpose.msra.mxu0 0
  %792 = vmatprep.subr.bf16.mxu0 0
  %793 = vmatpush1.bf16.xpose.msra.mxu0 0
  %794 = vmatprep.subr.bf16.mxu0 0
  %795 = vmatpush1.bf16.xpose.msra.mxu0 0
  %796 = vmatprep.subr.bf16.mxu0 0
  %797 = vmatpush1.bf16.xpose.msra.mxu0 0
  %798 = vmatprep.subr.bf16.mxu0 0
  %799 = vmatpush1.bf16.xpose.msra.mxu0 0
  %800 = vmatprep.subr.bf16.mxu0 0
  %801 = vmatpush1.bf16.xpose.msra.mxu0 0
  %802 = vmatprep.subr.bf16.mxu0 0
  %803 = vmatpush1.bf16.xpose.msra.mxu0 0
  %804 = vmatprep.mubr.bf16.mxu0 0
  %805 = vmatmul.mubr.bf16.gmra.mrb[0].mxu0 %v767
  %v806 = vpop.f32.mrb[0].mxu0
  %v807 = vadd.f32 %v500, %v806
  %v808 = vpop.f32.mrb[0].mxu0
  %v809 = vpop.f32.mrb[0].mxu0
  %v810 = vadd.f32 %v501, %v809
  %v811 = vpop.f32.mrb[0].mxu0
  %812 = vdwg.mxu0
  %814 = vrot.lane.b32.xlu0 %v478, 96
  %v815 = vpop.permute.xlu0 %814
  %v817 = vsel %vm515, %v478, 0
  %v820 = vsel %vm515, %v815, 0
  %822 = vmatprep.subr.bf16.mxu0 0
  %823 = vmatpush1.bf16.xpose.msra.mxu0 %v820
  %824 = vmatprep.subr.bf16.mxu0 0
  %825 = vmatpush1.bf16.xpose.msra.mxu0 0
  %826 = vmatprep.subr.bf16.mxu0 0
  %827 = vmatpush1.bf16.xpose.msra.mxu0 0
  %828 = vmatprep.subr.bf16.mxu0 0
  %829 = vmatpush1.bf16.xpose.msra.mxu0 0
  %830 = vmatprep.subr.bf16.mxu0 0
  %831 = vmatpush1.bf16.xpose.msra.mxu0 0
  %832 = vmatprep.subr.bf16.mxu0 0
  %833 = vmatpush1.bf16.xpose.msra.mxu0 0
  %834 = vmatprep.subr.bf16.mxu0 0
  %835 = vmatpush1.bf16.xpose.msra.mxu0 0
  %836 = vmatprep.subr.bf16.mxu0 0
  %837 = vmatpush1.bf16.xpose.msra.mxu0 0
  %838 = vmatprep.subr.bf16.mxu0 0
  %839 = vmatpush1.bf16.xpose.msra.mxu0 0
  %840 = vmatprep.subr.bf16.mxu0 0
  %841 = vmatpush1.bf16.xpose.msra.mxu0 0
  %842 = vmatprep.subr.bf16.mxu0 0
  %843 = vmatpush1.bf16.xpose.msra.mxu0 0
  %844 = vmatprep.subr.bf16.mxu0 0
  %845 = vmatpush1.bf16.xpose.msra.mxu0 0
  %846 = vmatprep.subr.bf16.mxu0 0
  %847 = vmatpush1.bf16.xpose.msra.mxu0 0
  %848 = vmatprep.subr.bf16.mxu0 0
  %849 = vmatpush1.bf16.xpose.msra.mxu0 0
  %850 = vmatprep.subr.bf16.mxu0 0
  %851 = vmatpush1.bf16.xpose.msra.mxu0 0
  %852 = vmatprep.subr.bf16.mxu0 0
  %853 = vmatpush1.bf16.xpose.msra.mxu0 0
  %854 = vmatprep.mubr.bf16.mxu0 0
  %855 = vmatmul.mubr.bf16.gmra.mrb[0].mxu0 %v817
  %v856 = vpop.f32.mrb[0].mxu0
  %v857 = vadd.f32 %v504, %v856
  %v858 = vpop.f32.mrb[0].mxu0
  %v859 = vpop.f32.mrb[0].mxu0
  %v860 = vadd.f32 %v505, %v859
  %v861 = vpop.f32.mrb[0].mxu0
  %862 = vdwg.mxu0
  %864 = vrot.lane.b32.xlu0 %v479, 96
  %v865 = vpop.permute.xlu0 %864
  %v867 = vsel %vm515, %v479, 0
  %v870 = vsel %vm515, %v865, 0
  %872 = vmatprep.subr.bf16.mxu0 0
  %873 = vmatpush1.bf16.xpose.msra.mxu0 %v870
  %874 = vmatprep.subr.bf16.mxu0 0
  %875 = vmatpush1.bf16.xpose.msra.mxu0 0
  %876 = vmatprep.subr.bf16.mxu0 0
  %877 = vmatpush1.bf16.xpose.msra.mxu0 0
  %878 = vmatprep.subr.bf16.mxu0 0
  %879 = vmatpush1.bf16.xpose.msra.mxu0 0
  %880 = vmatprep.subr.bf16.mxu0 0
  %881 = vmatpush1.bf16.xpose.msra.mxu0 0
  %882 = vmatprep.subr.bf16.mxu0 0
  %883 = vmatpush1.bf16.xpose.msra.mxu0 0
  %884 = vmatprep.subr.bf16.mxu0 0
  %885 = vmatpush1.bf16.xpose.msra.mxu0 0
  %886 = vmatprep.subr.bf16.mxu0 0
  %887 = vmatpush1.bf16.xpose.msra.mxu0 0
  %888 = vmatprep.subr.bf16.mxu0 0
  %889 = vmatpush1.bf16.xpose.msra.mxu0 0
  %890 = vmatprep.subr.bf16.mxu0 0
  %891 = vmatpush1.bf16.xpose.msra.mxu0 0
  %892 = vmatprep.subr.bf16.mxu0 0
  %893 = vmatpush1.bf16.xpose.msra.mxu0 0
  %894 = vmatprep.subr.bf16.mxu0 0
  %895 = vmatpush1.bf16.xpose.msra.mxu0 0
  %896 = vmatprep.subr.bf16.mxu0 0
  %897 = vmatpush1.bf16.xpose.msra.mxu0 0
  %898 = vmatprep.subr.bf16.mxu0 0
  %899 = vmatpush1.bf16.xpose.msra.mxu0 0
  %900 = vmatprep.subr.bf16.mxu0 0
  %901 = vmatpush1.bf16.xpose.msra.mxu0 0
  %902 = vmatprep.subr.bf16.mxu0 0
  %903 = vmatpush1.bf16.xpose.msra.mxu0 0
  %904 = vmatprep.mubr.bf16.mxu0 0
  %905 = vmatmul.mubr.bf16.gmra.mrb[0].mxu0 %v867
  %v906 = vpop.f32.mrb[0].mxu0
  %v907 = vadd.f32 %v508, %v906
  %v908 = vpop.f32.mrb[0].mxu0
  %v909 = vpop.f32.mrb[0].mxu0
  %v910 = vadd.f32 %v509, %v909
  %v911 = vpop.f32.mrb[0].mxu0
  %912 = vdwg.mxu0
  %v913 = vsel %vm515, %v557, -inf
  %914 = vmax.xlane.f32.xlu0 %v913
  %v915 = vpop.xlane.xlu0 %914
  %v916 = vsel %vm515, %v560, -inf
  %917 = vmax.xlane.f32.xlu0 %v916
  %v918 = vpop.xlane.xlu0 %917
  %v919 = vsel %vm515, %v607, -inf
  %920 = vmax.xlane.f32.xlu0 %v919
  %v921 = vpop.xlane.xlu0 %920
  %v922 = vsel %vm515, %v610, -inf
  %923 = vmax.xlane.f32.xlu0 %v922
  %v924 = vpop.xlane.xlu0 %923
  %v925 = vsel %vm515, %v657, -inf
  %926 = vmax.xlane.f32.xlu0 %v925
  %v927 = vpop.xlane.xlu0 %926
  %v928 = vsel %vm515, %v660, -inf
  %929 = vmax.xlane.f32.xlu0 %v928
  %v930 = vpop.xlane.xlu0 %929
  %v931 = vsel %vm515, %v707, -inf
  %932 = vmax.xlane.f32.xlu0 %v931
  %v933 = vpop.xlane.xlu0 %932
  %v934 = vsel %vm515, %v710, -inf
  %935 = vmax.xlane.f32.xlu0 %v934
  %v936 = vpop.xlane.xlu0 %935
  %v937 = vsel %vm515, %v757, -inf
  %938 = vmax.xlane.f32.xlu0 %v937
  %v939 = vpop.xlane.xlu0 %938
  %v940 = vsel %vm515, %v760, -inf
  %941 = vmax.xlane.f32.xlu0 %v940
  %v942 = vpop.xlane.xlu0 %941
  %v943 = vsel %vm515, %v807, -inf
  %944 = vmax.xlane.f32.xlu0 %v943
  %v945 = vpop.xlane.xlu0 %944
  %v946 = vsel %vm515, %v810, -inf
  %947 = vmax.xlane.f32.xlu0 %v946
  %v948 = vpop.xlane.xlu0 %947
  %v949 = vsel %vm515, %v857, -inf
  %950 = vmax.xlane.f32.xlu0 %v949
  %v951 = vpop.xlane.xlu0 %950
  %v952 = vsel %vm515, %v860, -inf
  %953 = vmax.xlane.f32.xlu0 %v952
  %v954 = vpop.xlane.xlu0 %953
  %v955 = vsel %vm515, %v907, -inf
  %956 = vmax.xlane.f32.xlu0 %v955
  %v957 = vpop.xlane.xlu0 %956
  %v958 = vsel %vm515, %v910, -inf
  %959 = vmax.xlane.f32.xlu0 %v958
  %v960 = vpop.xlane.xlu0 %959
  %v961 = vsub.f32 %v557, %v915
  %v962 = vsub.f32 %v560, %v918
  %v963 = vsub.f32 %v607, %v921
  %v964 = vsub.f32 %v610, %v924
  %v965 = vsub.f32 %v657, %v927
  %v966 = vsub.f32 %v660, %v930
  %v967 = vsub.f32 %v707, %v933
  %v968 = vsub.f32 %v710, %v936
  %v969 = vsub.f32 %v757, %v939
  %v970 = vsub.f32 %v760, %v942
  %v971 = vsub.f32 %v807, %v945
  %v972 = vsub.f32 %v810, %v948
  %v973 = vsub.f32 %v857, %v951
  %v974 = vsub.f32 %v860, %v954
  %v975 = vsub.f32 %v907, %v957
  %v976 = vsub.f32 %v910, %v960
  %v977 = vmul.f32 %v961, 1.442695
  %v978 = vpow.pop %v977
  %v979 = vmul.f32 %v962, 1.442695
  %v980 = vpow.pop %v979
  %v981 = vmul.f32 %v963, 1.442695
  %v982 = vpow.pop %v981
  %v983 = vmul.f32 %v964, 1.442695
  %v984 = vpow.pop %v983
  %v985 = vmul.f32 %v965, 1.442695
  %v986 = vpow.pop %v985
  %v987 = vmul.f32 %v966, 1.442695
  %v988 = vpow.pop %v987
  %v989 = vmul.f32 %v967, 1.442695
  %v990 = vpow.pop %v989
  %v991 = vmul.f32 %v968, 1.442695
  %v992 = vpow.pop %v991
  %v993 = vmul.f32 %v969, 1.442695
  %v994 = vpow.pop %v993
  %v995 = vmul.f32 %v970, 1.442695
  %v996 = vpow.pop %v995
  %v997 = vmul.f32 %v971, 1.442695
  %v998 = vpow.pop %v997
  %v999 = vmul.f32 %v972, 1.442695
  %v1000 = vpow.pop %v999
  %v1001 = vmul.f32 %v973, 1.442695
  %v1002 = vpow.pop %v1001
  %v1003 = vmul.f32 %v974, 1.442695
  %v1004 = vpow.pop %v1003
  %v1005 = vmul.f32 %v975, 1.442695
  %v1006 = vpow.pop %v1005
  %v1007 = vmul.f32 %v976, 1.442695
  %v1008 = vpow.pop %v1007
  %v1009 = vsel %vm515, %v978, 0.0
  %1010 = vadd.xlane.f32.xlu0 %v1009
  %v1011 = vpop.xlane.xlu0 %1010
  %v1012 = vsel %vm515, %v980, 0.0
  %1013 = vadd.xlane.f32.xlu0 %v1012
  %v1014 = vpop.xlane.xlu0 %1013
  %v1015 = vsel %vm515, %v982, 0.0
  %1016 = vadd.xlane.f32.xlu0 %v1015
  %v1017 = vpop.xlane.xlu0 %1016
  %v1018 = vsel %vm515, %v984, 0.0
  %1019 = vadd.xlane.f32.xlu0 %v1018
  %v1020 = vpop.xlane.xlu0 %1019
  %v1021 = vsel %vm515, %v986, 0.0
  %1022 = vadd.xlane.f32.xlu0 %v1021
  %v1023 = vpop.xlane.xlu0 %1022
  %v1024 = vsel %vm515, %v988, 0.0
  %1025 = vadd.xlane.f32.xlu0 %v1024
  %v1026 = vpop.xlane.xlu0 %1025
  %v1027 = vsel %vm515, %v990, 0.0
  %1028 = vadd.xlane.f32.xlu0 %v1027
  %v1029 = vpop.xlane.xlu0 %1028
  %v1030 = vsel %vm515, %v992, 0.0
  %1031 = vadd.xlane.f32.xlu0 %v1030
  %v1032 = vpop.xlane.xlu0 %1031
  %v1033 = vsel %vm515, %v994, 0.0
  %1034 = vadd.xlane.f32.xlu0 %v1033
  %v1035 = vpop.xlane.xlu0 %1034
  %v1036 = vsel %vm515, %v996, 0.0
  %1037 = vadd.xlane.f32.xlu0 %v1036
  %v1038 = vpop.xlane.xlu0 %1037
  %v1039 = vsel %vm515, %v998, 0.0
  %1040 = vadd.xlane.f32.xlu0 %v1039
  %v1041 = vpop.xlane.xlu0 %1040
  %v1042 = vsel %vm515, %v1000, 0.0
  %1043 = vadd.xlane.f32.xlu0 %v1042
  %v1044 = vpop.xlane.xlu0 %1043
  %v1045 = vsel %vm515, %v1002, 0.0
  %1046 = vadd.xlane.f32.xlu0 %v1045
  %v1047 = vpop.xlane.xlu0 %1046
  %v1048 = vsel %vm515, %v1004, 0.0
  %1049 = vadd.xlane.f32.xlu0 %v1048
  %v1050 = vpop.xlane.xlu0 %1049
  %v1051 = vsel %vm515, %v1006, 0.0
  %1052 = vadd.xlane.f32.xlu0 %v1051
  %v1053 = vpop.xlane.xlu0 %1052
  %v1054 = vsel %vm515, %v1008, 0.0
  %1055 = vadd.xlane.f32.xlu0 %v1054
  %v1056 = vpop.xlane.xlu0 %1055
  %v1057 = vrcp.pop %v1011
  %v1058 = vmul.f32 %v978, %v1057
  %v1059 = vrcp.pop %v1014
  %v1060 = vmul.f32 %v980, %v1059
  %v1061 = vrcp.pop %v1017
  %v1062 = vmul.f32 %v982, %v1061
  %v1063 = vrcp.pop %v1020
  %v1064 = vmul.f32 %v984, %v1063
  %v1065 = vrcp.pop %v1023
  %v1066 = vmul.f32 %v986, %v1065
  %v1067 = vrcp.pop %v1026
  %v1068 = vmul.f32 %v988, %v1067
  %v1069 = vrcp.pop %v1029
  %v1070 = vmul.f32 %v990, %v1069
  %v1071 = vrcp.pop %v1032
  %v1072 = vmul.f32 %v992, %v1071
  %v1073 = vrcp.pop %v1035
  %v1074 = vmul.f32 %v994, %v1073
  %v1075 = vrcp.pop %v1038
  %v1076 = vmul.f32 %v996, %v1075
  %v1077 = vrcp.pop %v1041
  %v1078 = vmul.f32 %v998, %v1077
  %v1079 = vrcp.pop %v1044
  %v1080 = vmul.f32 %v1000, %v1079
  %v1081 = vrcp.pop %v1047
  %v1082 = vmul.f32 %v1002, %v1081
  %v1083 = vrcp.pop %v1050
  %v1084 = vmul.f32 %v1004, %v1083
  %v1085 = vrcp.pop %v1053
  %v1086 = vmul.f32 %v1006, %v1085
  %v1087 = vrcp.pop %v1056
  %v1088 = vmul.f32 %v1008, %v1087
  %v1089 = vpack.c.bf16 %v1060, %v1058
  %v1090 = vpack.c.bf16 %v1064, %v1062
  %v1091 = vpack.c.bf16 %v1068, %v1066
  %v1092 = vpack.c.bf16 %v1072, %v1070
  %v1093 = vpack.c.bf16 %v1076, %v1074
  %v1094 = vpack.c.bf16 %v1080, %v1078
  %v1095 = vpack.c.bf16 %v1084, %v1082
  %v1096 = vpack.c.bf16 %v1088, %v1086
  %1097 = vrot.lane.b32.xlu0 %v472, 64
  %v1098 = vpop.permute.xlu0 %1097
  %v1101 = vsel %vm515, %v1089, 0
  %1103 = vmatprep.subr.bf16.mxu0 0
  %1104 = vmatpush1.bf16.msra.mxu0 %v1098
  %1105 = vmatprep.subr.bf16.mxu0 0
  %1106 = vmatpush1.bf16.msra.mxu0 0
  %1107 = vmatprep.subr.bf16.mxu0 0
  %1108 = vmatpush1.bf16.msra.mxu0 0
  %1109 = vmatprep.subr.bf16.mxu0 0
  %1110 = vmatpush1.bf16.msra.mxu0 0
  %1111 = vmatprep.subr.bf16.mxu0 0
  %1112 = vmatpush1.bf16.msra.mxu0 0
  %1113 = vmatprep.subr.bf16.mxu0 0
  %1114 = vmatpush1.bf16.msra.mxu0 0
  %1115 = vmatprep.subr.bf16.mxu0 0
  %1116 = vmatpush1.bf16.msra.mxu0 0
  %1117 = vmatprep.subr.bf16.mxu0 0
  %1118 = vmatpush1.bf16.msra.mxu0 0
  %1119 = vmatprep.subr.bf16.mxu0 0
  %1120 = vmatpush1.bf16.msra.mxu0 0
  %1121 = vmatprep.subr.bf16.mxu0 0
  %1122 = vmatpush1.bf16.msra.mxu0 0
  %1123 = vmatprep.subr.bf16.mxu0 0
  %1124 = vmatpush1.bf16.msra.mxu0 0
  %1125 = vmatprep.subr.bf16.mxu0 0
  %1126 = vmatpush1.bf16.msra.mxu0 0
  %1127 = vmatprep.subr.bf16.mxu0 0
  %1128 = vmatpush1.bf16.msra.mxu0 0
  %1129 = vmatprep.subr.bf16.mxu0 0
  %1130 = vmatpush1.bf16.msra.mxu0 0
  %1131 = vmatprep.subr.bf16.mxu0 0
  %1132 = vmatpush1.bf16.msra.mxu0 0
  %1133 = vmatprep.subr.bf16.mxu0 0
  %1134 = vmatpush1.bf16.msra.mxu0 0
  %1135 = vmatprep.mubr.bf16.mxu0 0
  %1136 = vmatmul.mubr.bf16.gmra.mrb[0].mxu0 %v1101
  %v1137 = vpop.f32.mrb[0].mxu0
  %v1138 = vadd.f32 0.0, %v1137
  %v1139 = vpop.f32.mrb[0].mxu0
  %v1140 = vpop.f32.mrb[0].mxu0
  %v1141 = vadd.f32 0.0, %v1140
  %v1142 = vpop.f32.mrb[0].mxu0
  %1143 = vdwg.mxu0
  %1144 = vrot.lane.b32.xlu0 %v473, 64
  %v1145 = vpop.permute.xlu0 %1144
  %v1148 = vsel %vm515, %v1090, 0
  %1150 = vmatprep.subr.bf16.mxu0 0
  %1151 = vmatpush1.bf16.msra.mxu0 %v1145
  %1152 = vmatprep.subr.bf16.mxu0 0
  %1153 = vmatpush1.bf16.msra.mxu0 0
  %1154 = vmatprep.subr.bf16.mxu0 0
  %1155 = vmatpush1.bf16.msra.mxu0 0
  %1156 = vmatprep.subr.bf16.mxu0 0
  %1157 = vmatpush1.bf16.msra.mxu0 0
  %1158 = vmatprep.subr.bf16.mxu0 0
  %1159 = vmatpush1.bf16.msra.mxu0 0
  %1160 = vmatprep.subr.bf16.mxu0 0
  %1161 = vmatpush1.bf16.msra.mxu0 0
  %1162 = vmatprep.subr.bf16.mxu0 0
  %1163 = vmatpush1.bf16.msra.mxu0 0
  %1164 = vmatprep.subr.bf16.mxu0 0
  %1165 = vmatpush1.bf16.msra.mxu0 0
  %1166 = vmatprep.subr.bf16.mxu0 0
  %1167 = vmatpush1.bf16.msra.mxu0 0
  %1168 = vmatprep.subr.bf16.mxu0 0
  %1169 = vmatpush1.bf16.msra.mxu0 0
  %1170 = vmatprep.subr.bf16.mxu0 0
  %1171 = vmatpush1.bf16.msra.mxu0 0
  %1172 = vmatprep.subr.bf16.mxu0 0
  %1173 = vmatpush1.bf16.msra.mxu0 0
  %1174 = vmatprep.subr.bf16.mxu0 0
  %1175 = vmatpush1.bf16.msra.mxu0 0
  %1176 = vmatprep.subr.bf16.mxu0 0
  %1177 = vmatpush1.bf16.msra.mxu0 0
  %1178 = vmatprep.subr.bf16.mxu0 0
  %1179 = vmatpush1.bf16.msra.mxu0 0
  %1180 = vmatprep.subr.bf16.mxu0 0
  %1181 = vmatpush1.bf16.msra.mxu0 0
  %1182 = vmatprep.mubr.bf16.mxu0 0
  %1183 = vmatmul.mubr.bf16.gmra.mrb[0].mxu0 %v1148
  %v1184 = vpop.f32.mrb[0].mxu0
  %v1185 = vadd.f32 0.0, %v1184
  %v1186 = vpop.f32.mrb[0].mxu0
  %v1187 = vpop.f32.mrb[0].mxu0
  %v1188 = vadd.f32 0.0, %v1187
  %v1189 = vpop.f32.mrb[0].mxu0
  %1190 = vdwg.mxu0
  %1191 = vrot.lane.b32.xlu0 %v474, 64
  %v1192 = vpop.permute.xlu0 %1191
  %v1195 = vsel %vm515, %v1091, 0
  %1197 = vmatprep.subr.bf16.mxu0 0
  %1198 = vmatpush1.bf16.msra.mxu0 %v1192
  %1199 = vmatprep.subr.bf16.mxu0 0
  %1200 = vmatpush1.bf16.msra.mxu0 0
  %1201 = vmatprep.subr.bf16.mxu0 0
  %1202 = vmatpush1.bf16.msra.mxu0 0
  %1203 = vmatprep.subr.bf16.mxu0 0
  %1204 = vmatpush1.bf16.msra.mxu0 0
  %1205 = vmatprep.subr.bf16.mxu0 0
  %1206 = vmatpush1.bf16.msra.mxu0 0
  %1207 = vmatprep.subr.bf16.mxu0 0
  %1208 = vmatpush1.bf16.msra.mxu0 0
  %1209 = vmatprep.subr.bf16.mxu0 0
  %1210 = vmatpush1.bf16.msra.mxu0 0
  %1211 = vmatprep.subr.bf16.mxu0 0
  %1212 = vmatpush1.bf16.msra.mxu0 0
  %1213 = vmatprep.subr.bf16.mxu0 0
  %1214 = vmatpush1.bf16.msra.mxu0 0
  %1215 = vmatprep.subr.bf16.mxu0 0
  %1216 = vmatpush1.bf16.msra.mxu0 0
  %1217 = vmatprep.subr.bf16.mxu0 0
  %1218 = vmatpush1.bf16.msra.mxu0 0
  %1219 = vmatprep.subr.bf16.mxu0 0
  %1220 = vmatpush1.bf16.msra.mxu0 0
  %1221 = vmatprep.subr.bf16.mxu0 0
  %1222 = vmatpush1.bf16.msra.mxu0 0
  %1223 = vmatprep.subr.bf16.mxu0 0
  %1224 = vmatpush1.bf16.msra.mxu0 0
  %1225 = vmatprep.subr.bf16.mxu0 0
  %1226 = vmatpush1.bf16.msra.mxu0 0
  %1227 = vmatprep.subr.bf16.mxu0 0
  %1228 = vmatpush1.bf16.msra.mxu0 0
  %1229 = vmatprep.mubr.bf16.mxu0 0
  %1230 = vmatmul.mubr.bf16.gmra.mrb[0].mxu0 %v1195
  %v1231 = vpop.f32.mrb[0].mxu0
  %v1232 = vadd.f32 0.0, %v1231
  %v1233 = vpop.f32.mrb[0].mxu0
  %v1234 = vpop.f32.mrb[0].mxu0
  %v1235 = vadd.f32 0.0, %v1234
  %v1236 = vpop.f32.mrb[0].mxu0
  %1237 = vdwg.mxu0
  %1238 = vrot.lane.b32.xlu0 %v475, 64
  %v1239 = vpop.permute.xlu0 %1238
  %v1242 = vsel %vm515, %v1092, 0
  %1244 = vmatprep.subr.bf16.mxu0 0
  %1245 = vmatpush1.bf16.msra.mxu0 %v1239
  %1246 = vmatprep.subr.bf16.mxu0 0
  %1247 = vmatpush1.bf16.msra.mxu0 0
  %1248 = vmatprep.subr.bf16.mxu0 0
  %1249 = vmatpush1.bf16.msra.mxu0 0
  %1250 = vmatprep.subr.bf16.mxu0 0
  %1251 = vmatpush1.bf16.msra.mxu0 0
  %1252 = vmatprep.subr.bf16.mxu0 0
  %1253 = vmatpush1.bf16.msra.mxu0 0
  %1254 = vmatprep.subr.bf16.mxu0 0
  %1255 = vmatpush1.bf16.msra.mxu0 0
  %1256 = vmatprep.subr.bf16.mxu0 0
  %1257 = vmatpush1.bf16.msra.mxu0 0
  %1258 = vmatprep.subr.bf16.mxu0 0
  %1259 = vmatpush1.bf16.msra.mxu0 0
  %1260 = vmatprep.subr.bf16.mxu0 0
  %1261 = vmatpush1.bf16.msra.mxu0 0
  %1262 = vmatprep.subr.bf16.mxu0 0
  %1263 = vmatpush1.bf16.msra.mxu0 0
  %1264 = vmatprep.subr.bf16.mxu0 0
  %1265 = vmatpush1.bf16.msra.mxu0 0
  %1266 = vmatprep.subr.bf16.mxu0 0
  %1267 = vmatpush1.bf16.msra.mxu0 0
  %1268 = vmatprep.subr.bf16.mxu0 0
  %1269 = vmatpush1.bf16.msra.mxu0 0
  %1270 = vmatprep.subr.bf16.mxu0 0
  %1271 = vmatpush1.bf16.msra.mxu0 0
  %1272 = vmatprep.subr.bf16.mxu0 0
  %1273 = vmatpush1.bf16.msra.mxu0 0
  %1274 = vmatprep.subr.bf16.mxu0 0
  %1275 = vmatpush1.bf16.msra.mxu0 0
  %1276 = vmatprep.mubr.bf16.mxu0 0
  %1277 = vmatmul.mubr.bf16.gmra.mrb[0].mxu0 %v1242
  %v1278 = vpop.f32.mrb[0].mxu0
  %v1279 = vadd.f32 0.0, %v1278
  %v1280 = vpop.f32.mrb[0].mxu0
  %v1281 = vpop.f32.mrb[0].mxu0
  %v1282 = vadd.f32 0.0, %v1281
  %v1283 = vpop.f32.mrb[0].mxu0
  %1284 = vdwg.mxu0
  %1285 = vrot.lane.b32.xlu0 %v476, 64
  %v1286 = vpop.permute.xlu0 %1285
  %v1289 = vsel %vm515, %v1093, 0
  %1291 = vmatprep.subr.bf16.mxu0 0
  %1292 = vmatpush1.bf16.msra.mxu0 %v1286
  %1293 = vmatprep.subr.bf16.mxu0 0
  %1294 = vmatpush1.bf16.msra.mxu0 0
  %1295 = vmatprep.subr.bf16.mxu0 0
  %1296 = vmatpush1.bf16.msra.mxu0 0
  %1297 = vmatprep.subr.bf16.mxu0 0
  %1298 = vmatpush1.bf16.msra.mxu0 0
  %1299 = vmatprep.subr.bf16.mxu0 0
  %1300 = vmatpush1.bf16.msra.mxu0 0
  %1301 = vmatprep.subr.bf16.mxu0 0
  %1302 = vmatpush1.bf16.msra.mxu0 0
  %1303 = vmatprep.subr.bf16.mxu0 0
  %1304 = vmatpush1.bf16.msra.mxu0 0
  %1305 = vmatprep.subr.bf16.mxu0 0
  %1306 = vmatpush1.bf16.msra.mxu0 0
  %1307 = vmatprep.subr.bf16.mxu0 0
  %1308 = vmatpush1.bf16.msra.mxu0 0
  %1309 = vmatprep.subr.bf16.mxu0 0
  %1310 = vmatpush1.bf16.msra.mxu0 0
  %1311 = vmatprep.subr.bf16.mxu0 0
  %1312 = vmatpush1.bf16.msra.mxu0 0
  %1313 = vmatprep.subr.bf16.mxu0 0
  %1314 = vmatpush1.bf16.msra.mxu0 0
  %1315 = vmatprep.subr.bf16.mxu0 0
  %1316 = vmatpush1.bf16.msra.mxu0 0
  %1317 = vmatprep.subr.bf16.mxu0 0
  %1318 = vmatpush1.bf16.msra.mxu0 0
  %1319 = vmatprep.subr.bf16.mxu0 0
  %1320 = vmatpush1.bf16.msra.mxu0 0
  %1321 = vmatprep.subr.bf16.mxu0 0
  %1322 = vmatpush1.bf16.msra.mxu0 0
  %1323 = vmatprep.mubr.bf16.mxu0 0
  %1324 = vmatmul.mubr.bf16.gmra.mrb[0].mxu0 %v1289
  %v1325 = vpop.f32.mrb[0].mxu0
  %v1326 = vadd.f32 0.0, %v1325
  %v1327 = vpop.f32.mrb[0].mxu0
  %v1328 = vpop.f32.mrb[0].mxu0
  %v1329 = vadd.f32 0.0, %v1328
  %v1330 = vpop.f32.mrb[0].mxu0
  %1331 = vdwg.mxu0
  %1332 = vrot.lane.b32.xlu0 %v477, 64
  %v1333 = vpop.permute.xlu0 %1332
  %v1336 = vsel %vm515, %v1094, 0
  %1338 = vmatprep.subr.bf16.mxu0 0
  %1339 = vmatpush1.bf16.msra.mxu0 %v1333
  %1340 = vmatprep.subr.bf16.mxu0 0
  %1341 = vmatpush1.bf16.msra.mxu0 0
  %1342 = vmatprep.subr.bf16.mxu0 0
  %1343 = vmatpush1.bf16.msra.mxu0 0
  %1344 = vmatprep.subr.bf16.mxu0 0
  %1345 = vmatpush1.bf16.msra.mxu0 0
  %1346 = vmatprep.subr.bf16.mxu0 0
  %1347 = vmatpush1.bf16.msra.mxu0 0
  %1348 = vmatprep.subr.bf16.mxu0 0
  %1349 = vmatpush1.bf16.msra.mxu0 0
  %1350 = vmatprep.subr.bf16.mxu0 0
  %1351 = vmatpush1.bf16.msra.mxu0 0
  %1352 = vmatprep.subr.bf16.mxu0 0
  %1353 = vmatpush1.bf16.msra.mxu0 0
  %1354 = vmatprep.subr.bf16.mxu0 0
  %1355 = vmatpush1.bf16.msra.mxu0 0
  %1356 = vmatprep.subr.bf16.mxu0 0
  %1357 = vmatpush1.bf16.msra.mxu0 0
  %1358 = vmatprep.subr.bf16.mxu0 0
  %1359 = vmatpush1.bf16.msra.mxu0 0
  %1360 = vmatprep.subr.bf16.mxu0 0
  %1361 = vmatpush1.bf16.msra.mxu0 0
  %1362 = vmatprep.subr.bf16.mxu0 0
  %1363 = vmatpush1.bf16.msra.mxu0 0
  %1364 = vmatprep.subr.bf16.mxu0 0
  %1365 = vmatpush1.bf16.msra.mxu0 0
  %1366 = vmatprep.subr.bf16.mxu0 0
  %1367 = vmatpush1.bf16.msra.mxu0 0
  %1368 = vmatprep.subr.bf16.mxu0 0
  %1369 = vmatpush1.bf16.msra.mxu0 0
  %1370 = vmatprep.mubr.bf16.mxu0 0
  %1371 = vmatmul.mubr.bf16.gmra.mrb[0].mxu0 %v1336
  %v1372 = vpop.f32.mrb[0].mxu0
  %v1373 = vadd.f32 0.0, %v1372
  %v1374 = vpop.f32.mrb[0].mxu0
  %v1375 = vpop.f32.mrb[0].mxu0
  %v1376 = vadd.f32 0.0, %v1375
  %v1377 = vpop.f32.mrb[0].mxu0
  %1378 = vdwg.mxu0
  %1379 = vrot.lane.b32.xlu0 %v478, 64
  %v1380 = vpop.permute.xlu0 %1379
  %v1383 = vsel %vm515, %v1095, 0
  %1385 = vmatprep.subr.bf16.mxu0 0
  %1386 = vmatpush1.bf16.msra.mxu0 %v1380
  %1387 = vmatprep.subr.bf16.mxu0 0
  %1388 = vmatpush1.bf16.msra.mxu0 0
  %1389 = vmatprep.subr.bf16.mxu0 0
  %1390 = vmatpush1.bf16.msra.mxu0 0
  %1391 = vmatprep.subr.bf16.mxu0 0
  %1392 = vmatpush1.bf16.msra.mxu0 0
  %1393 = vmatprep.subr.bf16.mxu0 0
  %1394 = vmatpush1.bf16.msra.mxu0 0
  %1395 = vmatprep.subr.bf16.mxu0 0
  %1396 = vmatpush1.bf16.msra.mxu0 0
  %1397 = vmatprep.subr.bf16.mxu0 0
  %1398 = vmatpush1.bf16.msra.mxu0 0
  %1399 = vmatprep.subr.bf16.mxu0 0
  %1400 = vmatpush1.bf16.msra.mxu0 0
  %1401 = vmatprep.subr.bf16.mxu0 0
  %1402 = vmatpush1.bf16.msra.mxu0 0
  %1403 = vmatprep.subr.bf16.mxu0 0
  %1404 = vmatpush1.bf16.msra.mxu0 0
  %1405 = vmatprep.subr.bf16.mxu0 0
  %1406 = vmatpush1.bf16.msra.mxu0 0
  %1407 = vmatprep.subr.bf16.mxu0 0
  %1408 = vmatpush1.bf16.msra.mxu0 0
  %1409 = vmatprep.subr.bf16.mxu0 0
  %1410 = vmatpush1.bf16.msra.mxu0 0
  %1411 = vmatprep.subr.bf16.mxu0 0
  %1412 = vmatpush1.bf16.msra.mxu0 0
  %1413 = vmatprep.subr.bf16.mxu0 0
  %1414 = vmatpush1.bf16.msra.mxu0 0
  %1415 = vmatprep.subr.bf16.mxu0 0
  %1416 = vmatpush1.bf16.msra.mxu0 0
  %1417 = vmatprep.mubr.bf16.mxu0 0
  %1418 = vmatmul.mubr.bf16.gmra.mrb[0].mxu0 %v1383
  %v1419 = vpop.f32.mrb[0].mxu0
  %v1420 = vadd.f32 0.0, %v1419
  %v1421 = vpop.f32.mrb[0].mxu0
  %v1422 = vpop.f32.mrb[0].mxu0
  %v1423 = vadd.f32 0.0, %v1422
  %v1424 = vpop.f32.mrb[0].mxu0
  %1425 = vdwg.mxu0
  %1426 = vrot.lane.b32.xlu0 %v479, 64
  %v1427 = vpop.permute.xlu0 %1426
  %v1430 = vsel %vm515, %v1096, 0
  %1432 = vmatprep.subr.bf16.mxu0 0
  %1433 = vmatpush1.bf16.msra.mxu0 %v1427
  %1434 = vmatprep.subr.bf16.mxu0 0
  %1435 = vmatpush1.bf16.msra.mxu0 0
  %1436 = vmatprep.subr.bf16.mxu0 0
  %1437 = vmatpush1.bf16.msra.mxu0 0
  %1438 = vmatprep.subr.bf16.mxu0 0
  %1439 = vmatpush1.bf16.msra.mxu0 0
  %1440 = vmatprep.subr.bf16.mxu0 0
  %1441 = vmatpush1.bf16.msra.mxu0 0
  %1442 = vmatprep.subr.bf16.mxu0 0
  %1443 = vmatpush1.bf16.msra.mxu0 0
  %1444 = vmatprep.subr.bf16.mxu0 0
  %1445 = vmatpush1.bf16.msra.mxu0 0
  %1446 = vmatprep.subr.bf16.mxu0 0
  %1447 = vmatpush1.bf16.msra.mxu0 0
  %1448 = vmatprep.subr.bf16.mxu0 0
  %1449 = vmatpush1.bf16.msra.mxu0 0
  %1450 = vmatprep.subr.bf16.mxu0 0
  %1451 = vmatpush1.bf16.msra.mxu0 0
  %1452 = vmatprep.subr.bf16.mxu0 0
  %1453 = vmatpush1.bf16.msra.mxu0 0
  %1454 = vmatprep.subr.bf16.mxu0 0
  %1455 = vmatpush1.bf16.msra.mxu0 0
  %1456 = vmatprep.subr.bf16.mxu0 0
  %1457 = vmatpush1.bf16.msra.mxu0 0
  %1458 = vmatprep.subr.bf16.mxu0 0
  %1459 = vmatpush1.bf16.msra.mxu0 0
  %1460 = vmatprep.subr.bf16.mxu0 0
  %1461 = vmatpush1.bf16.msra.mxu0 0
  %1462 = vmatprep.subr.bf16.mxu0 0
  %1463 = vmatpush1.bf16.msra.mxu0 0
  %1464 = vmatprep.mubr.bf16.mxu0 0
  %1465 = vmatmul.mubr.bf16.gmra.mrb[0].mxu0 %v1430
  %v1466 = vpop.f32.mrb[0].mxu0
  %v1467 = vadd.f32 0.0, %v1466
  %v1468 = vpop.f32.mrb[0].mxu0
  %v1469 = vpop.f32.mrb[0].mxu0
  %v1470 = vadd.f32 0.0, %v1469
  %v1471 = vpop.f32.mrb[0].mxu0
  %1472 = vdwg.mxu0
  %1473 = vrot.lane.b32.xlu0 %v472, 112
  %v1474 = vpop.permute.xlu0 %1473
  %1475 = vrot.lane.b32.xlu0 %v472, 80
  %v1476 = vpop.permute.xlu0 %1475
  %v1478 = vsel %vm515, %v1474, 0
  %v1481 = vsel %vm515, %v1476, 0
  %1483 = vmatprep.subr.bf16.mxu0 0
  %1484 = vmatpush1.bf16.xpose.msra.mxu0 %v1481
  %1485 = vmatprep.subr.bf16.mxu0 0
  %1486 = vmatpush1.bf16.xpose.msra.mxu0 0
  %1487 = vmatprep.subr.bf16.mxu0 0
  %1488 = vmatpush1.bf16.xpose.msra.mxu0 0
  %1489 = vmatprep.subr.bf16.mxu0 0
  %1490 = vmatpush1.bf16.xpose.msra.mxu0 0
  %1491 = vmatprep.subr.bf16.mxu0 0
  %1492 = vmatpush1.bf16.xpose.msra.mxu0 0
  %1493 = vmatprep.subr.bf16.mxu0 0
  %1494 = vmatpush1.bf16.xpose.msra.mxu0 0
  %1495 = vmatprep.subr.bf16.mxu0 0
  %1496 = vmatpush1.bf16.xpose.msra.mxu0 0
  %1497 = vmatprep.subr.bf16.mxu0 0
  %1498 = vmatpush1.bf16.xpose.msra.mxu0 0
  %1499 = vmatprep.subr.bf16.mxu0 0
  %1500 = vmatpush1.bf16.xpose.msra.mxu0 0
  %1501 = vmatprep.subr.bf16.mxu0 0
  %1502 = vmatpush1.bf16.xpose.msra.mxu0 0
  %1503 = vmatprep.subr.bf16.mxu0 0
  %1504 = vmatpush1.bf16.xpose.msra.mxu0 0
  %1505 = vmatprep.subr.bf16.mxu0 0
  %1506 = vmatpush1.bf16.xpose.msra.mxu0 0
  %1507 = vmatprep.subr.bf16.mxu0 0
  %1508 = vmatpush1.bf16.xpose.msra.mxu0 0
  %1509 = vmatprep.subr.bf16.mxu0 0
  %1510 = vmatpush1.bf16.xpose.msra.mxu0 0
  %1511 = vmatprep.subr.bf16.mxu0 0
  %1512 = vmatpush1.bf16.xpose.msra.mxu0 0
  %1513 = vmatprep.subr.bf16.mxu0 0
  %1514 = vmatpush1.bf16.xpose.msra.mxu0 0
  %1515 = vmatprep.mubr.bf16.mxu0 0
  %1516 = vmatmul.mubr.bf16.gmra.mrb[0].mxu0 %v1478
  %v1517 = vpop.f32.mrb[0].mxu0
  %v1518 = vadd.f32 %v482, %v1517
  %v1519 = vpop.f32.mrb[0].mxu0
  %v1520 = vpop.f32.mrb[0].mxu0
  %v1521 = vadd.f32 %v483, %v1520
  %v1522 = vpop.f32.mrb[0].mxu0
  %1523 = vdwg.mxu0
  %1524 = vrot.lane.b32.xlu0 %v473, 112
  %v1525 = vpop.permute.xlu0 %1524
  %1526 = vrot.lane.b32.xlu0 %v473, 80
  %v1527 = vpop.permute.xlu0 %1526
  %v1529 = vsel %vm515, %v1525, 0
  %v1532 = vsel %vm515, %v1527, 0
  %1534 = vmatprep.subr.bf16.mxu0 0
  %1535 = vmatpush1.bf16.xpose.msra.mxu0 %v1532
  %1536 = vmatprep.subr.bf16.mxu0 0
  %1537 = vmatpush1.bf16.xpose.msra.mxu0 0
  %1538 = vmatprep.subr.bf16.mxu0 0
  %1539 = vmatpush1.bf16.xpose.msra.mxu0 0
  %1540 = vmatprep.subr.bf16.mxu0 0
  %1541 = vmatpush1.bf16.xpose.msra.mxu0 0
  %1542 = vmatprep.subr.bf16.mxu0 0
  %1543 = vmatpush1.bf16.xpose.msra.mxu0 0
  %1544 = vmatprep.subr.bf16.mxu0 0
  %1545 = vmatpush1.bf16.xpose.msra.mxu0 0
  %1546 = vmatprep.subr.bf16.mxu0 0
  %1547 = vmatpush1.bf16.xpose.msra.mxu0 0
  %1548 = vmatprep.subr.bf16.mxu0 0
  %1549 = vmatpush1.bf16.xpose.msra.mxu0 0
  %1550 = vmatprep.subr.bf16.mxu0 0
  %1551 = vmatpush1.bf16.xpose.msra.mxu0 0
  %1552 = vmatprep.subr.bf16.mxu0 0
  %1553 = vmatpush1.bf16.xpose.msra.mxu0 0
  %1554 = vmatprep.subr.bf16.mxu0 0
  %1555 = vmatpush1.bf16.xpose.msra.mxu0 0
  %1556 = vmatprep.subr.bf16.mxu0 0
  %1557 = vmatpush1.bf16.xpose.msra.mxu0 0
  %1558 = vmatprep.subr.bf16.mxu0 0
  %1559 = vmatpush1.bf16.xpose.msra.mxu0 0
  %1560 = vmatprep.subr.bf16.mxu0 0
  %1561 = vmatpush1.bf16.xpose.msra.mxu0 0
  %1562 = vmatprep.subr.bf16.mxu0 0
  %1563 = vmatpush1.bf16.xpose.msra.mxu0 0
  %1564 = vmatprep.subr.bf16.mxu0 0
  %1565 = vmatpush1.bf16.xpose.msra.mxu0 0
  %1566 = vmatprep.mubr.bf16.mxu0 0
  %1567 = vmatmul.mubr.bf16.gmra.mrb[0].mxu0 %v1529
  %v1568 = vpop.f32.mrb[0].mxu0
  %v1569 = vadd.f32 %v486, %v1568
  %v1570 = vpop.f32.mrb[0].mxu0
  %v1571 = vpop.f32.mrb[0].mxu0
  %v1572 = vadd.f32 %v487, %v1571
  %v1573 = vpop.f32.mrb[0].mxu0
  %1574 = vdwg.mxu0
  %1575 = vrot.lane.b32.xlu0 %v474, 112
  %v1576 = vpop.permute.xlu0 %1575
  %1577 = vrot.lane.b32.xlu0 %v474, 80
  %v1578 = vpop.permute.xlu0 %1577
  %v1580 = vsel %vm515, %v1576, 0
  %v1583 = vsel %vm515, %v1578, 0
  %1585 = vmatprep.subr.bf16.mxu0 0
  %1586 = vmatpush1.bf16.xpose.msra.mxu0 %v1583
  %1587 = vmatprep.subr.bf16.mxu0 0
  %1588 = vmatpush1.bf16.xpose.msra.mxu0 0
  %1589 = vmatprep.subr.bf16.mxu0 0
  %1590 = vmatpush1.bf16.xpose.msra.mxu0 0
  %1591 = vmatprep.subr.bf16.mxu0 0
  %1592 = vmatpush1.bf16.xpose.msra.mxu0 0
  %1593 = vmatprep.subr.bf16.mxu0 0
  %1594 = vmatpush1.bf16.xpose.msra.mxu0 0
  %1595 = vmatprep.subr.bf16.mxu0 0
  %1596 = vmatpush1.bf16.xpose.msra.mxu0 0
  %1597 = vmatprep.subr.bf16.mxu0 0
  %1598 = vmatpush1.bf16.xpose.msra.mxu0 0
  %1599 = vmatprep.subr.bf16.mxu0 0
  %1600 = vmatpush1.bf16.xpose.msra.mxu0 0
  %1601 = vmatprep.subr.bf16.mxu0 0
  %1602 = vmatpush1.bf16.xpose.msra.mxu0 0
  %1603 = vmatprep.subr.bf16.mxu0 0
  %1604 = vmatpush1.bf16.xpose.msra.mxu0 0
  %1605 = vmatprep.subr.bf16.mxu0 0
  %1606 = vmatpush1.bf16.xpose.msra.mxu0 0
  %1607 = vmatprep.subr.bf16.mxu0 0
  %1608 = vmatpush1.bf16.xpose.msra.mxu0 0
  %1609 = vmatprep.subr.bf16.mxu0 0
  %1610 = vmatpush1.bf16.xpose.msra.mxu0 0
  %1611 = vmatprep.subr.bf16.mxu0 0
  %1612 = vmatpush1.bf16.xpose.msra.mxu0 0
  %1613 = vmatprep.subr.bf16.mxu0 0
  %1614 = vmatpush1.bf16.xpose.msra.mxu0 0
  %1615 = vmatprep.subr.bf16.mxu0 0
  %1616 = vmatpush1.bf16.xpose.msra.mxu0 0
  %1617 = vmatprep.mubr.bf16.mxu0 0
  %1618 = vmatmul.mubr.bf16.gmra.mrb[0].mxu0 %v1580
  %v1619 = vpop.f32.mrb[0].mxu0
  %v1620 = vadd.f32 %v490, %v1619
  %v1621 = vpop.f32.mrb[0].mxu0
  %v1622 = vpop.f32.mrb[0].mxu0
  %v1623 = vadd.f32 %v491, %v1622
  %v1624 = vpop.f32.mrb[0].mxu0
  %1625 = vdwg.mxu0
  %1626 = vrot.lane.b32.xlu0 %v475, 112
  %v1627 = vpop.permute.xlu0 %1626
  %1628 = vrot.lane.b32.xlu0 %v475, 80
  %v1629 = vpop.permute.xlu0 %1628
  %v1631 = vsel %vm515, %v1627, 0
  %v1634 = vsel %vm515, %v1629, 0
  %1636 = vmatprep.subr.bf16.mxu0 0
  %1637 = vmatpush1.bf16.xpose.msra.mxu0 %v1634
  %1638 = vmatprep.subr.bf16.mxu0 0
  %1639 = vmatpush1.bf16.xpose.msra.mxu0 0
  %1640 = vmatprep.subr.bf16.mxu0 0
  %1641 = vmatpush1.bf16.xpose.msra.mxu0 0
  %1642 = vmatprep.subr.bf16.mxu0 0
  %1643 = vmatpush1.bf16.xpose.msra.mxu0 0
  %1644 = vmatprep.subr.bf16.mxu0 0
  %1645 = vmatpush1.bf16.xpose.msra.mxu0 0
  %1646 = vmatprep.subr.bf16.mxu0 0
  %1647 = vmatpush1.bf16.xpose.msra.mxu0 0
  %1648 = vmatprep.subr.bf16.mxu0 0
  %1649 = vmatpush1.bf16.xpose.msra.mxu0 0
  %1650 = vmatprep.subr.bf16.mxu0 0
  %1651 = vmatpush1.bf16.xpose.msra.mxu0 0
  %1652 = vmatprep.subr.bf16.mxu0 0
  %1653 = vmatpush1.bf16.xpose.msra.mxu0 0
  %1654 = vmatprep.subr.bf16.mxu0 0
  %1655 = vmatpush1.bf16.xpose.msra.mxu0 0
  %1656 = vmatprep.subr.bf16.mxu0 0
  %1657 = vmatpush1.bf16.xpose.msra.mxu0 0
  %1658 = vmatprep.subr.bf16.mxu0 0
  %1659 = vmatpush1.bf16.xpose.msra.mxu0 0
  %1660 = vmatprep.subr.bf16.mxu0 0
  %1661 = vmatpush1.bf16.xpose.msra.mxu0 0
  %1662 = vmatprep.subr.bf16.mxu0 0
  %1663 = vmatpush1.bf16.xpose.msra.mxu0 0
  %1664 = vmatprep.subr.bf16.mxu0 0
  %1665 = vmatpush1.bf16.xpose.msra.mxu0 0
  %1666 = vmatprep.subr.bf16.mxu0 0
  %1667 = vmatpush1.bf16.xpose.msra.mxu0 0
  %1668 = vmatprep.mubr.bf16.mxu0 0
  %1669 = vmatmul.mubr.bf16.gmra.mrb[0].mxu0 %v1631
  %v1670 = vpop.f32.mrb[0].mxu0
  %v1671 = vadd.f32 %v494, %v1670
  %v1672 = vpop.f32.mrb[0].mxu0
  %v1673 = vpop.f32.mrb[0].mxu0
  %v1674 = vadd.f32 %v495, %v1673
  %v1675 = vpop.f32.mrb[0].mxu0
  %1676 = vdwg.mxu0
  %1677 = vrot.lane.b32.xlu0 %v476, 112
  %v1678 = vpop.permute.xlu0 %1677
  %1679 = vrot.lane.b32.xlu0 %v476, 80
  %v1680 = vpop.permute.xlu0 %1679
  %v1682 = vsel %vm515, %v1678, 0
  %v1685 = vsel %vm515, %v1680, 0
  %1687 = vmatprep.subr.bf16.mxu0 0
  %1688 = vmatpush1.bf16.xpose.msra.mxu0 %v1685
  %1689 = vmatprep.subr.bf16.mxu0 0
  %1690 = vmatpush1.bf16.xpose.msra.mxu0 0
  %1691 = vmatprep.subr.bf16.mxu0 0
  %1692 = vmatpush1.bf16.xpose.msra.mxu0 0
  %1693 = vmatprep.subr.bf16.mxu0 0
  %1694 = vmatpush1.bf16.xpose.msra.mxu0 0
  %1695 = vmatprep.subr.bf16.mxu0 0
  %1696 = vmatpush1.bf16.xpose.msra.mxu0 0
  %1697 = vmatprep.subr.bf16.mxu0 0
  %1698 = vmatpush1.bf16.xpose.msra.mxu0 0
  %1699 = vmatprep.subr.bf16.mxu0 0
  %1700 = vmatpush1.bf16.xpose.msra.mxu0 0
  %1701 = vmatprep.subr.bf16.mxu0 0
  %1702 = vmatpush1.bf16.xpose.msra.mxu0 0
  %1703 = vmatprep.subr.bf16.mxu0 0
  %1704 = vmatpush1.bf16.xpose.msra.mxu0 0
  %1705 = vmatprep.subr.bf16.mxu0 0
  %1706 = vmatpush1.bf16.xpose.msra.mxu0 0
  %1707 = vmatprep.subr.bf16.mxu0 0
  %1708 = vmatpush1.bf16.xpose.msra.mxu0 0
  %1709 = vmatprep.subr.bf16.mxu0 0
  %1710 = vmatpush1.bf16.xpose.msra.mxu0 0
  %1711 = vmatprep.subr.bf16.mxu0 0
  %1712 = vmatpush1.bf16.xpose.msra.mxu0 0
  %1713 = vmatprep.subr.bf16.mxu0 0
  %1714 = vmatpush1.bf16.xpose.msra.mxu0 0
  %1715 = vmatprep.subr.bf16.mxu0 0
  %1716 = vmatpush1.bf16.xpose.msra.mxu0 0
  %1717 = vmatprep.subr.bf16.mxu0 0
  %1718 = vmatpush1.bf16.xpose.msra.mxu0 0
  %1719 = vmatprep.mubr.bf16.mxu0 0
  %1720 = vmatmul.mubr.bf16.gmra.mrb[0].mxu0 %v1682
  %v1721 = vpop.f32.mrb[0].mxu0
  %v1722 = vadd.f32 %v498, %v1721
  %v1723 = vpop.f32.mrb[0].mxu0
  %v1724 = vpop.f32.mrb[0].mxu0
  %v1725 = vadd.f32 %v499, %v1724
  %v1726 = vpop.f32.mrb[0].mxu0
  %1727 = vdwg.mxu0
  %1728 = vrot.lane.b32.xlu0 %v477, 112
  %v1729 = vpop.permute.xlu0 %1728
  %1730 = vrot.lane.b32.xlu0 %v477, 80
  %v1731 = vpop.permute.xlu0 %1730
  %v1733 = vsel %vm515, %v1729, 0
  %v1736 = vsel %vm515, %v1731, 0
  %1738 = vmatprep.subr.bf16.mxu0 0
  %1739 = vmatpush1.bf16.xpose.msra.mxu0 %v1736
  %1740 = vmatprep.subr.bf16.mxu0 0
  %1741 = vmatpush1.bf16.xpose.msra.mxu0 0
  %1742 = vmatprep.subr.bf16.mxu0 0
  %1743 = vmatpush1.bf16.xpose.msra.mxu0 0
  %1744 = vmatprep.subr.bf16.mxu0 0
  %1745 = vmatpush1.bf16.xpose.msra.mxu0 0
  %1746 = vmatprep.subr.bf16.mxu0 0
  %1747 = vmatpush1.bf16.xpose.msra.mxu0 0
  %1748 = vmatprep.subr.bf16.mxu0 0
  %1749 = vmatpush1.bf16.xpose.msra.mxu0 0
  %1750 = vmatprep.subr.bf16.mxu0 0
  %1751 = vmatpush1.bf16.xpose.msra.mxu0 0
  %1752 = vmatprep.subr.bf16.mxu0 0
  %1753 = vmatpush1.bf16.xpose.msra.mxu0 0
  %1754 = vmatprep.subr.bf16.mxu0 0
  %1755 = vmatpush1.bf16.xpose.msra.mxu0 0
  %1756 = vmatprep.subr.bf16.mxu0 0
  %1757 = vmatpush1.bf16.xpose.msra.mxu0 0
  %1758 = vmatprep.subr.bf16.mxu0 0
  %1759 = vmatpush1.bf16.xpose.msra.mxu0 0
  %1760 = vmatprep.subr.bf16.mxu0 0
  %1761 = vmatpush1.bf16.xpose.msra.mxu0 0
  %1762 = vmatprep.subr.bf16.mxu0 0
  %1763 = vmatpush1.bf16.xpose.msra.mxu0 0
  %1764 = vmatprep.subr.bf16.mxu0 0
  %1765 = vmatpush1.bf16.xpose.msra.mxu0 0
  %1766 = vmatprep.subr.bf16.mxu0 0
  %1767 = vmatpush1.bf16.xpose.msra.mxu0 0
  %1768 = vmatprep.subr.bf16.mxu0 0
  %1769 = vmatpush1.bf16.xpose.msra.mxu0 0
  %1770 = vmatprep.mubr.bf16.mxu0 0
  %1771 = vmatmul.mubr.bf16.gmra.mrb[0].mxu0 %v1733
  %v1772 = vpop.f32.mrb[0].mxu0
  %v1773 = vadd.f32 %v502, %v1772
  %v1774 = vpop.f32.mrb[0].mxu0
  %v1775 = vpop.f32.mrb[0].mxu0
  %v1776 = vadd.f32 %v503, %v1775
  %v1777 = vpop.f32.mrb[0].mxu0
  %1778 = vdwg.mxu0
  %1779 = vrot.lane.b32.xlu0 %v478, 112
  %v1780 = vpop.permute.xlu0 %1779
  %1781 = vrot.lane.b32.xlu0 %v478, 80
  %v1782 = vpop.permute.xlu0 %1781
  %v1784 = vsel %vm515, %v1780, 0
  %v1787 = vsel %vm515, %v1782, 0
  %1789 = vmatprep.subr.bf16.mxu0 0
  %1790 = vmatpush1.bf16.xpose.msra.mxu0 %v1787
  %1791 = vmatprep.subr.bf16.mxu0 0
  %1792 = vmatpush1.bf16.xpose.msra.mxu0 0
  %1793 = vmatprep.subr.bf16.mxu0 0
  %1794 = vmatpush1.bf16.xpose.msra.mxu0 0
  %1795 = vmatprep.subr.bf16.mxu0 0
  %1796 = vmatpush1.bf16.xpose.msra.mxu0 0
  %1797 = vmatprep.subr.bf16.mxu0 0
  %1798 = vmatpush1.bf16.xpose.msra.mxu0 0
  %1799 = vmatprep.subr.bf16.mxu0 0
  %1800 = vmatpush1.bf16.xpose.msra.mxu0 0
  %1801 = vmatprep.subr.bf16.mxu0 0
  %1802 = vmatpush1.bf16.xpose.msra.mxu0 0
  %1803 = vmatprep.subr.bf16.mxu0 0
  %1804 = vmatpush1.bf16.xpose.msra.mxu0 0
  %1805 = vmatprep.subr.bf16.mxu0 0
  %1806 = vmatpush1.bf16.xpose.msra.mxu0 0
  %1807 = vmatprep.subr.bf16.mxu0 0
  %1808 = vmatpush1.bf16.xpose.msra.mxu0 0
  %1809 = vmatprep.subr.bf16.mxu0 0
  %1810 = vmatpush1.bf16.xpose.msra.mxu0 0
  %1811 = vmatprep.subr.bf16.mxu0 0
  %1812 = vmatpush1.bf16.xpose.msra.mxu0 0
  %1813 = vmatprep.subr.bf16.mxu0 0
  %1814 = vmatpush1.bf16.xpose.msra.mxu0 0
  %1815 = vmatprep.subr.bf16.mxu0 0
  %1816 = vmatpush1.bf16.xpose.msra.mxu0 0
  %1817 = vmatprep.subr.bf16.mxu0 0
  %1818 = vmatpush1.bf16.xpose.msra.mxu0 0
  %1819 = vmatprep.subr.bf16.mxu0 0
  %1820 = vmatpush1.bf16.xpose.msra.mxu0 0
  %1821 = vmatprep.mubr.bf16.mxu0 0
  %1822 = vmatmul.mubr.bf16.gmra.mrb[0].mxu0 %v1784
  %v1823 = vpop.f32.mrb[0].mxu0
  %v1824 = vadd.f32 %v506, %v1823
  %v1825 = vpop.f32.mrb[0].mxu0
  %v1826 = vpop.f32.mrb[0].mxu0
  %v1827 = vadd.f32 %v507, %v1826
  %v1828 = vpop.f32.mrb[0].mxu0
  %1829 = vdwg.mxu0
  %1830 = vrot.lane.b32.xlu0 %v479, 112
  %v1831 = vpop.permute.xlu0 %1830
  %1832 = vrot.lane.b32.xlu0 %v479, 80
  %v1833 = vpop.permute.xlu0 %1832
  %v1835 = vsel %vm515, %v1831, 0
  %v1838 = vsel %vm515, %v1833, 0
  %1840 = vmatprep.subr.bf16.mxu0 0
  %1841 = vmatpush1.bf16.xpose.msra.mxu0 %v1838
  %1842 = vmatprep.subr.bf16.mxu0 0
  %1843 = vmatpush1.bf16.xpose.msra.mxu0 0
  %1844 = vmatprep.subr.bf16.mxu0 0
  %1845 = vmatpush1.bf16.xpose.msra.mxu0 0
  %1846 = vmatprep.subr.bf16.mxu0 0
  %1847 = vmatpush1.bf16.xpose.msra.mxu0 0
  %1848 = vmatprep.subr.bf16.mxu0 0
  %1849 = vmatpush1.bf16.xpose.msra.mxu0 0
  %1850 = vmatprep.subr.bf16.mxu0 0
  %1851 = vmatpush1.bf16.xpose.msra.mxu0 0
  %1852 = vmatprep.subr.bf16.mxu0 0
  %1853 = vmatpush1.bf16.xpose.msra.mxu0 0
  %1854 = vmatprep.subr.bf16.mxu0 0
  %1855 = vmatpush1.bf16.xpose.msra.mxu0 0
  %1856 = vmatprep.subr.bf16.mxu0 0
  %1857 = vmatpush1.bf16.xpose.msra.mxu0 0
  %1858 = vmatprep.subr.bf16.mxu0 0
  %1859 = vmatpush1.bf16.xpose.msra.mxu0 0
  %1860 = vmatprep.subr.bf16.mxu0 0
  %1861 = vmatpush1.bf16.xpose.msra.mxu0 0
  %1862 = vmatprep.subr.bf16.mxu0 0
  %1863 = vmatpush1.bf16.xpose.msra.mxu0 0
  %1864 = vmatprep.subr.bf16.mxu0 0
  %1865 = vmatpush1.bf16.xpose.msra.mxu0 0
  %1866 = vmatprep.subr.bf16.mxu0 0
  %1867 = vmatpush1.bf16.xpose.msra.mxu0 0
  %1868 = vmatprep.subr.bf16.mxu0 0
  %1869 = vmatpush1.bf16.xpose.msra.mxu0 0
  %1870 = vmatprep.subr.bf16.mxu0 0
  %1871 = vmatpush1.bf16.xpose.msra.mxu0 0
  %1872 = vmatprep.mubr.bf16.mxu0 0
  %1873 = vmatmul.mubr.bf16.gmra.mrb[0].mxu0 %v1835
  %v1874 = vpop.f32.mrb[0].mxu0
  %v1875 = vadd.f32 %v510, %v1874
  %v1876 = vpop.f32.mrb[0].mxu0
  %v1877 = vpop.f32.mrb[0].mxu0
  %v1878 = vadd.f32 %v511, %v1877
  %v1879 = vpop.f32.mrb[0].mxu0
  %1880 = vdwg.mxu0
  %v1881 = vsel %vm515, %v1518, -inf
  %1882 = vmax.xlane.f32.xlu0 %v1881
  %v1883 = vpop.xlane.xlu0 %1882
  %v1884 = vsel %vm515, %v1521, -inf
  %1885 = vmax.xlane.f32.xlu0 %v1884
  %v1886 = vpop.xlane.xlu0 %1885
  %v1887 = vsel %vm515, %v1569, -inf
  %1888 = vmax.xlane.f32.xlu0 %v1887
  %v1889 = vpop.xlane.xlu0 %1888
  %v1890 = vsel %vm515, %v1572, -inf
  %1891 = vmax.xlane.f32.xlu0 %v1890
  %v1892 = vpop.xlane.xlu0 %1891
  %v1893 = vsel %vm515, %v1620, -inf
  %1894 = vmax.xlane.f32.xlu0 %v1893
  %v1895 = vpop.xlane.xlu0 %1894
  %v1896 = vsel %vm515, %v1623, -inf
  %1897 = vmax.xlane.f32.xlu0 %v1896
  %v1898 = vpop.xlane.xlu0 %1897
  %v1899 = vsel %vm515, %v1671, -inf
  %1900 = vmax.xlane.f32.xlu0 %v1899
  %v1901 = vpop.xlane.xlu0 %1900
  %v1902 = vsel %vm515, %v1674, -inf
  %1903 = vmax.xlane.f32.xlu0 %v1902
  %v1904 = vpop.xlane.xlu0 %1903
  %v1905 = vsel %vm515, %v1722, -inf
  %1906 = vmax.xlane.f32.xlu0 %v1905
  %v1907 = vpop.xlane.xlu0 %1906
  %v1908 = vsel %vm515, %v1725, -inf
  %1909 = vmax.xlane.f32.xlu0 %v1908
  %v1910 = vpop.xlane.xlu0 %1909
  %v1911 = vsel %vm515, %v1773, -inf
  %1912 = vmax.xlane.f32.xlu0 %v1911
  %v1913 = vpop.xlane.xlu0 %1912
  %v1914 = vsel %vm515, %v1776, -inf
  %1915 = vmax.xlane.f32.xlu0 %v1914
  %v1916 = vpop.xlane.xlu0 %1915
  %v1917 = vsel %vm515, %v1824, -inf
  %1918 = vmax.xlane.f32.xlu0 %v1917
  %v1919 = vpop.xlane.xlu0 %1918
  %v1920 = vsel %vm515, %v1827, -inf
  %1921 = vmax.xlane.f32.xlu0 %v1920
  %v1922 = vpop.xlane.xlu0 %1921
  %v1923 = vsel %vm515, %v1875, -inf
  %1924 = vmax.xlane.f32.xlu0 %v1923
  %v1925 = vpop.xlane.xlu0 %1924
  %v1926 = vsel %vm515, %v1878, -inf
  %1927 = vmax.xlane.f32.xlu0 %v1926
  %v1928 = vpop.xlane.xlu0 %1927
  %v1929 = vsub.f32 %v1518, %v1883
  %v1930 = vsub.f32 %v1521, %v1886
  %v1931 = vsub.f32 %v1569, %v1889
  %v1932 = vsub.f32 %v1572, %v1892
  %v1933 = vsub.f32 %v1620, %v1895
  %v1934 = vsub.f32 %v1623, %v1898
  %v1935 = vsub.f32 %v1671, %v1901
  %v1936 = vsub.f32 %v1674, %v1904
  %v1937 = vsub.f32 %v1722, %v1907
  %v1938 = vsub.f32 %v1725, %v1910
  %v1939 = vsub.f32 %v1773, %v1913
  %v1940 = vsub.f32 %v1776, %v1916
  %v1941 = vsub.f32 %v1824, %v1919
  %v1942 = vsub.f32 %v1827, %v1922
  %v1943 = vsub.f32 %v1875, %v1925
  %v1944 = vsub.f32 %v1878, %v1928
  %v1945 = vmul.f32 %v1929, 1.442695
  %v1946 = vpow.pop %v1945
  %v1947 = vmul.f32 %v1930, 1.442695
  %v1948 = vpow.pop %v1947
  %v1949 = vmul.f32 %v1931, 1.442695
  %v1950 = vpow.pop %v1949
  %v1951 = vmul.f32 %v1932, 1.442695
  %v1952 = vpow.pop %v1951
  %v1953 = vmul.f32 %v1933, 1.442695
  %v1954 = vpow.pop %v1953
  %v1955 = vmul.f32 %v1934, 1.442695
  %v1956 = vpow.pop %v1955
  %v1957 = vmul.f32 %v1935, 1.442695
  %v1958 = vpow.pop %v1957
  %v1959 = vmul.f32 %v1936, 1.442695
  %v1960 = vpow.pop %v1959
  %v1961 = vmul.f32 %v1937, 1.442695
  %v1962 = vpow.pop %v1961
  %v1963 = vmul.f32 %v1938, 1.442695
  %v1964 = vpow.pop %v1963
  %v1965 = vmul.f32 %v1939, 1.442695
  %v1966 = vpow.pop %v1965
  %v1967 = vmul.f32 %v1940, 1.442695
  %v1968 = vpow.pop %v1967
  %v1969 = vmul.f32 %v1941, 1.442695
  %v1970 = vpow.pop %v1969
  %v1971 = vmul.f32 %v1942, 1.442695
  %v1972 = vpow.pop %v1971
  %v1973 = vmul.f32 %v1943, 1.442695
  %v1974 = vpow.pop %v1973
  %v1975 = vmul.f32 %v1944, 1.442695
  %v1976 = vpow.pop %v1975
  %v1977 = vsel %vm515, %v1946, 0.0
  %1978 = vadd.xlane.f32.xlu0 %v1977
  %v1979 = vpop.xlane.xlu0 %1978
  %v1980 = vsel %vm515, %v1948, 0.0
  %1981 = vadd.xlane.f32.xlu0 %v1980
  %v1982 = vpop.xlane.xlu0 %1981
  %v1983 = vsel %vm515, %v1950, 0.0
  %1984 = vadd.xlane.f32.xlu0 %v1983
  %v1985 = vpop.xlane.xlu0 %1984
  %v1986 = vsel %vm515, %v1952, 0.0
  %1987 = vadd.xlane.f32.xlu0 %v1986
  %v1988 = vpop.xlane.xlu0 %1987
  %v1989 = vsel %vm515, %v1954, 0.0
  %1990 = vadd.xlane.f32.xlu0 %v1989
  %v1991 = vpop.xlane.xlu0 %1990
  %v1992 = vsel %vm515, %v1956, 0.0
  %1993 = vadd.xlane.f32.xlu0 %v1992
  %v1994 = vpop.xlane.xlu0 %1993
  %v1995 = vsel %vm515, %v1958, 0.0
  %1996 = vadd.xlane.f32.xlu0 %v1995
  %v1997 = vpop.xlane.xlu0 %1996
  %v1998 = vsel %vm515, %v1960, 0.0
  %1999 = vadd.xlane.f32.xlu0 %v1998
  %v2000 = vpop.xlane.xlu0 %1999
  %v2001 = vsel %vm515, %v1962, 0.0
  %2002 = vadd.xlane.f32.xlu0 %v2001
  %v2003 = vpop.xlane.xlu0 %2002
  %v2004 = vsel %vm515, %v1964, 0.0
  %2005 = vadd.xlane.f32.xlu0 %v2004
  %v2006 = vpop.xlane.xlu0 %2005
  %v2007 = vsel %vm515, %v1966, 0.0
  %2008 = vadd.xlane.f32.xlu0 %v2007
  %v2009 = vpop.xlane.xlu0 %2008
  %v2010 = vsel %vm515, %v1968, 0.0
  %2011 = vadd.xlane.f32.xlu0 %v2010
  %v2012 = vpop.xlane.xlu0 %2011
  %v2013 = vsel %vm515, %v1970, 0.0
  %2014 = vadd.xlane.f32.xlu0 %v2013
  %v2015 = vpop.xlane.xlu0 %2014
  %v2016 = vsel %vm515, %v1972, 0.0
  %2017 = vadd.xlane.f32.xlu0 %v2016
  %v2018 = vpop.xlane.xlu0 %2017
  %v2019 = vsel %vm515, %v1974, 0.0
  %2020 = vadd.xlane.f32.xlu0 %v2019
  %v2021 = vpop.xlane.xlu0 %2020
  %v2022 = vsel %vm515, %v1976, 0.0
  %2023 = vadd.xlane.f32.xlu0 %v2022
  %v2024 = vpop.xlane.xlu0 %2023
  %v2025 = vrcp.pop %v1979
  %v2026 = vmul.f32 %v1946, %v2025
  %v2027 = vrcp.pop %v1982
  %v2028 = vmul.f32 %v1948, %v2027
  %v2029 = vrcp.pop %v1985
  %v2030 = vmul.f32 %v1950, %v2029
  %v2031 = vrcp.pop %v1988
  %v2032 = vmul.f32 %v1952, %v2031
  %v2033 = vrcp.pop %v1991
  %v2034 = vmul.f32 %v1954, %v2033
  %v2035 = vrcp.pop %v1994
  %v2036 = vmul.f32 %v1956, %v2035
  %v2037 = vrcp.pop %v1997
  %v2038 = vmul.f32 %v1958, %v2037
  %v2039 = vrcp.pop %v2000
  %v2040 = vmul.f32 %v1960, %v2039
  %v2041 = vrcp.pop %v2003
  %v2042 = vmul.f32 %v1962, %v2041
  %v2043 = vrcp.pop %v2006
  %v2044 = vmul.f32 %v1964, %v2043
  %v2045 = vrcp.pop %v2009
  %v2046 = vmul.f32 %v1966, %v2045
  %v2047 = vrcp.pop %v2012
  %v2048 = vmul.f32 %v1968, %v2047
  %v2049 = vrcp.pop %v2015
  %v2050 = vmul.f32 %v1970, %v2049
  %v2051 = vrcp.pop %v2018
  %v2052 = vmul.f32 %v1972, %v2051
  %v2053 = vrcp.pop %v2021
  %v2054 = vmul.f32 %v1974, %v2053
  %v2055 = vrcp.pop %v2024
  %v2056 = vmul.f32 %v1976, %v2055
  %v2057 = vpack.c.bf16 %v2028, %v2026
  %v2058 = vpack.c.bf16 %v2032, %v2030
  %v2059 = vpack.c.bf16 %v2036, %v2034
  %v2060 = vpack.c.bf16 %v2040, %v2038
  %v2061 = vpack.c.bf16 %v2044, %v2042
  %v2062 = vpack.c.bf16 %v2048, %v2046
  %v2063 = vpack.c.bf16 %v2052, %v2050
  %v2064 = vpack.c.bf16 %v2056, %v2054
  %2065 = vrot.lane.b32.xlu0 %v472, 48
  %v2066 = vpop.permute.xlu0 %2065
  %v2069 = vsel %vm515, %v2057, 0
  %2071 = vmatprep.subr.bf16.mxu0 0
  %2072 = vmatpush1.bf16.msra.mxu0 %v2066
  %2073 = vmatprep.subr.bf16.mxu0 0
  %2074 = vmatpush1.bf16.msra.mxu0 0
  %2075 = vmatprep.subr.bf16.mxu0 0
  %2076 = vmatpush1.bf16.msra.mxu0 0
  %2077 = vmatprep.subr.bf16.mxu0 0
  %2078 = vmatpush1.bf16.msra.mxu0 0
  %2079 = vmatprep.subr.bf16.mxu0 0
  %2080 = vmatpush1.bf16.msra.mxu0 0
  %2081 = vmatprep.subr.bf16.mxu0 0
  %2082 = vmatpush1.bf16.msra.mxu0 0
  %2083 = vmatprep.subr.bf16.mxu0 0
  %2084 = vmatpush1.bf16.msra.mxu0 0
  %2085 = vmatprep.subr.bf16.mxu0 0
  %2086 = vmatpush1.bf16.msra.mxu0 0
  %2087 = vmatprep.subr.bf16.mxu0 0
  %2088 = vmatpush1.bf16.msra.mxu0 0
  %2089 = vmatprep.subr.bf16.mxu0 0
  %2090 = vmatpush1.bf16.msra.mxu0 0
  %2091 = vmatprep.subr.bf16.mxu0 0
  %2092 = vmatpush1.bf16.msra.mxu0 0
  %2093 = vmatprep.subr.bf16.mxu0 0
  %2094 = vmatpush1.bf16.msra.mxu0 0
  %2095 = vmatprep.subr.bf16.mxu0 0
  %2096 = vmatpush1.bf16.msra.mxu0 0
  %2097 = vmatprep.subr.bf16.mxu0 0
  %2098 = vmatpush1.bf16.msra.mxu0 0
  %2099 = vmatprep.subr.bf16.mxu0 0
  %2100 = vmatpush1.bf16.msra.mxu0 0
  %2101 = vmatprep.subr.bf16.mxu0 0
  %2102 = vmatpush1.bf16.msra.mxu0 0
  %2103 = vmatprep.mubr.bf16.mxu0 0
  %2104 = vmatmul.mubr.bf16.gmra.mrb[0].mxu0 %v2069
  %v2105 = vpop.f32.mrb[0].mxu0
  %v2106 = vadd.f32 0.0, %v2105
  %v2107 = vpop.f32.mrb[0].mxu0
  %v2108 = vpop.f32.mrb[0].mxu0
  %v2109 = vadd.f32 0.0, %v2108
  %v2110 = vpop.f32.mrb[0].mxu0
  %2111 = vdwg.mxu0
  %2112 = vrot.lane.b32.xlu0 %v473, 48
  %v2113 = vpop.permute.xlu0 %2112
  %v2116 = vsel %vm515, %v2058, 0
  %2118 = vmatprep.subr.bf16.mxu0 0
  %2119 = vmatpush1.bf16.msra.mxu0 %v2113
  %2120 = vmatprep.subr.bf16.mxu0 0
  %2121 = vmatpush1.bf16.msra.mxu0 0
  %2122 = vmatprep.subr.bf16.mxu0 0
  %2123 = vmatpush1.bf16.msra.mxu0 0
  %2124 = vmatprep.subr.bf16.mxu0 0
  %2125 = vmatpush1.bf16.msra.mxu0 0
  %2126 = vmatprep.subr.bf16.mxu0 0
  %2127 = vmatpush1.bf16.msra.mxu0 0
  %2128 = vmatprep.subr.bf16.mxu0 0
  %2129 = vmatpush1.bf16.msra.mxu0 0
  %2130 = vmatprep.subr.bf16.mxu0 0
  %2131 = vmatpush1.bf16.msra.mxu0 0
  %2132 = vmatprep.subr.bf16.mxu0 0
  %2133 = vmatpush1.bf16.msra.mxu0 0
  %2134 = vmatprep.subr.bf16.mxu0 0
  %2135 = vmatpush1.bf16.msra.mxu0 0
  %2136 = vmatprep.subr.bf16.mxu0 0
  %2137 = vmatpush1.bf16.msra.mxu0 0
  %2138 = vmatprep.subr.bf16.mxu0 0
  %2139 = vmatpush1.bf16.msra.mxu0 0
  %2140 = vmatprep.subr.bf16.mxu0 0
  %2141 = vmatpush1.bf16.msra.mxu0 0
  %2142 = vmatprep.subr.bf16.mxu0 0
  %2143 = vmatpush1.bf16.msra.mxu0 0
  %2144 = vmatprep.subr.bf16.mxu0 0
  %2145 = vmatpush1.bf16.msra.mxu0 0
  %2146 = vmatprep.subr.bf16.mxu0 0
  %2147 = vmatpush1.bf16.msra.mxu0 0
  %2148 = vmatprep.subr.bf16.mxu0 0
  %2149 = vmatpush1.bf16.msra.mxu0 0
  %2150 = vmatprep.mubr.bf16.mxu0 0
  %2151 = vmatmul.mubr.bf16.gmra.mrb[0].mxu0 %v2116
  %v2152 = vpop.f32.mrb[0].mxu0
  %v2153 = vadd.f32 0.0, %v2152
  %v2154 = vpop.f32.mrb[0].mxu0
  %v2155 = vpop.f32.mrb[0].mxu0
  %v2156 = vadd.f32 0.0, %v2155
  %v2157 = vpop.f32.mrb[0].mxu0
  %2158 = vdwg.mxu0
  %2159 = vrot.lane.b32.xlu0 %v474, 48
  %v2160 = vpop.permute.xlu0 %2159
  %v2163 = vsel %vm515, %v2059, 0
  %2165 = vmatprep.subr.bf16.mxu0 0
  %2166 = vmatpush1.bf16.msra.mxu0 %v2160
  %2167 = vmatprep.subr.bf16.mxu0 0
  %2168 = vmatpush1.bf16.msra.mxu0 0
  %2169 = vmatprep.subr.bf16.mxu0 0
  %2170 = vmatpush1.bf16.msra.mxu0 0
  %2171 = vmatprep.subr.bf16.mxu0 0
  %2172 = vmatpush1.bf16.msra.mxu0 0
  %2173 = vmatprep.subr.bf16.mxu0 0
  %2174 = vmatpush1.bf16.msra.mxu0 0
  %2175 = vmatprep.subr.bf16.mxu0 0
  %2176 = vmatpush1.bf16.msra.mxu0 0
  %2177 = vmatprep.subr.bf16.mxu0 0
  %2178 = vmatpush1.bf16.msra.mxu0 0
  %2179 = vmatprep.subr.bf16.mxu0 0
  %2180 = vmatpush1.bf16.msra.mxu0 0
  %2181 = vmatprep.subr.bf16.mxu0 0
  %2182 = vmatpush1.bf16.msra.mxu0 0
  %2183 = vmatprep.subr.bf16.mxu0 0
  %2184 = vmatpush1.bf16.msra.mxu0 0
  %2185 = vmatprep.subr.bf16.mxu0 0
  %2186 = vmatpush1.bf16.msra.mxu0 0
  %2187 = vmatprep.subr.bf16.mxu0 0
  %2188 = vmatpush1.bf16.msra.mxu0 0
  %2189 = vmatprep.subr.bf16.mxu0 0
  %2190 = vmatpush1.bf16.msra.mxu0 0
  %2191 = vmatprep.subr.bf16.mxu0 0
  %2192 = vmatpush1.bf16.msra.mxu0 0
  %2193 = vmatprep.subr.bf16.mxu0 0
  %2194 = vmatpush1.bf16.msra.mxu0 0
  %2195 = vmatprep.subr.bf16.mxu0 0
  %2196 = vmatpush1.bf16.msra.mxu0 0
  %2197 = vmatprep.mubr.bf16.mxu0 0
  %2198 = vmatmul.mubr.bf16.gmra.mrb[0].mxu0 %v2163
  %v2199 = vpop.f32.mrb[0].mxu0
  %v2200 = vadd.f32 0.0, %v2199
  %v2201 = vpop.f32.mrb[0].mxu0
  %v2202 = vpop.f32.mrb[0].mxu0
  %v2203 = vadd.f32 0.0, %v2202
  %v2204 = vpop.f32.mrb[0].mxu0
  %2205 = vdwg.mxu0
  %2206 = vrot.lane.b32.xlu0 %v475, 48
  %v2207 = vpop.permute.xlu0 %2206
  %v2210 = vsel %vm515, %v2060, 0
  %2212 = vmatprep.subr.bf16.mxu0 0
  %2213 = vmatpush1.bf16.msra.mxu0 %v2207
  %2214 = vmatprep.subr.bf16.mxu0 0
  %2215 = vmatpush1.bf16.msra.mxu0 0
  %2216 = vmatprep.subr.bf16.mxu0 0
  %2217 = vmatpush1.bf16.msra.mxu0 0
  %2218 = vmatprep.subr.bf16.mxu0 0
  %2219 = vmatpush1.bf16.msra.mxu0 0
  %2220 = vmatprep.subr.bf16.mxu0 0
  %2221 = vmatpush1.bf16.msra.mxu0 0
  %2222 = vmatprep.subr.bf16.mxu0 0
  %2223 = vmatpush1.bf16.msra.mxu0 0
  %2224 = vmatprep.subr.bf16.mxu0 0
  %2225 = vmatpush1.bf16.msra.mxu0 0
  %2226 = vmatprep.subr.bf16.mxu0 0
  %2227 = vmatpush1.bf16.msra.mxu0 0
  %2228 = vmatprep.subr.bf16.mxu0 0
  %2229 = vmatpush1.bf16.msra.mxu0 0
  %2230 = vmatprep.subr.bf16.mxu0 0
  %2231 = vmatpush1.bf16.msra.mxu0 0
  %2232 = vmatprep.subr.bf16.mxu0 0
  %2233 = vmatpush1.bf16.msra.mxu0 0
  %2234 = vmatprep.subr.bf16.mxu0 0
  %2235 = vmatpush1.bf16.msra.mxu0 0
  %2236 = vmatprep.subr.bf16.mxu0 0
  %2237 = vmatpush1.bf16.msra.mxu0 0
  %2238 = vmatprep.subr.bf16.mxu0 0
  %2239 = vmatpush1.bf16.msra.mxu0 0
  %2240 = vmatprep.subr.bf16.mxu0 0
  %2241 = vmatpush1.bf16.msra.mxu0 0
  %2242 = vmatprep.subr.bf16.mxu0 0
  %2243 = vmatpush1.bf16.msra.mxu0 0
  %2244 = vmatprep.mubr.bf16.mxu0 0
  %2245 = vmatmul.mubr.bf16.gmra.mrb[0].mxu0 %v2210
  %v2246 = vpop.f32.mrb[0].mxu0
  %v2247 = vadd.f32 0.0, %v2246
  %v2248 = vpop.f32.mrb[0].mxu0
  %v2249 = vpop.f32.mrb[0].mxu0
  %v2250 = vadd.f32 0.0, %v2249
  %v2251 = vpop.f32.mrb[0].mxu0
  %2252 = vdwg.mxu0
  %2253 = vrot.lane.b32.xlu0 %v476, 48
  %v2254 = vpop.permute.xlu0 %2253
  %v2257 = vsel %vm515, %v2061, 0
  %2259 = vmatprep.subr.bf16.mxu0 0
  %2260 = vmatpush1.bf16.msra.mxu0 %v2254
  %2261 = vmatprep.subr.bf16.mxu0 0
  %2262 = vmatpush1.bf16.msra.mxu0 0
  %2263 = vmatprep.subr.bf16.mxu0 0
  %2264 = vmatpush1.bf16.msra.mxu0 0
  %2265 = vmatprep.subr.bf16.mxu0 0
  %2266 = vmatpush1.bf16.msra.mxu0 0
  %2267 = vmatprep.subr.bf16.mxu0 0
  %2268 = vmatpush1.bf16.msra.mxu0 0
  %2269 = vmatprep.subr.bf16.mxu0 0
  %2270 = vmatpush1.bf16.msra.mxu0 0
  %2271 = vmatprep.subr.bf16.mxu0 0
  %2272 = vmatpush1.bf16.msra.mxu0 0
  %2273 = vmatprep.subr.bf16.mxu0 0
  %2274 = vmatpush1.bf16.msra.mxu0 0
  %2275 = vmatprep.subr.bf16.mxu0 0
  %2276 = vmatpush1.bf16.msra.mxu0 0
  %2277 = vmatprep.subr.bf16.mxu0 0
  %2278 = vmatpush1.bf16.msra.mxu0 0
  %2279 = vmatprep.subr.bf16.mxu0 0
  %2280 = vmatpush1.bf16.msra.mxu0 0
  %2281 = vmatprep.subr.bf16.mxu0 0
  %2282 = vmatpush1.bf16.msra.mxu0 0
  %2283 = vmatprep.subr.bf16.mxu0 0
  %2284 = vmatpush1.bf16.msra.mxu0 0
  %2285 = vmatprep.subr.bf16.mxu0 0
  %2286 = vmatpush1.bf16.msra.mxu0 0
  %2287 = vmatprep.subr.bf16.mxu0 0
  %2288 = vmatpush1.bf16.msra.mxu0 0
  %2289 = vmatprep.subr.bf16.mxu0 0
  %2290 = vmatpush1.bf16.msra.mxu0 0
  %2291 = vmatprep.mubr.bf16.mxu0 0
  %2292 = vmatmul.mubr.bf16.gmra.mrb[0].mxu0 %v2257
  %v2293 = vpop.f32.mrb[0].mxu0
  %v2294 = vadd.f32 0.0, %v2293
  %v2295 = vpop.f32.mrb[0].mxu0
  %v2296 = vpop.f32.mrb[0].mxu0
  %v2297 = vadd.f32 0.0, %v2296
  %v2298 = vpop.f32.mrb[0].mxu0
  %2299 = vdwg.mxu0
  %2300 = vrot.lane.b32.xlu0 %v477, 48
  %v2301 = vpop.permute.xlu0 %2300
  %v2304 = vsel %vm515, %v2062, 0
  %2306 = vmatprep.subr.bf16.mxu0 0
  %2307 = vmatpush1.bf16.msra.mxu0 %v2301
  %2308 = vmatprep.subr.bf16.mxu0 0
  %2309 = vmatpush1.bf16.msra.mxu0 0
  %2310 = vmatprep.subr.bf16.mxu0 0
  %2311 = vmatpush1.bf16.msra.mxu0 0
  %2312 = vmatprep.subr.bf16.mxu0 0
  %2313 = vmatpush1.bf16.msra.mxu0 0
  %2314 = vmatprep.subr.bf16.mxu0 0
  %2315 = vmatpush1.bf16.msra.mxu0 0
  %2316 = vmatprep.subr.bf16.mxu0 0
  %2317 = vmatpush1.bf16.msra.mxu0 0
  %2318 = vmatprep.subr.bf16.mxu0 0
  %2319 = vmatpush1.bf16.msra.mxu0 0
  %2320 = vmatprep.subr.bf16.mxu0 0
  %2321 = vmatpush1.bf16.msra.mxu0 0
  %2322 = vmatprep.subr.bf16.mxu0 0
  %2323 = vmatpush1.bf16.msra.mxu0 0
  %2324 = vmatprep.subr.bf16.mxu0 0
  %2325 = vmatpush1.bf16.msra.mxu0 0
  %2326 = vmatprep.subr.bf16.mxu0 0
  %2327 = vmatpush1.bf16.msra.mxu0 0
  %2328 = vmatprep.subr.bf16.mxu0 0
  %2329 = vmatpush1.bf16.msra.mxu0 0
  %2330 = vmatprep.subr.bf16.mxu0 0
  %2331 = vmatpush1.bf16.msra.mxu0 0
  %2332 = vmatprep.subr.bf16.mxu0 0
  %2333 = vmatpush1.bf16.msra.mxu0 0
  %2334 = vmatprep.subr.bf16.mxu0 0
  %2335 = vmatpush1.bf16.msra.mxu0 0
  %2336 = vmatprep.subr.bf16.mxu0 0
  %2337 = vmatpush1.bf16.msra.mxu0 0
  %2338 = vmatprep.mubr.bf16.mxu0 0
  %2339 = vmatmul.mubr.bf16.gmra.mrb[0].mxu0 %v2304
  %v2340 = vpop.f32.mrb[0].mxu0
  %v2341 = vadd.f32 0.0, %v2340
  %v2342 = vpop.f32.mrb[0].mxu0
  %v2343 = vpop.f32.mrb[0].mxu0
  %v2344 = vadd.f32 0.0, %v2343
  %v2345 = vpop.f32.mrb[0].mxu0
  %2346 = vdwg.mxu0
  %2347 = vrot.lane.b32.xlu0 %v478, 48
  %v2348 = vpop.permute.xlu0 %2347
  %v2351 = vsel %vm515, %v2063, 0
  %2353 = vmatprep.subr.bf16.mxu0 0
  %2354 = vmatpush1.bf16.msra.mxu0 %v2348
  %2355 = vmatprep.subr.bf16.mxu0 0
  %2356 = vmatpush1.bf16.msra.mxu0 0
  %2357 = vmatprep.subr.bf16.mxu0 0
  %2358 = vmatpush1.bf16.msra.mxu0 0
  %2359 = vmatprep.subr.bf16.mxu0 0
  %2360 = vmatpush1.bf16.msra.mxu0 0
  %2361 = vmatprep.subr.bf16.mxu0 0
  %2362 = vmatpush1.bf16.msra.mxu0 0
  %2363 = vmatprep.subr.bf16.mxu0 0
  %2364 = vmatpush1.bf16.msra.mxu0 0
  %2365 = vmatprep.subr.bf16.mxu0 0
  %2366 = vmatpush1.bf16.msra.mxu0 0
  %2367 = vmatprep.subr.bf16.mxu0 0
  %2368 = vmatpush1.bf16.msra.mxu0 0
  %2369 = vmatprep.subr.bf16.mxu0 0
  %2370 = vmatpush1.bf16.msra.mxu0 0
  %2371 = vmatprep.subr.bf16.mxu0 0
  %2372 = vmatpush1.bf16.msra.mxu0 0
  %2373 = vmatprep.subr.bf16.mxu0 0
  %2374 = vmatpush1.bf16.msra.mxu0 0
  %2375 = vmatprep.subr.bf16.mxu0 0
  %2376 = vmatpush1.bf16.msra.mxu0 0
  %2377 = vmatprep.subr.bf16.mxu0 0
  %2378 = vmatpush1.bf16.msra.mxu0 0
  %2379 = vmatprep.subr.bf16.mxu0 0
  %2380 = vmatpush1.bf16.msra.mxu0 0
  %2381 = vmatprep.subr.bf16.mxu0 0
  %2382 = vmatpush1.bf16.msra.mxu0 0
  %2383 = vmatprep.subr.bf16.mxu0 0
  %2384 = vmatpush1.bf16.msra.mxu0 0
  %2385 = vmatprep.mubr.bf16.mxu0 0
  %2386 = vmatmul.mubr.bf16.gmra.mrb[0].mxu0 %v2351
  %v2387 = vpop.f32.mrb[0].mxu0
  %v2388 = vadd.f32 0.0, %v2387
  %v2389 = vpop.f32.mrb[0].mxu0
  %v2390 = vpop.f32.mrb[0].mxu0
  %v2391 = vadd.f32 0.0, %v2390
  %v2392 = vpop.f32.mrb[0].mxu0
  %2393 = vdwg.mxu0
  %2394 = vrot.lane.b32.xlu0 %v479, 48
  %v2395 = vpop.permute.xlu0 %2394
  %v2398 = vsel %vm515, %v2064, 0
  %2400 = vmatprep.subr.bf16.mxu0 0
  %2401 = vmatpush1.bf16.msra.mxu0 %v2395
  %2402 = vmatprep.subr.bf16.mxu0 0
  %2403 = vmatpush1.bf16.msra.mxu0 0
  %2404 = vmatprep.subr.bf16.mxu0 0
  %2405 = vmatpush1.bf16.msra.mxu0 0
  %2406 = vmatprep.subr.bf16.mxu0 0
  %2407 = vmatpush1.bf16.msra.mxu0 0
  %2408 = vmatprep.subr.bf16.mxu0 0
  %2409 = vmatpush1.bf16.msra.mxu0 0
  %2410 = vmatprep.subr.bf16.mxu0 0
  %2411 = vmatpush1.bf16.msra.mxu0 0
  %2412 = vmatprep.subr.bf16.mxu0 0
  %2413 = vmatpush1.bf16.msra.mxu0 0
  %2414 = vmatprep.subr.bf16.mxu0 0
  %2415 = vmatpush1.bf16.msra.mxu0 0
  %2416 = vmatprep.subr.bf16.mxu0 0
  %2417 = vmatpush1.bf16.msra.mxu0 0
  %2418 = vmatprep.subr.bf16.mxu0 0
  %2419 = vmatpush1.bf16.msra.mxu0 0
  %2420 = vmatprep.subr.bf16.mxu0 0
  %2421 = vmatpush1.bf16.msra.mxu0 0
  %2422 = vmatprep.subr.bf16.mxu0 0
  %2423 = vmatpush1.bf16.msra.mxu0 0
  %2424 = vmatprep.subr.bf16.mxu0 0
  %2425 = vmatpush1.bf16.msra.mxu0 0
  %2426 = vmatprep.subr.bf16.mxu0 0
  %2427 = vmatpush1.bf16.msra.mxu0 0
  %2428 = vmatprep.subr.bf16.mxu0 0
  %2429 = vmatpush1.bf16.msra.mxu0 0
  %2430 = vmatprep.subr.bf16.mxu0 0
  %2431 = vmatpush1.bf16.msra.mxu0 0
  %2432 = vmatprep.mubr.bf16.mxu0 0
  %2433 = vmatmul.mubr.bf16.gmra.mrb[0].mxu0 %v2398
  %v2434 = vpop.f32.mrb[0].mxu0
  %v2435 = vadd.f32 0.0, %v2434
  %v2436 = vpop.f32.mrb[0].mxu0
  %v2437 = vpop.f32.mrb[0].mxu0
  %v2438 = vadd.f32 0.0, %v2437
  %v2439 = vpop.f32.mrb[0].mxu0
  %2440 = vdwg.mxu0
  %2457 = vrot.lane.b32.xlu0 %v2106, 16
  %v2458 = vpop.permute.xlu0 %2457
  %2459 = vrot.lane.b32.xlu0 %v2109, 16
  %v2460 = vpop.permute.xlu0 %2459
  %2461 = vrot.lane.b32.xlu0 %v2153, 16
  %v2462 = vpop.permute.xlu0 %2461
  %2463 = vrot.lane.b32.xlu0 %v2156, 16
  %v2464 = vpop.permute.xlu0 %2463
  %2465 = vrot.lane.b32.xlu0 %v2200, 16
  %v2466 = vpop.permute.xlu0 %2465
  %2467 = vrot.lane.b32.xlu0 %v2203, 16
  %v2468 = vpop.permute.xlu0 %2467
  %2469 = vrot.lane.b32.xlu0 %v2247, 16
  %v2470 = vpop.permute.xlu0 %2469
  %2471 = vrot.lane.b32.xlu0 %v2250, 16
  %v2472 = vpop.permute.xlu0 %2471
  %2473 = vrot.lane.b32.xlu0 %v2294, 16
  %v2474 = vpop.permute.xlu0 %2473
  %2475 = vrot.lane.b32.xlu0 %v2297, 16
  %v2476 = vpop.permute.xlu0 %2475
  %2477 = vrot.lane.b32.xlu0 %v2341, 16
  %v2478 = vpop.permute.xlu0 %2477
  %2479 = vrot.lane.b32.xlu0 %v2344, 16
  %v2480 = vpop.permute.xlu0 %2479
  %2481 = vrot.lane.b32.xlu0 %v2388, 16
  %v2482 = vpop.permute.xlu0 %2481
  %2483 = vrot.lane.b32.xlu0 %v2391, 16
  %v2484 = vpop.permute.xlu0 %2483
  %2485 = vrot.lane.b32.xlu0 %v2435, 16
  %v2486 = vpop.permute.xlu0 %2485
  %2487 = vrot.lane.b32.xlu0 %v2438, 16
  %v2488 = vpop.permute.xlu0 %2487
  %v2505 = vsel %vm515, %v1138, %v2458
  %v2506 = vsel %vm515, %v1141, %v2460
  %v2507 = vsel %vm515, %v1185, %v2462
  %v2508 = vsel %vm515, %v1188, %v2464
  %v2509 = vsel %vm515, %v1232, %v2466
  %v2510 = vsel %vm515, %v1235, %v2468
  %v2511 = vsel %vm515, %v1279, %v2470
  %v2512 = vsel %vm515, %v1282, %v2472
  %v2513 = vsel %vm515, %v1326, %v2474
  %v2514 = vsel %vm515, %v1329, %v2476
  %v2515 = vsel %vm515, %v1373, %v2478
  %v2516 = vsel %vm515, %v1376, %v2480
  %v2517 = vsel %vm515, %v1420, %v2482
  %v2518 = vsel %vm515, %v1423, %v2484
  %v2519 = vsel %vm515, %v1467, %v2486
  %v2520 = vsel %vm515, %v1470, %v2488
  %v2521 = vpack.c.bf16 %v2506, %v2505
  %v2522 = vpack.c.bf16 %v2508, %v2507
  %v2523 = vpack.c.bf16 %v2510, %v2509
  %v2524 = vpack.c.bf16 %v2512, %v2511
  %v2525 = vpack.c.bf16 %v2514, %v2513
  %v2526 = vpack.c.bf16 %v2516, %v2515
  %v2527 = vpack.c.bf16 %v2518, %v2517
  %v2528 = vpack.c.bf16 %v2520, %v2519
  %v2529 = vld [vmem:[%s6] sm:$0xf]
  %v2530 = vld [vmem:[%s6 + $0x4] sm:$0xf]
  %v2531 = vld [vmem:[%s6 + $0x8] sm:$0xf]
  %v2532 = vld [vmem:[%s6 + $0xc] sm:$0xf]
  %v2533 = vld [vmem:[%s7] sm:$0x1]
  %v2535 = vlaneseq
  %v2536 = vshrl.u32 %v2535, 7
  %v2537 = vsub.s32 0, %v2536
  %v2538 = vrot.slane %v2533, %v2537
  %v2544 = vunpack.c.l.b16 %v2529
  %v2545 = vunpack.c.l.b16 %v2530
  %v2546 = vunpack.c.l.b16 %v2531
  %v2547 = vunpack.c.l.b16 %v2532
  %v2548 = vpack.c.b16 %v2545, %v2544
  %v2549 = vpack.c.b16 %v2547, %v2546
  %v2553 = vsel %vm64, %v2521, 0
  %v2556 = vsel %vm64, %v2522, 0
  %v2559 = vsel %vm64, %v2523, 0
  %v2562 = vsel %vm64, %v2524, 0
  %v2565 = vsel %vm64, %v2525, 0
  %v2568 = vsel %vm64, %v2526, 0
  %v2571 = vsel %vm64, %v2527, 0
  %v2574 = vsel %vm64, %v2528, 0
  %2576 = vmatprep.subr.bf16.mxu0 0
  %2577 = vmatpush1.bf16.msra.mxu0 %v2548
  %2578 = vmatprep.subr.bf16.mxu0 0
  %2579 = vmatpush1.bf16.msra.mxu0 %v2549
  %2580 = vmatprep.subr.bf16.mxu0 0
  %2581 = vmatpush1.bf16.msra.mxu0 0
  %2582 = vmatprep.subr.bf16.mxu0 0
  %2583 = vmatpush1.bf16.msra.mxu0 0
  %2584 = vmatprep.subr.bf16.mxu0 0
  %2585 = vmatpush1.bf16.msra.mxu0 0
  %2586 = vmatprep.subr.bf16.mxu0 0
  %2587 = vmatpush1.bf16.msra.mxu0 0
  %2588 = vmatprep.subr.bf16.mxu0 0
  %2589 = vmatpush1.bf16.msra.mxu0 0
  %2590 = vmatprep.subr.bf16.mxu0 0
  %2591 = vmatpush1.bf16.msra.mxu0 0
  %2592 = vmatprep.subr.bf16.mxu0 0
  %2593 = vmatpush1.bf16.msra.mxu0 0
  %2594 = vmatprep.subr.bf16.mxu0 0
  %2595 = vmatpush1.bf16.msra.mxu0 0
  %2596 = vmatprep.subr.bf16.mxu0 0
  %2597 = vmatpush1.bf16.msra.mxu0 0
  %2598 = vmatprep.subr.bf16.mxu0 0
  %2599 = vmatpush1.bf16.msra.mxu0 0
  %2600 = vmatprep.subr.bf16.mxu0 0
  %2601 = vmatpush1.bf16.msra.mxu0 0
  %2602 = vmatprep.subr.bf16.mxu0 0
  %2603 = vmatpush1.bf16.msra.mxu0 0
  %2604 = vmatprep.subr.bf16.mxu0 0
  %2605 = vmatpush1.bf16.msra.mxu0 0
  %2606 = vmatprep.subr.bf16.mxu0 0
  %2607 = vmatpush1.bf16.msra.mxu0 0
  %2608 = vmatprep.mubr.bf16.mxu0 0
  %2609 = vmatmul.mubr.bf16.gmra.mrb[0].mxu0 %v2553
  %v2610 = vpop.f32.mrb[0].mxu0
  %v2611 = vadd.f32 %v2538, %v2610
  %v2612 = vpop.f32.mrb[0].mxu0
  %v2613 = vpop.f32.mrb[0].mxu0
  %v2614 = vadd.f32 %v2538, %v2613
  %v2615 = vpop.f32.mrb[0].mxu0
  %2616 = vmatprep.mubr.bf16.mxu0 0
  %2617 = vmatmul.mubr.bf16.gmra.mrb[0].mxu0 %v2556
  %v2618 = vpop.f32.mrb[0].mxu0
  %v2619 = vadd.f32 %v2538, %v2618
  %v2620 = vpop.f32.mrb[0].mxu0
  %v2621 = vpop.f32.mrb[0].mxu0
  %v2622 = vadd.f32 %v2538, %v2621
  %v2623 = vpop.f32.mrb[0].mxu0
  %2624 = vmatprep.mubr.bf16.mxu0 0
  %2625 = vmatmul.mubr.bf16.gmra.mrb[0].mxu0 %v2559
  %v2626 = vpop.f32.mrb[0].mxu0
  %v2627 = vadd.f32 %v2538, %v2626
  %v2628 = vpop.f32.mrb[0].mxu0
  %v2629 = vpop.f32.mrb[0].mxu0
  %v2630 = vadd.f32 %v2538, %v2629
  %v2631 = vpop.f32.mrb[0].mxu0
  %2632 = vmatprep.mubr.bf16.mxu0 0
  %2633 = vmatmul.mubr.bf16.gmra.mrb[0].mxu0 %v2562
  %v2634 = vpop.f32.mrb[0].mxu0
  %v2635 = vadd.f32 %v2538, %v2634
  %v2636 = vpop.f32.mrb[0].mxu0
  %v2637 = vpop.f32.mrb[0].mxu0
  %v2638 = vadd.f32 %v2538, %v2637
  %v2639 = vpop.f32.mrb[0].mxu0
  %2640 = vmatprep.mubr.bf16.mxu0 0
  %2641 = vmatmul.mubr.bf16.gmra.mrb[0].mxu0 %v2565
  %v2642 = vpop.f32.mrb[0].mxu0
  %v2643 = vadd.f32 %v2538, %v2642
  %v2644 = vpop.f32.mrb[0].mxu0
  %v2645 = vpop.f32.mrb[0].mxu0
  %v2646 = vadd.f32 %v2538, %v2645
  %v2647 = vpop.f32.mrb[0].mxu0
  %2648 = vmatprep.mubr.bf16.mxu0 0
  %2649 = vmatmul.mubr.bf16.gmra.mrb[0].mxu0 %v2568
  %v2650 = vpop.f32.mrb[0].mxu0
  %v2651 = vadd.f32 %v2538, %v2650
  %v2652 = vpop.f32.mrb[0].mxu0
  %v2653 = vpop.f32.mrb[0].mxu0
  %v2654 = vadd.f32 %v2538, %v2653
  %v2655 = vpop.f32.mrb[0].mxu0
  %2656 = vmatprep.mubr.bf16.mxu0 0
  %2657 = vmatmul.mubr.bf16.gmra.mrb[0].mxu0 %v2571
  %v2658 = vpop.f32.mrb[0].mxu0
  %v2659 = vadd.f32 %v2538, %v2658
  %v2660 = vpop.f32.mrb[0].mxu0
  %v2661 = vpop.f32.mrb[0].mxu0
  %v2662 = vadd.f32 %v2538, %v2661
  %v2663 = vpop.f32.mrb[0].mxu0
  %2664 = vmatprep.mubr.bf16.mxu0 0
  %2665 = vmatmul.mubr.bf16.gmra.mrb[0].mxu0 %v2574
  %v2666 = vpop.f32.mrb[0].mxu0
  %v2667 = vadd.f32 %v2538, %v2666
  %v2668 = vpop.f32.mrb[0].mxu0
  %v2669 = vpop.f32.mrb[0].mxu0
  %v2670 = vadd.f32 %v2538, %v2669
  %v2671 = vpop.f32.mrb[0].mxu0
  %2672 = vdwg.mxu0
  %v2673 = vadd.f32 %v48, %v2611
  %v2674 = vadd.f32 %v49, %v2614
  %v2675 = vadd.f32 %v50, %v2619
  %v2676 = vadd.f32 %v51, %v2622
  %v2677 = vadd.f32 %v52, %v2627
  %v2678 = vadd.f32 %v53, %v2630
  %v2679 = vadd.f32 %v54, %v2635
  %v2680 = vadd.f32 %v55, %v2638
  %v2681 = vadd.f32 %v56, %v2643
  %v2682 = vadd.f32 %v57, %v2646
  %v2683 = vadd.f32 %v58, %v2651
  %v2684 = vadd.f32 %v59, %v2654
  %v2685 = vadd.f32 %v60, %v2659
  %v2686 = vadd.f32 %v61, %v2662
  %v2687 = vadd.f32 %v62, %v2667
  %v2688 = vadd.f32 %v63, %v2670
  %v2689 = vsel %vm64, %v2673, 0.0
  %2690 = vadd.xlane.f32.xlu0 %v2689
  %v2691 = vpop.xlane.xlu0 %2690
  %v2692 = vsel %vm64, %v2674, 0.0
  %2693 = vadd.xlane.f32.xlu0 %v2692
  %v2694 = vpop.xlane.xlu0 %2693
  %v2695 = vsel %vm64, %v2675, 0.0
  %2696 = vadd.xlane.f32.xlu0 %v2695
  %v2697 = vpop.xlane.xlu0 %2696
  %v2698 = vsel %vm64, %v2676, 0.0
  %2699 = vadd.xlane.f32.xlu0 %v2698
  %v2700 = vpop.xlane.xlu0 %2699
  %v2701 = vsel %vm64, %v2677, 0.0
  %2702 = vadd.xlane.f32.xlu0 %v2701
  %v2703 = vpop.xlane.xlu0 %2702
  %v2704 = vsel %vm64, %v2678, 0.0
  %2705 = vadd.xlane.f32.xlu0 %v2704
  %v2706 = vpop.xlane.xlu0 %2705
  %v2707 = vsel %vm64, %v2679, 0.0
  %2708 = vadd.xlane.f32.xlu0 %v2707
  %v2709 = vpop.xlane.xlu0 %2708
  %v2710 = vsel %vm64, %v2680, 0.0
  %2711 = vadd.xlane.f32.xlu0 %v2710
  %v2712 = vpop.xlane.xlu0 %2711
  %v2713 = vsel %vm64, %v2681, 0.0
  %2714 = vadd.xlane.f32.xlu0 %v2713
  %v2715 = vpop.xlane.xlu0 %2714
  %v2716 = vsel %vm64, %v2682, 0.0
  %2717 = vadd.xlane.f32.xlu0 %v2716
  %v2718 = vpop.xlane.xlu0 %2717
  %v2719 = vsel %vm64, %v2683, 0.0
  %2720 = vadd.xlane.f32.xlu0 %v2719
  %v2721 = vpop.xlane.xlu0 %2720
  %v2722 = vsel %vm64, %v2684, 0.0
  %2723 = vadd.xlane.f32.xlu0 %v2722
  %v2724 = vpop.xlane.xlu0 %2723
  %v2725 = vsel %vm64, %v2685, 0.0
  %2726 = vadd.xlane.f32.xlu0 %v2725
  %v2727 = vpop.xlane.xlu0 %2726
  %v2728 = vsel %vm64, %v2686, 0.0
  %2729 = vadd.xlane.f32.xlu0 %v2728
  %v2730 = vpop.xlane.xlu0 %2729
  %v2731 = vsel %vm64, %v2687, 0.0
  %2732 = vadd.xlane.f32.xlu0 %v2731
  %v2733 = vpop.xlane.xlu0 %2732
  %v2734 = vsel %vm64, %v2688, 0.0
  %2735 = vadd.xlane.f32.xlu0 %v2734
  %v2736 = vpop.xlane.xlu0 %2735
  %v2737 = vmul.f32 %v2691, %v113
  %v2738 = vmul.f32 %v2694, %v113
  %v2739 = vmul.f32 %v2697, %v113
  %v2740 = vmul.f32 %v2700, %v113
  %v2741 = vmul.f32 %v2703, %v113
  %v2742 = vmul.f32 %v2706, %v113
  %v2743 = vmul.f32 %v2709, %v113
  %v2744 = vmul.f32 %v2712, %v113
  %v2745 = vmul.f32 %v2715, %v113
  %v2746 = vmul.f32 %v2718, %v113
  %v2747 = vmul.f32 %v2721, %v113
  %v2748 = vmul.f32 %v2724, %v113
  %v2749 = vmul.f32 %v2727, %v113
  %v2750 = vmul.f32 %v2730, %v113
  %v2751 = vmul.f32 %v2733, %v113
  %v2752 = vmul.f32 %v2736, %v113
  %v2753 = vsub.f32 %v2673, %v2737
  %v2754 = vsub.f32 %v2674, %v2738
  %v2755 = vsub.f32 %v2675, %v2739
  %v2756 = vsub.f32 %v2676, %v2740
  %v2757 = vsub.f32 %v2677, %v2741
  %v2758 = vsub.f32 %v2678, %v2742
  %v2759 = vsub.f32 %v2679, %v2743
  %v2760 = vsub.f32 %v2680, %v2744
  %v2761 = vsub.f32 %v2681, %v2745
  %v2762 = vsub.f32 %v2682, %v2746
  %v2763 = vsub.f32 %v2683, %v2747
  %v2764 = vsub.f32 %v2684, %v2748
  %v2765 = vsub.f32 %v2685, %v2749
  %v2766 = vsub.f32 %v2686, %v2750
  %v2767 = vsub.f32 %v2687, %v2751
  %v2768 = vsub.f32 %v2688, %v2752
  %v2769 = vmul.f32 %v2753, %v2753
  %v2770 = vmul.f32 %v2754, %v2754
  %v2771 = vmul.f32 %v2755, %v2755
  %v2772 = vmul.f32 %v2756, %v2756
  %v2773 = vmul.f32 %v2757, %v2757
  %v2774 = vmul.f32 %v2758, %v2758
  %v2775 = vmul.f32 %v2759, %v2759
  %v2776 = vmul.f32 %v2760, %v2760
  %v2777 = vmul.f32 %v2761, %v2761
  %v2778 = vmul.f32 %v2762, %v2762
  %v2779 = vmul.f32 %v2763, %v2763
  %v2780 = vmul.f32 %v2764, %v2764
  %v2781 = vmul.f32 %v2765, %v2765
  %v2782 = vmul.f32 %v2766, %v2766
  %v2783 = vmul.f32 %v2767, %v2767
  %v2784 = vmul.f32 %v2768, %v2768
  %v2785 = vsel %vm64, %v2769, 0.0
  %2786 = vadd.xlane.f32.xlu0 %v2785
  %v2787 = vpop.xlane.xlu0 %2786
  %v2788 = vsel %vm64, %v2770, 0.0
  %2789 = vadd.xlane.f32.xlu0 %v2788
  %v2790 = vpop.xlane.xlu0 %2789
  %v2791 = vsel %vm64, %v2771, 0.0
  %2792 = vadd.xlane.f32.xlu0 %v2791
  %v2793 = vpop.xlane.xlu0 %2792
  %v2794 = vsel %vm64, %v2772, 0.0
  %2795 = vadd.xlane.f32.xlu0 %v2794
  %v2796 = vpop.xlane.xlu0 %2795
  %v2797 = vsel %vm64, %v2773, 0.0
  %2798 = vadd.xlane.f32.xlu0 %v2797
  %v2799 = vpop.xlane.xlu0 %2798
  %v2800 = vsel %vm64, %v2774, 0.0
  %2801 = vadd.xlane.f32.xlu0 %v2800
  %v2802 = vpop.xlane.xlu0 %2801
  %v2803 = vsel %vm64, %v2775, 0.0
  %2804 = vadd.xlane.f32.xlu0 %v2803
  %v2805 = vpop.xlane.xlu0 %2804
  %v2806 = vsel %vm64, %v2776, 0.0
  %2807 = vadd.xlane.f32.xlu0 %v2806
  %v2808 = vpop.xlane.xlu0 %2807
  %v2809 = vsel %vm64, %v2777, 0.0
  %2810 = vadd.xlane.f32.xlu0 %v2809
  %v2811 = vpop.xlane.xlu0 %2810
  %v2812 = vsel %vm64, %v2778, 0.0
  %2813 = vadd.xlane.f32.xlu0 %v2812
  %v2814 = vpop.xlane.xlu0 %2813
  %v2815 = vsel %vm64, %v2779, 0.0
  %2816 = vadd.xlane.f32.xlu0 %v2815
  %v2817 = vpop.xlane.xlu0 %2816
  %v2818 = vsel %vm64, %v2780, 0.0
  %2819 = vadd.xlane.f32.xlu0 %v2818
  %v2820 = vpop.xlane.xlu0 %2819
  %v2821 = vsel %vm64, %v2781, 0.0
  %2822 = vadd.xlane.f32.xlu0 %v2821
  %v2823 = vpop.xlane.xlu0 %2822
  %v2824 = vsel %vm64, %v2782, 0.0
  %2825 = vadd.xlane.f32.xlu0 %v2824
  %v2826 = vpop.xlane.xlu0 %2825
  %v2827 = vsel %vm64, %v2783, 0.0
  %2828 = vadd.xlane.f32.xlu0 %v2827
  %v2829 = vpop.xlane.xlu0 %2828
  %v2830 = vsel %vm64, %v2784, 0.0
  %2831 = vadd.xlane.f32.xlu0 %v2830
  %v2832 = vpop.xlane.xlu0 %2831
  %v2833 = vmul.f32 %v2787, %v113
  %v2834 = vmul.f32 %v2790, %v113
  %v2835 = vmul.f32 %v2793, %v113
  %v2836 = vmul.f32 %v2796, %v113
  %v2837 = vmul.f32 %v2799, %v113
  %v2838 = vmul.f32 %v2802, %v113
  %v2839 = vmul.f32 %v2805, %v113
  %v2840 = vmul.f32 %v2808, %v113
  %v2841 = vmul.f32 %v2811, %v113
  %v2842 = vmul.f32 %v2814, %v113
  %v2843 = vmul.f32 %v2817, %v113
  %v2844 = vmul.f32 %v2820, %v113
  %v2845 = vmul.f32 %v2823, %v113
  %v2846 = vmul.f32 %v2826, %v113
  %v2847 = vmul.f32 %v2829, %v113
  %v2848 = vmul.f32 %v2832, %v113
  %v2849 = vadd.f32 %v2833, 1e-05
  %v2850 = vadd.f32 %v2834, 1e-05
  %v2851 = vadd.f32 %v2835, 1e-05
  %v2852 = vadd.f32 %v2836, 1e-05
  %v2853 = vadd.f32 %v2837, 1e-05
  %v2854 = vadd.f32 %v2838, 1e-05
  %v2855 = vadd.f32 %v2839, 1e-05
  %v2856 = vadd.f32 %v2840, 1e-05
  %v2857 = vadd.f32 %v2841, 1e-05
  %v2858 = vadd.f32 %v2842, 1e-05
  %v2859 = vadd.f32 %v2843, 1e-05
  %v2860 = vadd.f32 %v2844, 1e-05
  %v2861 = vadd.f32 %v2845, 1e-05
  %v2862 = vadd.f32 %v2846, 1e-05
  %v2863 = vadd.f32 %v2847, 1e-05
  %v2864 = vadd.f32 %v2848, 1e-05
  %v2865 = vrsqrt.pop %v2849
  %v2866 = vrsqrt.pop %v2850
  %v2867 = vrsqrt.pop %v2851
  %v2868 = vrsqrt.pop %v2852
  %v2869 = vrsqrt.pop %v2853
  %v2870 = vrsqrt.pop %v2854
  %v2871 = vrsqrt.pop %v2855
  %v2872 = vrsqrt.pop %v2856
  %v2873 = vrsqrt.pop %v2857
  %v2874 = vrsqrt.pop %v2858
  %v2875 = vrsqrt.pop %v2859
  %v2876 = vrsqrt.pop %v2860
  %v2877 = vrsqrt.pop %v2861
  %v2878 = vrsqrt.pop %v2862
  %v2879 = vrsqrt.pop %v2863
  %v2880 = vrsqrt.pop %v2864
  %v2881 = vmul.f32 %v2753, %v2865
  %v2882 = vmul.f32 %v2754, %v2866
  %v2883 = vmul.f32 %v2755, %v2867
  %v2884 = vmul.f32 %v2756, %v2868
  %v2885 = vmul.f32 %v2757, %v2869
  %v2886 = vmul.f32 %v2758, %v2870
  %v2887 = vmul.f32 %v2759, %v2871
  %v2888 = vmul.f32 %v2760, %v2872
  %v2889 = vmul.f32 %v2761, %v2873
  %v2890 = vmul.f32 %v2762, %v2874
  %v2891 = vmul.f32 %v2763, %v2875
  %v2892 = vmul.f32 %v2764, %v2876
  %v2893 = vmul.f32 %v2765, %v2877
  %v2894 = vmul.f32 %v2766, %v2878
  %v2895 = vmul.f32 %v2767, %v2879
  %v2896 = vmul.f32 %v2768, %v2880
  %v2897 = vld [vmem:[%s8] sm:$0x1]
  %v2899 = vlaneseq
  %v2900 = vshrl.u32 %v2899, 7
  %v2901 = vsub.s32 0, %v2900
  %v2902 = vrot.slane %v2897, %v2901
  %v2904 = vmul.f32 %v2881, %v2902
  %v2905 = vmul.f32 %v2882, %v2902
  %v2906 = vmul.f32 %v2883, %v2902
  %v2907 = vmul.f32 %v2884, %v2902
  %v2908 = vmul.f32 %v2885, %v2902
  %v2909 = vmul.f32 %v2886, %v2902
  %v2910 = vmul.f32 %v2887, %v2902
  %v2911 = vmul.f32 %v2888, %v2902
  %v2912 = vmul.f32 %v2889, %v2902
  %v2913 = vmul.f32 %v2890, %v2902
  %v2914 = vmul.f32 %v2891, %v2902
  %v2915 = vmul.f32 %v2892, %v2902
  %v2916 = vmul.f32 %v2893, %v2902
  %v2917 = vmul.f32 %v2894, %v2902
  %v2918 = vmul.f32 %v2895, %v2902
  %v2919 = vmul.f32 %v2896, %v2902
  %v2920 = vld [vmem:[%s9] sm:$0x1]
  %v2922 = vlaneseq
  %v2923 = vshrl.u32 %v2922, 7
  %v2924 = vsub.s32 0, %v2923
  %v2925 = vrot.slane %v2920, %v2924
  %v2927 = vadd.f32 %v2904, %v2925
  %v2928 = vadd.f32 %v2905, %v2925
  %v2929 = vadd.f32 %v2906, %v2925
  %v2930 = vadd.f32 %v2907, %v2925
  %v2931 = vadd.f32 %v2908, %v2925
  %v2932 = vadd.f32 %v2909, %v2925
  %v2933 = vadd.f32 %v2910, %v2925
  %v2934 = vadd.f32 %v2911, %v2925
  %v2935 = vadd.f32 %v2912, %v2925
  %v2936 = vadd.f32 %v2913, %v2925
  %v2937 = vadd.f32 %v2914, %v2925
  %v2938 = vadd.f32 %v2915, %v2925
  %v2939 = vadd.f32 %v2916, %v2925
  %v2940 = vadd.f32 %v2917, %v2925
  %v2941 = vadd.f32 %v2918, %v2925
  %v2942 = vadd.f32 %v2919, %v2925
  %v2943 = vpack.c.bf16 %v2928, %v2927
  %v2944 = vpack.c.bf16 %v2930, %v2929
  %v2945 = vpack.c.bf16 %v2932, %v2931
  %v2946 = vpack.c.bf16 %v2934, %v2933
  %v2947 = vpack.c.bf16 %v2936, %v2935
  %v2948 = vpack.c.bf16 %v2938, %v2937
  %v2949 = vpack.c.bf16 %v2940, %v2939
  %v2950 = vpack.c.bf16 %v2942, %v2941
  %v2951 = vld [vmem:[%s10] sm:$0xf]
  %v2952 = vld [vmem:[%s10 + $0x4] sm:$0xf]
  %v2953 = vld [vmem:[%s10 + $0x8] sm:$0xf]
  %v2954 = vld [vmem:[%s10 + $0xc] sm:$0xf]
  %v2955 = vld [vmem:[%s11] sm:$0x1]
  %v2957 = vlaneseq
  %v2958 = vshrl.u32 %v2957, 7
  %v2959 = vsub.s32 0, %v2958
  %v2960 = vrot.slane %v2955, %v2959
  %v2966 = vunpack.c.l.b16 %v2951
  %v2967 = vunpack.c.l.b16 %v2952
  %v2968 = vunpack.c.l.b16 %v2953
  %v2969 = vunpack.c.l.b16 %v2954
  %v2970 = vpack.c.b16 %v2967, %v2966
  %v2971 = vpack.c.b16 %v2969, %v2968
  %v2975 = vsel %vm64, %v2943, 0
  %v2978 = vsel %vm64, %v2944, 0
  %v2981 = vsel %vm64, %v2945, 0
  %v2984 = vsel %vm64, %v2946, 0
  %v2987 = vsel %vm64, %v2947, 0
  %v2990 = vsel %vm64, %v2948, 0
  %v2993 = vsel %vm64, %v2949, 0
  %v2996 = vsel %vm64, %v2950, 0
  %2998 = vmatprep.subr.bf16.mxu0 0
  %2999 = vmatpush1.bf16.msra.mxu0 %v2970
  %3000 = vmatprep.subr.bf16.mxu0 0
  %3001 = vmatpush1.bf16.msra.mxu0 %v2971
  %3002 = vmatprep.subr.bf16.mxu0 0
  %3003 = vmatpush1.bf16.msra.mxu0 0
  %3004 = vmatprep.subr.bf16.mxu0 0
  %3005 = vmatpush1.bf16.msra.mxu0 0
  %3006 = vmatprep.subr.bf16.mxu0 0
  %3007 = vmatpush1.bf16.msra.mxu0 0
  %3008 = vmatprep.subr.bf16.mxu0 0
  %3009 = vmatpush1.bf16.msra.mxu0 0
  %3010 = vmatprep.subr.bf16.mxu0 0
  %3011 = vmatpush1.bf16.msra.mxu0 0
  %3012 = vmatprep.subr.bf16.mxu0 0
  %3013 = vmatpush1.bf16.msra.mxu0 0
  %3014 = vmatprep.subr.bf16.mxu0 0
  %3015 = vmatpush1.bf16.msra.mxu0 0
  %3016 = vmatprep.subr.bf16.mxu0 0
  %3017 = vmatpush1.bf16.msra.mxu0 0
  %3018 = vmatprep.subr.bf16.mxu0 0
  %3019 = vmatpush1.bf16.msra.mxu0 0
  %3020 = vmatprep.subr.bf16.mxu0 0
  %3021 = vmatpush1.bf16.msra.mxu0 0
  %3022 = vmatprep.subr.bf16.mxu0 0
  %3023 = vmatpush1.bf16.msra.mxu0 0
  %3024 = vmatprep.subr.bf16.mxu0 0
  %3025 = vmatpush1.bf16.msra.mxu0 0
  %3026 = vmatprep.subr.bf16.mxu0 0
  %3027 = vmatpush1.bf16.msra.mxu0 0
  %3028 = vmatprep.subr.bf16.mxu0 0
  %3029 = vmatpush1.bf16.msra.mxu0 0
  %3030 = vmatprep.mubr.bf16.mxu0 0
  %3031 = vmatmul.mubr.bf16.gmra.mrb[0].mxu0 %v2975
  %v3032 = vpop.f32.mrb[0].mxu0
  %v3033 = vadd.f32 %v2960, %v3032
  %v3034 = vpop.f32.mrb[0].mxu0
  %v3035 = vpop.f32.mrb[0].mxu0
  %v3036 = vadd.f32 %v2960, %v3035
  %v3037 = vpop.f32.mrb[0].mxu0
  %3038 = vmatprep.mubr.bf16.mxu0 0
  %3039 = vmatmul.mubr.bf16.gmra.mrb[0].mxu0 %v2978
  %v3040 = vpop.f32.mrb[0].mxu0
  %v3041 = vadd.f32 %v2960, %v3040
  %v3042 = vpop.f32.mrb[0].mxu0
  %v3043 = vpop.f32.mrb[0].mxu0
  %v3044 = vadd.f32 %v2960, %v3043
  %v3045 = vpop.f32.mrb[0].mxu0
  %3046 = vmatprep.mubr.bf16.mxu0 0
  %3047 = vmatmul.mubr.bf16.gmra.mrb[0].mxu0 %v2981
  %v3048 = vpop.f32.mrb[0].mxu0
  %v3049 = vadd.f32 %v2960, %v3048
  %v3050 = vpop.f32.mrb[0].mxu0
  %v3051 = vpop.f32.mrb[0].mxu0
  %v3052 = vadd.f32 %v2960, %v3051
  %v3053 = vpop.f32.mrb[0].mxu0
  %3054 = vmatprep.mubr.bf16.mxu0 0
  %3055 = vmatmul.mubr.bf16.gmra.mrb[0].mxu0 %v2984
  %v3056 = vpop.f32.mrb[0].mxu0
  %v3057 = vadd.f32 %v2960, %v3056
  %v3058 = vpop.f32.mrb[0].mxu0
  %v3059 = vpop.f32.mrb[0].mxu0
  %v3060 = vadd.f32 %v2960, %v3059
  %v3061 = vpop.f32.mrb[0].mxu0
  %3062 = vmatprep.mubr.bf16.mxu0 0
  %3063 = vmatmul.mubr.bf16.gmra.mrb[0].mxu0 %v2987
  %v3064 = vpop.f32.mrb[0].mxu0
  %v3065 = vadd.f32 %v2960, %v3064
  %v3066 = vpop.f32.mrb[0].mxu0
  %v3067 = vpop.f32.mrb[0].mxu0
  %v3068 = vadd.f32 %v2960, %v3067
  %v3069 = vpop.f32.mrb[0].mxu0
  %3070 = vmatprep.mubr.bf16.mxu0 0
  %3071 = vmatmul.mubr.bf16.gmra.mrb[0].mxu0 %v2990
  %v3072 = vpop.f32.mrb[0].mxu0
  %v3073 = vadd.f32 %v2960, %v3072
  %v3074 = vpop.f32.mrb[0].mxu0
  %v3075 = vpop.f32.mrb[0].mxu0
  %v3076 = vadd.f32 %v2960, %v3075
  %v3077 = vpop.f32.mrb[0].mxu0
  %3078 = vmatprep.mubr.bf16.mxu0 0
  %3079 = vmatmul.mubr.bf16.gmra.mrb[0].mxu0 %v2993
  %v3080 = vpop.f32.mrb[0].mxu0
  %v3081 = vadd.f32 %v2960, %v3080
  %v3082 = vpop.f32.mrb[0].mxu0
  %v3083 = vpop.f32.mrb[0].mxu0
  %v3084 = vadd.f32 %v2960, %v3083
  %v3085 = vpop.f32.mrb[0].mxu0
  %3086 = vmatprep.mubr.bf16.mxu0 0
  %3087 = vmatmul.mubr.bf16.gmra.mrb[0].mxu0 %v2996
  %v3088 = vpop.f32.mrb[0].mxu0
  %v3089 = vadd.f32 %v2960, %v3088
  %v3090 = vpop.f32.mrb[0].mxu0
  %v3091 = vpop.f32.mrb[0].mxu0
  %v3092 = vadd.f32 %v2960, %v3091
  %v3093 = vpop.f32.mrb[0].mxu0
  %3094 = vdwg.mxu0
  %v3095 = vand.u32 2147483647, %v3033
  %v3096 = vand.u32 2147483647, %v3036
  %v3097 = vand.u32 2147483647, %v3041
  %v3098 = vand.u32 2147483647, %v3044
  %v3099 = vand.u32 2147483647, %v3049
  %v3100 = vand.u32 2147483647, %v3052
  %v3101 = vand.u32 2147483647, %v3057
  %v3102 = vand.u32 2147483647, %v3060
  %v3103 = vand.u32 2147483647, %v3065
  %v3104 = vand.u32 2147483647, %v3068
  %v3105 = vand.u32 2147483647, %v3073
  %v3106 = vand.u32 2147483647, %v3076
  %v3107 = vand.u32 2147483647, %v3081
  %v3108 = vand.u32 2147483647, %v3084
  %v3109 = vand.u32 2147483647, %v3089
  %v3110 = vand.u32 2147483647, %v3092
  %v3111 = vmul.f32 %v3095, 0.70710677
  %v3112 = vmul.f32 %v3096, 0.70710677
  %v3113 = vmul.f32 %v3097, 0.70710677
  %v3114 = vmul.f32 %v3098, 0.70710677
  %v3115 = vmul.f32 %v3099, 0.70710677
  %v3116 = vmul.f32 %v3100, 0.70710677
  %v3117 = vmul.f32 %v3101, 0.70710677
  %v3118 = vmul.f32 %v3102, 0.70710677
  %v3119 = vmul.f32 %v3103, 0.70710677
  %v3120 = vmul.f32 %v3104, 0.70710677
  %v3121 = vmul.f32 %v3105, 0.70710677
  %v3122 = vmul.f32 %v3106, 0.70710677
  %v3123 = vmul.f32 %v3107, 0.70710677
  %v3124 = vmul.f32 %v3108, 0.70710677
  %v3125 = vmul.f32 %v3109, 0.70710677
  %v3126 = vmul.f32 %v3110, 0.70710677
  %v3127 = vmul.f32 %v3111, 0.3275911
  %v3128 = vmul.f32 %v3112, 0.3275911
  %v3129 = vmul.f32 %v3113, 0.3275911
  %v3130 = vmul.f32 %v3114, 0.3275911
  %v3131 = vmul.f32 %v3115, 0.3275911
  %v3132 = vmul.f32 %v3116, 0.3275911
  %v3133 = vmul.f32 %v3117, 0.3275911
  %v3134 = vmul.f32 %v3118, 0.3275911
  %v3135 = vmul.f32 %v3119, 0.3275911
  %v3136 = vmul.f32 %v3120, 0.3275911
  %v3137 = vmul.f32 %v3121, 0.3275911
  %v3138 = vmul.f32 %v3122, 0.3275911
  %v3139 = vmul.f32 %v3123, 0.3275911
  %v3140 = vmul.f32 %v3124, 0.3275911
  %v3141 = vmul.f32 %v3125, 0.3275911
  %v3142 = vmul.f32 %v3126, 0.3275911
  %v3143 = vadd.f32 %v3127, 1.0
  %v3144 = vadd.f32 %v3128, 1.0
  %v3145 = vadd.f32 %v3129, 1.0
  %v3146 = vadd.f32 %v3130, 1.0
  %v3147 = vadd.f32 %v3131, 1.0
  %v3148 = vadd.f32 %v3132, 1.0
  %v3149 = vadd.f32 %v3133, 1.0
  %v3150 = vadd.f32 %v3134, 1.0
  %v3151 = vadd.f32 %v3135, 1.0
  %v3152 = vadd.f32 %v3136, 1.0
  %v3153 = vadd.f32 %v3137, 1.0
  %v3154 = vadd.f32 %v3138, 1.0
  %v3155 = vadd.f32 %v3139, 1.0
  %v3156 = vadd.f32 %v3140, 1.0
  %v3157 = vadd.f32 %v3141, 1.0
  %v3158 = vadd.f32 %v3142, 1.0
  %v3159 = vrcp.pop %v3143
  %v3160 = vmul.f32 1.0, %v3159
  %v3161 = vrcp.pop %v3144
  %v3162 = vmul.f32 1.0, %v3161
  %v3163 = vrcp.pop %v3145
  %v3164 = vmul.f32 1.0, %v3163
  %v3165 = vrcp.pop %v3146
  %v3166 = vmul.f32 1.0, %v3165
  %v3167 = vrcp.pop %v3147
  %v3168 = vmul.f32 1.0, %v3167
  %v3169 = vrcp.pop %v3148
  %v3170 = vmul.f32 1.0, %v3169
  %v3171 = vrcp.pop %v3149
  %v3172 = vmul.f32 1.0, %v3171
  %v3173 = vrcp.pop %v3150
  %v3174 = vmul.f32 1.0, %v3173
  %v3175 = vrcp.pop %v3151
  %v3176 = vmul.f32 1.0, %v3175
  %v3177 = vrcp.pop %v3152
  %v3178 = vmul.f32 1.0, %v3177
  %v3179 = vrcp.pop %v3153
  %v3180 = vmul.f32 1.0, %v3179
  %v3181 = vrcp.pop %v3154
  %v3182 = vmul.f32 1.0, %v3181
  %v3183 = vrcp.pop %v3155
  %v3184 = vmul.f32 1.0, %v3183
  %v3185 = vrcp.pop %v3156
  %v3186 = vmul.f32 1.0, %v3185
  %v3187 = vrcp.pop %v3157
  %v3188 = vmul.f32 1.0, %v3187
  %v3189 = vrcp.pop %v3158
  %v3190 = vmul.f32 1.0, %v3189
  %v3191 = vmul.f32 %v3160, 1.0614054
  %v3192 = vmul.f32 %v3162, 1.0614054
  %v3193 = vmul.f32 %v3164, 1.0614054
  %v3194 = vmul.f32 %v3166, 1.0614054
  %v3195 = vmul.f32 %v3168, 1.0614054
  %v3196 = vmul.f32 %v3170, 1.0614054
  %v3197 = vmul.f32 %v3172, 1.0614054
  %v3198 = vmul.f32 %v3174, 1.0614054
  %v3199 = vmul.f32 %v3176, 1.0614054
  %v3200 = vmul.f32 %v3178, 1.0614054
  %v3201 = vmul.f32 %v3180, 1.0614054
  %v3202 = vmul.f32 %v3182, 1.0614054
  %v3203 = vmul.f32 %v3184, 1.0614054
  %v3204 = vmul.f32 %v3186, 1.0614054
  %v3205 = vmul.f32 %v3188, 1.0614054
  %v3206 = vmul.f32 %v3190, 1.0614054
  %v3207 = vadd.f32 %v3191, -1.4531521
  %v3208 = vadd.f32 %v3192, -1.4531521
  %v3209 = vadd.f32 %v3193, -1.4531521
  %v3210 = vadd.f32 %v3194, -1.4531521
  %v3211 = vadd.f32 %v3195, -1.4531521
  %v3212 = vadd.f32 %v3196, -1.4531521
  %v3213 = vadd.f32 %v3197, -1.4531521
  %v3214 = vadd.f32 %v3198, -1.4531521
  %v3215 = vadd.f32 %v3199, -1.4531521
  %v3216 = vadd.f32 %v3200, -1.4531521
  %v3217 = vadd.f32 %v3201, -1.4531521
  %v3218 = vadd.f32 %v3202, -1.4531521
  %v3219 = vadd.f32 %v3203, -1.4531521
  %v3220 = vadd.f32 %v3204, -1.4531521
  %v3221 = vadd.f32 %v3205, -1.4531521
  %v3222 = vadd.f32 %v3206, -1.4531521
  %v3223 = vmul.f32 %v3207, %v3160
  %v3224 = vmul.f32 %v3208, %v3162
  %v3225 = vmul.f32 %v3209, %v3164
  %v3226 = vmul.f32 %v3210, %v3166
  %v3227 = vmul.f32 %v3211, %v3168
  %v3228 = vmul.f32 %v3212, %v3170
  %v3229 = vmul.f32 %v3213, %v3172
  %v3230 = vmul.f32 %v3214, %v3174
  %v3231 = vmul.f32 %v3215, %v3176
  %v3232 = vmul.f32 %v3216, %v3178
  %v3233 = vmul.f32 %v3217, %v3180
  %v3234 = vmul.f32 %v3218, %v3182
  %v3235 = vmul.f32 %v3219, %v3184
  %v3236 = vmul.f32 %v3220, %v3186
  %v3237 = vmul.f32 %v3221, %v3188
  %v3238 = vmul.f32 %v3222, %v3190
  %v3239 = vadd.f32 %v3223, 1.4214138
  %v3240 = vadd.f32 %v3224, 1.4214138
  %v3241 = vadd.f32 %v3225, 1.4214138
  %v3242 = vadd.f32 %v3226, 1.4214138
  %v3243 = vadd.f32 %v3227, 1.4214138
  %v3244 = vadd.f32 %v3228, 1.4214138
  %v3245 = vadd.f32 %v3229, 1.4214138
  %v3246 = vadd.f32 %v3230, 1.4214138
  %v3247 = vadd.f32 %v3231, 1.4214138
  %v3248 = vadd.f32 %v3232, 1.4214138
  %v3249 = vadd.f32 %v3233, 1.4214138
  %v3250 = vadd.f32 %v3234, 1.4214138
  %v3251 = vadd.f32 %v3235, 1.4214138
  %v3252 = vadd.f32 %v3236, 1.4214138
  %v3253 = vadd.f32 %v3237, 1.4214138
  %v3254 = vadd.f32 %v3238, 1.4214138
  %v3255 = vmul.f32 %v3239, %v3160
  %v3256 = vmul.f32 %v3240, %v3162
  %v3257 = vmul.f32 %v3241, %v3164
  %v3258 = vmul.f32 %v3242, %v3166
  %v3259 = vmul.f32 %v3243, %v3168
  %v3260 = vmul.f32 %v3244, %v3170
  %v3261 = vmul.f32 %v3245, %v3172
  %v3262 = vmul.f32 %v3246, %v3174
  %v3263 = vmul.f32 %v3247, %v3176
  %v3264 = vmul.f32 %v3248, %v3178
  %v3265 = vmul.f32 %v3249, %v3180
  %v3266 = vmul.f32 %v3250, %v3182
  %v3267 = vmul.f32 %v3251, %v3184
  %v3268 = vmul.f32 %v3252, %v3186
  %v3269 = vmul.f32 %v3253, %v3188
  %v3270 = vmul.f32 %v3254, %v3190
  %v3271 = vadd.f32 %v3255, -0.28449672
  %v3272 = vadd.f32 %v3256, -0.28449672
  %v3273 = vadd.f32 %v3257, -0.28449672
  %v3274 = vadd.f32 %v3258, -0.28449672
  %v3275 = vadd.f32 %v3259, -0.28449672
  %v3276 = vadd.f32 %v3260, -0.28449672
  %v3277 = vadd.f32 %v3261, -0.28449672
  %v3278 = vadd.f32 %v3262, -0.28449672
  %v3279 = vadd.f32 %v3263, -0.28449672
  %v3280 = vadd.f32 %v3264, -0.28449672
  %v3281 = vadd.f32 %v3265, -0.28449672
  %v3282 = vadd.f32 %v3266, -0.28449672
  %v3283 = vadd.f32 %v3267, -0.28449672
  %v3284 = vadd.f32 %v3268, -0.28449672
  %v3285 = vadd.f32 %v3269, -0.28449672
  %v3286 = vadd.f32 %v3270, -0.28449672
  %v3287 = vmul.f32 %v3271, %v3160
  %v3288 = vmul.f32 %v3272, %v3162
  %v3289 = vmul.f32 %v3273, %v3164
  %v3290 = vmul.f32 %v3274, %v3166
  %v3291 = vmul.f32 %v3275, %v3168
  %v3292 = vmul.f32 %v3276, %v3170
  %v3293 = vmul.f32 %v3277, %v3172
  %v3294 = vmul.f32 %v3278, %v3174
  %v3295 = vmul.f32 %v3279, %v3176
  %v3296 = vmul.f32 %v3280, %v3178
  %v3297 = vmul.f32 %v3281, %v3180
  %v3298 = vmul.f32 %v3282, %v3182
  %v3299 = vmul.f32 %v3283, %v3184
  %v3300 = vmul.f32 %v3284, %v3186
  %v3301 = vmul.f32 %v3285, %v3188
  %v3302 = vmul.f32 %v3286, %v3190
  %v3303 = vadd.f32 %v3287, 0.2548296
  %v3304 = vadd.f32 %v3288, 0.2548296
  %v3305 = vadd.f32 %v3289, 0.2548296
  %v3306 = vadd.f32 %v3290, 0.2548296
  %v3307 = vadd.f32 %v3291, 0.2548296
  %v3308 = vadd.f32 %v3292, 0.2548296
  %v3309 = vadd.f32 %v3293, 0.2548296
  %v3310 = vadd.f32 %v3294, 0.2548296
  %v3311 = vadd.f32 %v3295, 0.2548296
  %v3312 = vadd.f32 %v3296, 0.2548296
  %v3313 = vadd.f32 %v3297, 0.2548296
  %v3314 = vadd.f32 %v3298, 0.2548296
  %v3315 = vadd.f32 %v3299, 0.2548296
  %v3316 = vadd.f32 %v3300, 0.2548296
  %v3317 = vadd.f32 %v3301, 0.2548296
  %v3318 = vadd.f32 %v3302, 0.2548296
  %v3319 = vmul.f32 %v3303, %v3160
  %v3320 = vmul.f32 %v3304, %v3162
  %v3321 = vmul.f32 %v3305, %v3164
  %v3322 = vmul.f32 %v3306, %v3166
  %v3323 = vmul.f32 %v3307, %v3168
  %v3324 = vmul.f32 %v3308, %v3170
  %v3325 = vmul.f32 %v3309, %v3172
  %v3326 = vmul.f32 %v3310, %v3174
  %v3327 = vmul.f32 %v3311, %v3176
  %v3328 = vmul.f32 %v3312, %v3178
  %v3329 = vmul.f32 %v3313, %v3180
  %v3330 = vmul.f32 %v3314, %v3182
  %v3331 = vmul.f32 %v3315, %v3184
  %v3332 = vmul.f32 %v3316, %v3186
  %v3333 = vmul.f32 %v3317, %v3188
  %v3334 = vmul.f32 %v3318, %v3190
  %v3335 = vsub.f32 0.0, %v3111
  %v3336 = vsub.f32 0.0, %v3112
  %v3337 = vsub.f32 0.0, %v3113
  %v3338 = vsub.f32 0.0, %v3114
  %v3339 = vsub.f32 0.0, %v3115
  %v3340 = vsub.f32 0.0, %v3116
  %v3341 = vsub.f32 0.0, %v3117
  %v3342 = vsub.f32 0.0, %v3118
  %v3343 = vsub.f32 0.0, %v3119
  %v3344 = vsub.f32 0.0, %v3120
  %v3345 = vsub.f32 0.0, %v3121
  %v3346 = vsub.f32 0.0, %v3122
  %v3347 = vsub.f32 0.0, %v3123
  %v3348 = vsub.f32 0.0, %v3124
  %v3349 = vsub.f32 0.0, %v3125
  %v3350 = vsub.f32 0.0, %v3126
  %v3351 = vmul.f32 %v3335, %v3111
  %v3352 = vmul.f32 %v3336, %v3112
  %v3353 = vmul.f32 %v3337, %v3113
  %v3354 = vmul.f32 %v3338, %v3114
  %v3355 = vmul.f32 %v3339, %v3115
  %v3356 = vmul.f32 %v3340, %v3116
  %v3357 = vmul.f32 %v3341, %v3117
  %v3358 = vmul.f32 %v3342, %v3118
  %v3359 = vmul.f32 %v3343, %v3119
  %v3360 = vmul.f32 %v3344, %v3120
  %v3361 = vmul.f32 %v3345, %v3121
  %v3362 = vmul.f32 %v3346, %v3122
  %v3363 = vmul.f32 %v3347, %v3123
  %v3364 = vmul.f32 %v3348, %v3124
  %v3365 = vmul.f32 %v3349, %v3125
  %v3366 = vmul.f32 %v3350, %v3126
  %v3367 = vmul.f32 %v3351, 1.442695
  %v3368 = vpow.pop %v3367
  %v3369 = vmul.f32 %v3352, 1.442695
  %v3370 = vpow.pop %v3369
  %v3371 = vmul.f32 %v3353, 1.442695
  %v3372 = vpow.pop %v3371
  %v3373 = vmul.f32 %v3354, 1.442695
  %v3374 = vpow.pop %v3373
  %v3375 = vmul.f32 %v3355, 1.442695
  %v3376 = vpow.pop %v3375
  %v3377 = vmul.f32 %v3356, 1.442695
  %v3378 = vpow.pop %v3377
  %v3379 = vmul.f32 %v3357, 1.442695
  %v3380 = vpow.pop %v3379
  %v3381 = vmul.f32 %v3358, 1.442695
  %v3382 = vpow.pop %v3381
  %v3383 = vmul.f32 %v3359, 1.442695
  %v3384 = vpow.pop %v3383
  %v3385 = vmul.f32 %v3360, 1.442695
  %v3386 = vpow.pop %v3385
  %v3387 = vmul.f32 %v3361, 1.442695
  %v3388 = vpow.pop %v3387
  %v3389 = vmul.f32 %v3362, 1.442695
  %v3390 = vpow.pop %v3389
  %v3391 = vmul.f32 %v3363, 1.442695
  %v3392 = vpow.pop %v3391
  %v3393 = vmul.f32 %v3364, 1.442695
  %v3394 = vpow.pop %v3393
  %v3395 = vmul.f32 %v3365, 1.442695
  %v3396 = vpow.pop %v3395
  %v3397 = vmul.f32 %v3366, 1.442695
  %v3398 = vpow.pop %v3397
  %v3399 = vmul.f32 %v3319, %v3368
  %v3400 = vmul.f32 %v3320, %v3370
  %v3401 = vmul.f32 %v3321, %v3372
  %v3402 = vmul.f32 %v3322, %v3374
  %v3403 = vmul.f32 %v3323, %v3376
  %v3404 = vmul.f32 %v3324, %v3378
  %v3405 = vmul.f32 %v3325, %v3380
  %v3406 = vmul.f32 %v3326, %v3382
  %v3407 = vmul.f32 %v3327, %v3384
  %v3408 = vmul.f32 %v3328, %v3386
  %v3409 = vmul.f32 %v3329, %v3388
  %v3410 = vmul.f32 %v3330, %v3390
  %v3411 = vmul.f32 %v3331, %v3392
  %v3412 = vmul.f32 %v3332, %v3394
  %v3413 = vmul.f32 %v3333, %v3396
  %v3414 = vmul.f32 %v3334, %v3398
  %v3415 = vsub.f32 1.0, %v3399
  %v3416 = vsub.f32 1.0, %v3400
  %v3417 = vsub.f32 1.0, %v3401
  %v3418 = vsub.f32 1.0, %v3402
  %v3419 = vsub.f32 1.0, %v3403
  %v3420 = vsub.f32 1.0, %v3404
  %v3421 = vsub.f32 1.0, %v3405
  %v3422 = vsub.f32 1.0, %v3406
  %v3423 = vsub.f32 1.0, %v3407
  %v3424 = vsub.f32 1.0, %v3408
  %v3425 = vsub.f32 1.0, %v3409
  %v3426 = vsub.f32 1.0, %v3410
  %v3427 = vsub.f32 1.0, %v3411
  %v3428 = vsub.f32 1.0, %v3412
  %v3429 = vsub.f32 1.0, %v3413
  %v3430 = vsub.f32 1.0, %v3414
  %v3431 = vmul.f32 %v3033, 0.5
  %v3432 = vmul.f32 %v3036, 0.5
  %v3433 = vmul.f32 %v3041, 0.5
  %v3434 = vmul.f32 %v3044, 0.5
  %v3435 = vmul.f32 %v3049, 0.5
  %v3436 = vmul.f32 %v3052, 0.5
  %v3437 = vmul.f32 %v3057, 0.5
  %v3438 = vmul.f32 %v3060, 0.5
  %v3439 = vmul.f32 %v3065, 0.5
  %v3440 = vmul.f32 %v3068, 0.5
  %v3441 = vmul.f32 %v3073, 0.5
  %v3442 = vmul.f32 %v3076, 0.5
  %v3443 = vmul.f32 %v3081, 0.5
  %v3444 = vmul.f32 %v3084, 0.5
  %v3445 = vmul.f32 %v3089, 0.5
  %v3446 = vmul.f32 %v3092, 0.5
  %vm3447 = vcmp.ge.f32.partialorder %v3033, 0.0
  %vm3448 = vcmp.ge.f32.partialorder %v3036, 0.0
  %vm3449 = vcmp.ge.f32.partialorder %v3041, 0.0
  %vm3450 = vcmp.ge.f32.partialorder %v3044, 0.0
  %vm3451 = vcmp.ge.f32.partialorder %v3049, 0.0
  %vm3452 = vcmp.ge.f32.partialorder %v3052, 0.0
  %vm3453 = vcmp.ge.f32.partialorder %v3057, 0.0
  %vm3454 = vcmp.ge.f32.partialorder %v3060, 0.0
  %vm3455 = vcmp.ge.f32.partialorder %v3065, 0.0
  %vm3456 = vcmp.ge.f32.partialorder %v3068, 0.0
  %vm3457 = vcmp.ge.f32.partialorder %v3073, 0.0
  %vm3458 = vcmp.ge.f32.partialorder %v3076, 0.0
  %vm3459 = vcmp.ge.f32.partialorder %v3081, 0.0
  %vm3460 = vcmp.ge.f32.partialorder %v3084, 0.0
  %vm3461 = vcmp.ge.f32.partialorder %v3089, 0.0
  %vm3462 = vcmp.ge.f32.partialorder %v3092, 0.0
  %v3463 = vsub.f32 0.0, %v3415
  %v3464 = vsub.f32 0.0, %v3416
  %v3465 = vsub.f32 0.0, %v3417
  %v3466 = vsub.f32 0.0, %v3418
  %v3467 = vsub.f32 0.0, %v3419
  %v3468 = vsub.f32 0.0, %v3420
  %v3469 = vsub.f32 0.0, %v3421
  %v3470 = vsub.f32 0.0, %v3422
  %v3471 = vsub.f32 0.0, %v3423
  %v3472 = vsub.f32 0.0, %v3424
  %v3473 = vsub.f32 0.0, %v3425
  %v3474 = vsub.f32 0.0, %v3426
  %v3475 = vsub.f32 0.0, %v3427
  %v3476 = vsub.f32 0.0, %v3428
  %v3477 = vsub.f32 0.0, %v3429
  %v3478 = vsub.f32 0.0, %v3430
  %v3479 = vsel %vm3447, %v3415, %v3463
  %v3480 = vsel %vm3448, %v3416, %v3464
  %v3481 = vsel %vm3449, %v3417, %v3465
  %v3482 = vsel %vm3450, %v3418, %v3466
  %v3483 = vsel %vm3451, %v3419, %v3467
  %v3484 = vsel %vm3452, %v3420, %v3468
  %v3485 = vsel %vm3453, %v3421, %v3469
  %v3486 = vsel %vm3454, %v3422, %v3470
  %v3487 = vsel %vm3455, %v3423, %v3471
  %v3488 = vsel %vm3456, %v3424, %v3472
  %v3489 = vsel %vm3457, %v3425, %v3473
  %v3490 = vsel %vm3458, %v3426, %v3474
  %v3491 = vsel %vm3459, %v3427, %v3475
  %v3492 = vsel %vm3460, %v3428, %v3476
  %v3493 = vsel %vm3461, %v3429, %v3477
  %v3494 = vsel %vm3462, %v3430, %v3478
  %v3495 = vadd.f32 %v3479, 1.0
  %v3496 = vadd.f32 %v3480, 1.0
  %v3497 = vadd.f32 %v3481, 1.0
  %v3498 = vadd.f32 %v3482, 1.0
  %v3499 = vadd.f32 %v3483, 1.0
  %v3500 = vadd.f32 %v3484, 1.0
  %v3501 = vadd.f32 %v3485, 1.0
  %v3502 = vadd.f32 %v3486, 1.0
  %v3503 = vadd.f32 %v3487, 1.0
  %v3504 = vadd.f32 %v3488, 1.0
  %v3505 = vadd.f32 %v3489, 1.0
  %v3506 = vadd.f32 %v3490, 1.0
  %v3507 = vadd.f32 %v3491, 1.0
  %v3508 = vadd.f32 %v3492, 1.0
  %v3509 = vadd.f32 %v3493, 1.0
  %v3510 = vadd.f32 %v3494, 1.0
  %v3511 = vmul.f32 %v3431, %v3495
  %v3512 = vmul.f32 %v3432, %v3496
  %v3513 = vmul.f32 %v3433, %v3497
  %v3514 = vmul.f32 %v3434, %v3498
  %v3515 = vmul.f32 %v3435, %v3499
  %v3516 = vmul.f32 %v3436, %v3500
  %v3517 = vmul.f32 %v3437, %v3501
  %v3518 = vmul.f32 %v3438, %v3502
  %v3519 = vmul.f32 %v3439, %v3503
  %v3520 = vmul.f32 %v3440, %v3504
  %v3521 = vmul.f32 %v3441, %v3505
  %v3522 = vmul.f32 %v3442, %v3506
  %v3523 = vmul.f32 %v3443, %v3507
  %v3524 = vmul.f32 %v3444, %v3508
  %v3525 = vmul.f32 %v3445, %v3509
  %v3526 = vmul.f32 %v3446, %v3510
  %v3527 = vpack.c.bf16 %v3512, %v3511
  %v3528 = vpack.c.bf16 %v3514, %v3513
  %v3529 = vpack.c.bf16 %v3516, %v3515
  %v3530 = vpack.c.bf16 %v3518, %v3517
  %v3531 = vpack.c.bf16 %v3520, %v3519
  %v3532 = vpack.c.bf16 %v3522, %v3521
  %v3533 = vpack.c.bf16 %v3524, %v3523
  %v3534 = vpack.c.bf16 %v3526, %v3525
  %v3535 = vld [vmem:[%s12] sm:$0xf]
  %v3536 = vld [vmem:[%s12 + $0x4] sm:$0xf]
  %v3537 = vld [vmem:[%s12 + $0x8] sm:$0xf]
  %v3538 = vld [vmem:[%s12 + $0xc] sm:$0xf]
  %v3539 = vld [vmem:[%s12 + $0x10] sm:$0xf]
  %v3540 = vld [vmem:[%s12 + $0x14] sm:$0xf]
  %v3541 = vld [vmem:[%s12 + $0x18] sm:$0xf]
  %v3542 = vld [vmem:[%s12 + $0x1c] sm:$0xf]
  %v3543 = vld [vmem:[%s12 + $0x20] sm:$0xf]
  %v3544 = vld [vmem:[%s12 + $0x24] sm:$0xf]
  %v3545 = vld [vmem:[%s12 + $0x28] sm:$0xf]
  %v3546 = vld [vmem:[%s12 + $0x2c] sm:$0xf]
  %v3547 = vld [vmem:[%s12 + $0x30] sm:$0xf]
  %v3548 = vld [vmem:[%s12 + $0x34] sm:$0xf]
  %v3549 = vld [vmem:[%s12 + $0x38] sm:$0xf]
  %v3550 = vld [vmem:[%s12 + $0x3c] sm:$0xf]
  %v3551 = vld [vmem:[%s13] sm:$0x1]
  %v3553 = vlaneseq
  %v3554 = vshrl.u32 %v3553, 7
  %v3555 = vsub.s32 0, %v3554
  %v3556 = vrot.slane %v3551, %v3555
  %v3574 = vunpack.c.l.b16 %v3535
  %v3575 = vunpack.c.l.b16 %v3536
  %v3576 = vunpack.c.l.b16 %v3537
  %v3577 = vunpack.c.l.b16 %v3538
  %v3578 = vunpack.c.l.b16 %v3539
  %v3579 = vunpack.c.l.b16 %v3540
  %v3580 = vunpack.c.l.b16 %v3541
  %v3581 = vunpack.c.l.b16 %v3542
  %v3582 = vunpack.c.l.b16 %v3543
  %v3583 = vunpack.c.l.b16 %v3544
  %v3584 = vunpack.c.l.b16 %v3545
  %v3585 = vunpack.c.l.b16 %v3546
  %v3586 = vunpack.c.l.b16 %v3547
  %v3587 = vunpack.c.l.b16 %v3548
  %v3588 = vunpack.c.l.b16 %v3549
  %v3589 = vunpack.c.l.b16 %v3550
  %v3590 = vpack.c.b16 %v3575, %v3574
  %v3591 = vpack.c.b16 %v3577, %v3576
  %v3592 = vpack.c.b16 %v3579, %v3578
  %v3593 = vpack.c.b16 %v3581, %v3580
  %v3594 = vpack.c.b16 %v3583, %v3582
  %v3595 = vpack.c.b16 %v3585, %v3584
  %v3596 = vpack.c.b16 %v3587, %v3586
  %v3597 = vpack.c.b16 %v3589, %v3588
  %3606 = vmatprep.subr.bf16.mxu0 0
  %3607 = vmatpush1.bf16.msra.mxu0 %v3590
  %3608 = vmatprep.subr.bf16.mxu0 0
  %3609 = vmatpush1.bf16.msra.mxu0 %v3591
  %3610 = vmatprep.subr.bf16.mxu0 0
  %3611 = vmatpush1.bf16.msra.mxu0 %v3592
  %3612 = vmatprep.subr.bf16.mxu0 0
  %3613 = vmatpush1.bf16.msra.mxu0 %v3593
  %3614 = vmatprep.subr.bf16.mxu0 0
  %3615 = vmatpush1.bf16.msra.mxu0 %v3594
  %3616 = vmatprep.subr.bf16.mxu0 0
  %3617 = vmatpush1.bf16.msra.mxu0 %v3595
  %3618 = vmatprep.subr.bf16.mxu0 0
  %3619 = vmatpush1.bf16.msra.mxu0 %v3596
  %3620 = vmatprep.subr.bf16.mxu0 0
  %3621 = vmatpush1.bf16.msra.mxu0 %v3597
  %3622 = vmatprep.subr.bf16.mxu0 0
  %3623 = vmatpush1.bf16.msra.mxu0 0
  %3624 = vmatprep.subr.bf16.mxu0 0
  %3625 = vmatpush1.bf16.msra.mxu0 0
  %3626 = vmatprep.subr.bf16.mxu0 0
  %3627 = vmatpush1.bf16.msra.mxu0 0
  %3628 = vmatprep.subr.bf16.mxu0 0
  %3629 = vmatpush1.bf16.msra.mxu0 0
  %3630 = vmatprep.subr.bf16.mxu0 0
  %3631 = vmatpush1.bf16.msra.mxu0 0
  %3632 = vmatprep.subr.bf16.mxu0 0
  %3633 = vmatpush1.bf16.msra.mxu0 0
  %3634 = vmatprep.subr.bf16.mxu0 0
  %3635 = vmatpush1.bf16.msra.mxu0 0
  %3636 = vmatprep.subr.bf16.mxu0 0
  %3637 = vmatpush1.bf16.msra.mxu0 0
  %3638 = vmatprep.mubr.bf16.mxu0 0
  %3639 = vmatmul.mubr.bf16.gmra.mrb[0].mxu0 %v3527
  %v3640 = vpop.f32.mrb[0].mxu0
  %v3641 = vadd.f32 %v3556, %v3640
  %v3642 = vpop.f32.mrb[0].mxu0
  %v3643 = vpop.f32.mrb[0].mxu0
  %v3644 = vadd.f32 %v3556, %v3643
  %v3645 = vpop.f32.mrb[0].mxu0
  %3646 = vmatprep.mubr.bf16.mxu0 0
  %3647 = vmatmul.mubr.bf16.gmra.mrb[0].mxu0 %v3528
  %v3648 = vpop.f32.mrb[0].mxu0
  %v3649 = vadd.f32 %v3556, %v3648
  %v3650 = vpop.f32.mrb[0].mxu0
  %v3651 = vpop.f32.mrb[0].mxu0
  %v3652 = vadd.f32 %v3556, %v3651
  %v3653 = vpop.f32.mrb[0].mxu0
  %3654 = vmatprep.mubr.bf16.mxu0 0
  %3655 = vmatmul.mubr.bf16.gmra.mrb[0].mxu0 %v3529
  %v3656 = vpop.f32.mrb[0].mxu0
  %v3657 = vadd.f32 %v3556, %v3656
  %v3658 = vpop.f32.mrb[0].mxu0
  %v3659 = vpop.f32.mrb[0].mxu0
  %v3660 = vadd.f32 %v3556, %v3659
  %v3661 = vpop.f32.mrb[0].mxu0
  %3662 = vmatprep.mubr.bf16.mxu0 0
  %3663 = vmatmul.mubr.bf16.gmra.mrb[0].mxu0 %v3530
  %v3664 = vpop.f32.mrb[0].mxu0
  %v3665 = vadd.f32 %v3556, %v3664
  %v3666 = vpop.f32.mrb[0].mxu0
  %v3667 = vpop.f32.mrb[0].mxu0
  %v3668 = vadd.f32 %v3556, %v3667
  %v3669 = vpop.f32.mrb[0].mxu0
  %3670 = vmatprep.mubr.bf16.mxu0 0
  %3671 = vmatmul.mubr.bf16.gmra.mrb[0].mxu0 %v3531
  %v3672 = vpop.f32.mrb[0].mxu0
  %v3673 = vadd.f32 %v3556, %v3672
  %v3674 = vpop.f32.mrb[0].mxu0
  %v3675 = vpop.f32.mrb[0].mxu0
  %v3676 = vadd.f32 %v3556, %v3675
  %v3677 = vpop.f32.mrb[0].mxu0
  %3678 = vmatprep.mubr.bf16.mxu0 0
  %3679 = vmatmul.mubr.bf16.gmra.mrb[0].mxu0 %v3532
  %v3680 = vpop.f32.mrb[0].mxu0
  %v3681 = vadd.f32 %v3556, %v3680
  %v3682 = vpop.f32.mrb[0].mxu0
  %v3683 = vpop.f32.mrb[0].mxu0
  %v3684 = vadd.f32 %v3556, %v3683
  %v3685 = vpop.f32.mrb[0].mxu0
  %3686 = vmatprep.mubr.bf16.mxu0 0
  %3687 = vmatmul.mubr.bf16.gmra.mrb[0].mxu0 %v3533
  %v3688 = vpop.f32.mrb[0].mxu0
  %v3689 = vadd.f32 %v3556, %v3688
  %v3690 = vpop.f32.mrb[0].mxu0
  %v3691 = vpop.f32.mrb[0].mxu0
  %v3692 = vadd.f32 %v3556, %v3691
  %v3693 = vpop.f32.mrb[0].mxu0
  %3694 = vmatprep.mubr.bf16.mxu0 0
  %3695 = vmatmul.mubr.bf16.gmra.mrb[0].mxu0 %v3534
  %v3696 = vpop.f32.mrb[0].mxu0
  %v3697 = vadd.f32 %v3556, %v3696
  %v3698 = vpop.f32.mrb[0].mxu0
  %v3699 = vpop.f32.mrb[0].mxu0
  %v3700 = vadd.f32 %v3556, %v3699
  %v3701 = vpop.f32.mrb[0].mxu0
  %3702 = vdwg.mxu0
  %v3703 = vadd.f32 %v2673, %v3641
  %v3704 = vadd.f32 %v2674, %v3644
  %v3705 = vadd.f32 %v2675, %v3649
  %v3706 = vadd.f32 %v2676, %v3652
  %v3707 = vadd.f32 %v2677, %v3657
  %v3708 = vadd.f32 %v2678, %v3660
  %v3709 = vadd.f32 %v2679, %v3665
  %v3710 = vadd.f32 %v2680, %v3668
  %v3711 = vadd.f32 %v2681, %v3673
  %v3712 = vadd.f32 %v2682, %v3676
  %v3713 = vadd.f32 %v2683, %v3681
  %v3714 = vadd.f32 %v2684, %v3684
  %v3715 = vadd.f32 %v2685, %v3689
  %v3716 = vadd.f32 %v2686, %v3692
  %v3717 = vadd.f32 %v2687, %v3697
  %v3718 = vadd.f32 %v2688, %v3700
  %3719 = vst.msk [vmem:[%s14] sm:$0xff] %vm64, %v3703
  %3720 = vst.msk [vmem:[%s14 + $0x8] sm:$0xff] %vm64, %v3704
  %3721 = vst.msk [vmem:[%s14 + $0x10] sm:$0xff] %vm64, %v3705
  %3722 = vst.msk [vmem:[%s14 + $0x18] sm:$0xff] %vm64, %v3706
  %3723 = vst.msk [vmem:[%s14 + $0x20] sm:$0xff] %vm64, %v3707
  %3724 = vst.msk [vmem:[%s14 + $0x28] sm:$0xff] %vm64, %v3708
  %3725 = vst.msk [vmem:[%s14 + $0x30] sm:$0xff] %vm64, %v3709
  %3726 = vst.msk [vmem:[%s14 + $0x38] sm:$0xff] %vm64, %v3710
  %3727 = vst.msk [vmem:[%s14 + $0x40] sm:$0xff] %vm64, %v3711
  %3728 = vst.msk [vmem:[%s14 + $0x48] sm:$0xff] %vm64, %v3712
  %3729 = vst.msk [vmem:[%s14 + $0x50] sm:$0xff] %vm64, %v3713
  %3730 = vst.msk [vmem:[%s14 + $0x58] sm:$0xff] %vm64, %v3714
  %3731 = vst.msk [vmem:[%s14 + $0x60] sm:$0xff] %vm64, %v3715
  %3732 = vst.msk [vmem:[%s14 + $0x68] sm:$0xff] %vm64, %v3716
  %3733 = vst.msk [vmem:[%s14 + $0x70] sm:$0xff] %vm64, %v3717
  %3734 = vst.msk [vmem:[%s14 + $0x78] sm:$0xff] %vm64, %v3718
  // Predicated region
  $region58: #{_lambda_.3} parent=0 // pred_check
    _
  $region59: #{_lambda_.3} parent=0 // pred_check_branch
    %3736 = sbr.rel (0) target = $region61
  $region60: #{_lambda_.3} parent=0 // pred_region
    _
  $region61: #{_lambda_.3} parent=0 // pred_fallthru
    _
  // Predicated region
  $region62: #{_lambda_.3} parent=0 // pred_check
    _
  $region63: #{_lambda_.3} parent=0 // pred_check_branch
    %3738 = sbr.rel (0) target = $region65
  $region64: #{_lambda_.3} parent=0 // pred_region
    _
  $region65: #{_lambda_.3} parent=0 // pred_fallthru
    _

</llo_original>
